<compile_context>
chip_gen: v6e
topology: v6e:2x2x1
jax: 0.10.0
libtpu: 0.0.40
codegen_flags: <defaults>
</compile_context>

<pallas_src>
import functools

import numpy as np
import jax
import jax.numpy as jnp
from jax.experimental import pallas as pl
from jax.experimental.pallas import tpu as pltpu

NUM_CLASSES = 19
_VMEM_BUDGET = 14 * 1024 * 1024   # per-kernel working-set target (double-buffered)
_VMEM_LIMIT = 48 * 1024 * 1024    # explicit scoped-VMEM cap (safe on v5e/v6e/v7x)
_TK_MAX = 4096


def _round_up(x, m):
    return (x + m - 1) // m * m


# ---------------------------------------------------------------------------
# Pallas kernel 1: tiled matmul (bf16 operands, f32 accumulator) with fused
# per-output-channel scale/shift (folded eval-mode BatchNorm + bias) and
# optional ReLU epilogue.
# ---------------------------------------------------------------------------
def _mm_scale_shift_kernel(a_ref, b_ref, scale_ref, shift_ref, o_ref, acc_ref,
                           *, relu):
    k = pl.program_id(2)

    @pl.when(k == 0)
    def _():
        acc_ref[...] = jnp.zeros_like(acc_ref)

    acc_ref[...] += jnp.dot(a_ref[...], b_ref[...],
                            preferred_element_type=jnp.float32)

    @pl.when(k == pl.num_programs(2) - 1)
    def _():
        y = acc_ref[...] * scale_ref[...] + shift_ref[...]
        if relu:
            y = jnp.maximum(y, 0.0)
        o_ref[...] = y.astype(o_ref.dtype)


def _choose_tiles(M, K, N):
    """Pick (tm, tk, tn) maximizing tile size under a double-buffered VMEM budget."""
    Mp8 = _round_up(M, 8)
    Kp0 = _round_up(K, 128)
    Np = _round_up(N, 128)
    tn = min(512, Np)
    if Kp0 <= _TK_MAX:
        tk = Kp0
    else:
        n_k = -(-Kp0 // _TK_MAX)
        tk = _round_up(-(-Kp0 // n_k), 128)

    def fits(tm):
        a = 2 * tm * tk * 2          # bf16 A tile, double-buffered
        b = 2 * tk * tn * 2          # bf16 B tile, double-buffered
        o = 2 * tm * tn * 4          # output tile (worst-case f32), double-buffered
        acc = tm * tn * 4            # f32 accumulator scratch
        return a + b + o + acc <= _VMEM_BUDGET

    if Mp8 <= 256 and fits(Mp8):
        tm = Mp8
    else:
        tm = 128
        for cand in (2048, 1024, 512, 256, 128):
            if cand <= Mp8 and fits(cand):
                tm = cand
                break
    return tm, tk, tn


@functools.lru_cache(maxsize=None)
def _make_matmul_call(Mp, Kp, Np, tm, tk, tn, relu, out_dtype_name):
    grid = (Mp // tm, Np // tn, Kp // tk)
    return pl.pallas_call(
        functools.partial(_mm_scale_shift_kernel, relu=relu),
        out_shape=jax.ShapeDtypeStruct((Mp, Np), jnp.dtype(out_dtype_name)),
        grid_spec=pltpu.PrefetchScalarGridSpec(
            num_scalar_prefetch=0,
            grid=grid,
            in_specs=[
                pl.BlockSpec((tm, tk), lambda i, j, k: (i, k)),
                pl.BlockSpec((tk, tn), lambda i, j, k: (k, j)),
                pl.BlockSpec((1, tn), lambda i, j, k: (0, j)),
                pl.BlockSpec((1, tn), lambda i, j, k: (0, j)),
            ],
            out_specs=pl.BlockSpec((tm, tn), lambda i, j, k: (i, j)),
            scratch_shapes=[pltpu.VMEM((tm, tn), jnp.float32)],
        ),
        compiler_params=pltpu.CompilerParams(
            dimension_semantics=("parallel", "parallel", "arbitrary"),
            vmem_limit_bytes=_VMEM_LIMIT),
    )


def matmul_scale_shift(a, b, scale, shift, *, relu, out_dtype=jnp.float32):
    """out = maybe_relu((a @ b) * scale + shift); a:(M,K) b:(K,N) scale/shift:(N,)."""
    M, K = a.shape
    Kb, N = b.shape
    assert K == Kb
    tm, tk, tn = _choose_tiles(M, K, N)
    Mp, Kp, Np = _round_up(M, tm), _round_up(K, tk), _round_up(N, tn)

    a = a.astype(jnp.bfloat16)
    b = b.astype(jnp.bfloat16)
    if (Mp, Kp) != (M, K):
        a = jnp.pad(a, ((0, Mp - M), (0, Kp - K)))
    if (Kp, Np) != (K, N):
        b = jnp.pad(b, ((0, Kp - K), (0, Np - N)))
    scale_p = jnp.pad(scale.astype(jnp.float32).reshape(1, N),
                      ((0, 0), (0, Np - N)))
    shift_p = jnp.pad(shift.astype(jnp.float32).reshape(1, N),
                      ((0, 0), (0, Np - N)))

    fn = _make_matmul_call(Mp, Kp, Np, tm, tk, tn, bool(relu),
                           jnp.dtype(out_dtype).name)
    out = fn(a, b, scale_p, shift_p)
    return out[:M, :N]


# ---------------------------------------------------------------------------
# Pallas kernel 2: bilinear upsample (align_corners=True) + optional skip add.
# One (n, c) spatial plane per grid step:  out = Rh @ X @ Rw^T [+ skip].
# ---------------------------------------------------------------------------
def _upsample_kernel(x_ref, rh_ref, rwt_ref, *rest, has_skip):
    if has_skip:
        skip_ref, o_ref = rest
    else:
        (o_ref,) = rest
    x = x_ref[0, 0]
    if x_ref.shape[2] == 1 and x_ref.shape[3] == 1:
        # align_corners=True bilinear from a 1x1 source is a constant fill.
        up = jnp.broadcast_to(x, (o_ref.shape[2], o_ref.shape[3]))
    else:
        tmp = jnp.dot(rh_ref[...], x, preferred_element_type=jnp.float32)
        up = jnp.dot(tmp, rwt_ref[...], preferred_element_type=jnp.float32)
    if has_skip:
        up = up + skip_ref[0, 0]
    o_ref[0, 0] = up.astype(o_ref.dtype)


@functools.lru_cache(maxsize=None)
def _make_upsample_call(N, C, Hi, Wi, Ho, Wo, has_skip):
    in_specs = [
        pl.BlockSpec((1, 1, Hi, Wi), lambda n, c: (n, c, 0, 0)),
        pl.BlockSpec((Ho, Hi), lambda n, c: (0, 0)),
        pl.BlockSpec((Wi, Wo), lambda n, c: (0, 0)),
    ]
    if has_skip:
        in_specs.append(pl.BlockSpec((1, 1, Ho, Wo), lambda n, c: (n, c, 0, 0)))
    return pl.pallas_call(
        functools.partial(_upsample_kernel, has_skip=has_skip),
        out_shape=jax.ShapeDtypeStruct((N, C, Ho, Wo), jnp.float32),
        grid_spec=pltpu.PrefetchScalarGridSpec(
            num_scalar_prefetch=0,
            grid=(N, C),
            in_specs=in_specs,
            out_specs=pl.BlockSpec((1, 1, Ho, Wo), lambda n, c: (n, c, 0, 0)),
        ),
        compiler_params=pltpu.CompilerParams(
            dimension_semantics=("parallel", "parallel"),
            vmem_limit_bytes=_VMEM_LIMIT),
    )


def _interp_matrix(out_size, in_size):
    """Row-stochastic bilinear interpolation matrix (align_corners=True)."""
    if in_size == 1:
        return jnp.ones((out_size, 1), jnp.float32)
    if out_size == 1:
        m = np.zeros((1, in_size), np.float32)
        m[0, 0] = 1.0
        return jnp.asarray(m)
    src = np.arange(out_size, dtype=np.float64) * ((in_size - 1) / (out_size - 1))
    lo = np.clip(np.floor(src).astype(np.int64), 0, in_size - 2)
    frac = (src - lo).astype(np.float32)
    rows = np.arange(out_size)
    m = np.zeros((out_size, in_size), np.float32)
    m[rows, lo] += 1.0 - frac
    m[rows, lo + 1] += frac
    return jnp.asarray(m)


def bilinear_upsample_add(x_nchw, out_hw, skip_nchw=None):
    N, C, Hi, Wi = x_nchw.shape
    Ho, Wo = out_hw
    rh = _interp_matrix(Ho, Hi)
    rwt = _interp_matrix(Wo, Wi).T
    fn = _make_upsample_call(N, C, Hi, Wi, Ho, Wo, skip_nchw is not None)
    args = [x_nchw.astype(jnp.float32), rh, rwt]
    if skip_nchw is not None:
        args.append(skip_nchw.astype(jnp.float32))
    return fn(*args)


# ---------------------------------------------------------------------------
# Glue: im2col, conv layer wrapper, ceil-mode 2x2 max pool.
# ---------------------------------------------------------------------------
def _im2col(x, kh, kw, pad):
    N, H, W, C = x.shape
    if pad:
        x = jnp.pad(x, ((0, 0), (pad, pad), (pad, pad), (0, 0)))
    Ho = H + 2 * pad - kh + 1
    Wo = W + 2 * pad - kw + 1
    if kh == 1 and kw == 1:
        return x.reshape(N * Ho * Wo, C), (N, Ho, Wo)
    cols = [x[:, dy:dy + Ho, dx:dx + Wo, :]
            for dy in range(kh) for dx in range(kw)]
    patches = jnp.concatenate(cols, axis=-1)
    return patches.reshape(N * Ho * Wo, kh * kw * C), (N, Ho, Wo)


def conv_layer(x, p, *, relu, pad, out_dtype=jnp.bfloat16, eps=1e-5):
    w = p['w']
    kh, kw, cin, cout = w.shape
    if 'gamma' in p:
        # Eval-mode BatchNorm folded into the matmul epilogue.
        # TODO(synk): training-mode batch statistics (PyTorch default
        # self.training=True) are not reproduced here.
        scale = p['gamma'] / jnp.sqrt(p['var'] + eps)
        shift = scale * (p['b'] - p['mean']) + p['beta']
    else:
        scale = jnp.ones((cout,), jnp.float32)
        shift = p['b']
    patches, (N, Ho, Wo) = _im2col(x.astype(jnp.bfloat16), kh, kw, pad)
    out = matmul_scale_shift(patches, w.reshape(kh * kw * cin, cout),
                             scale, shift, relu=relu, out_dtype=out_dtype)
    return out.reshape(N, Ho, Wo, cout)


def maxpool2x2_ceil(x):
    # 2x2 / stride-2 max pool with ceil_mode=True (pad odd edges with -inf).
    N, H, W, C = x.shape
    Hp, Wp = _round_up(H, 2), _round_up(W, 2)
    if (Hp, Wp) != (H, W):
        x = jnp.pad(x, ((0, 0), (0, Hp - H), (0, Wp - W), (0, 0)),
                    constant_values=-jnp.inf)
    x = x.reshape(N, Hp // 2, 2, Wp // 2, 2, C)
    return x.max(axis=(2, 4))


# ---------------------------------------------------------------------------
# Parameters (deterministic synthetic init — the PyTorch __init__ zeroes all
# conv weights; here we use scaled random values from PRNGKey(0) instead).
# ---------------------------------------------------------------------------
_CFG = [
    ('conv1_1', 3, 64, 3, True), ('conv1_2', 64, 64, 3, True),
    ('conv2_1', 64, 128, 3, True), ('conv2_2', 128, 128, 3, True),
    ('conv3_1', 128, 256, 3, True), ('conv3_2', 256, 256, 3, True),
    ('conv3_3', 256, 256, 3, True),
    ('conv4_1', 256, 512, 3, True), ('conv4_2', 512, 512, 3, True),
    ('conv4_3', 512, 512, 3, True),
    ('conv5_1', 512, 512, 3, True), ('conv5_2', 512, 512, 3, True),
    ('conv5_3', 512, 512, 3, True),
    ('fc6', 512, 4096, 7, False), ('fc7', 4096, 4096, 1, False),
    ('score', 4096, NUM_CLASSES, 1, False),
    ('score_pool4', 512, NUM_CLASSES, 1, False),
    ('score_pool3', 256, NUM_CLASSES, 1, False),
]


def init_params(key):
    params = {}
    for name, cin, cout, k, has_bn in _CFG:
        key, kw_, kb, kg, kbt, km, kv = jax.random.split(key, 7)
        fan_in = cin * k * k
        d = {
            'w': jax.random.normal(kw_, (k, k, cin, cout), jnp.float32)
                 / np.sqrt(fan_in),
            'b': 0.01 * jax.random.normal(kb, (cout,), jnp.float32),
        }
        if has_bn:
            d['gamma'] = jax.random.uniform(kg, (cout,), jnp.float32, 0.8, 1.2)
            d['beta'] = 0.05 * jax.random.normal(kbt, (cout,), jnp.float32)
            d['mean'] = 0.05 * jax.random.normal(km, (cout,), jnp.float32)
            d['var'] = jax.random.uniform(kv, (cout,), jnp.float32, 0.8, 1.2)
        params[name] = d
    return params


# ---------------------------------------------------------------------------
# Forward pass (mirrors FCN8s.forward with parameters=None).
# ---------------------------------------------------------------------------
def fcn8s_forward(x_nchw, params):
    N, _, H, W = x_nchw.shape
    x = jnp.transpose(x_nchw, (0, 2, 3, 1)).astype(jnp.bfloat16)  # -> NHWC

    h = conv_layer(x, params['conv1_1'], relu=True, pad=1)
    h = conv_layer(h, params['conv1_2'], relu=True, pad=1)
    conv1 = maxpool2x2_ceil(h)

    h = conv_layer(conv1, params['conv2_1'], relu=True, pad=1)
    h = conv_layer(h, params['conv2_2'], relu=True, pad=1)
    conv2 = maxpool2x2_ceil(h)

    h = conv_layer(conv2, params['conv3_1'], relu=True, pad=1)
    h = conv_layer(h, params['conv3_2'], relu=True, pad=1)
    h = conv_layer(h, params['conv3_3'], relu=True, pad=1)
    conv3 = maxpool2x2_ceil(h)

    h = conv_layer(conv3, params['conv4_1'], relu=True, pad=1)
    h = conv_layer(h, params['conv4_2'], relu=True, pad=1)
    h = conv_layer(h, params['conv4_3'], relu=True, pad=1)
    conv4 = maxpool2x2_ceil(h)

    h = conv_layer(conv4, params['conv5_1'], relu=True, pad=1)
    h = conv_layer(h, params['conv5_2'], relu=True, pad=1)
    h = conv_layer(h, params['conv5_3'], relu=True, pad=1)
    conv5 = maxpool2x2_ceil(h)

    h = conv_layer(conv5, params['fc6'], relu=True, pad=0)     # 7x7 VALID conv
    # TODO(synk): Dropout2d (drop6/drop7) treated as identity (eval mode).
    h = conv_layer(h, params['fc7'], relu=True, pad=0)         # 1x1 conv
    score = conv_layer(h, params['score'], relu=False, pad=0,
                       out_dtype=jnp.float32)
    score_pool4 = conv_layer(conv4, params['score_pool4'], relu=False, pad=0,
                             out_dtype=jnp.float32)
    score_pool3 = conv_layer(conv3, params['score_pool3'], relu=False, pad=0,
                             out_dtype=jnp.float32)

    to_nchw = lambda a: jnp.transpose(a, (0, 3, 1, 2))
    score1 = bilinear_upsample_add(to_nchw(score),
                                   score_pool4.shape[1:3], to_nchw(score_pool4))
    score2 = bilinear_upsample_add(score1,
                                   score_pool3.shape[1:3], to_nchw(score_pool3))
    out = bilinear_upsample_add(score2, (H, W), None)   # no-skip variant
    return to_nchw(conv5).astype(jnp.float32), out


if __name__ == "__main__":
    key = jax.random.PRNGKey(0)
    kp, kx = jax.random.split(key)
    params = init_params(kp)
    # fc6 is a 7x7 VALID conv on the /32 feature map, so the smallest legal
    # input spatial size is 193; 224 is the smallest size that divides cleanly
    # through all five ceil-mode /2 pools (224 -> 7).
    x = jax.random.normal(kx, (1, 3, 224, 224), jnp.float32)
    conv5, out = fcn8s_forward(x, params)
    jax.block_until_ready((conv5, out))
    assert conv5.shape == (1, 512, 7, 7), conv5.shape
    assert out.shape == (1, NUM_CLASSES, 224, 224), out.shape
    print("KERNEL_OK")
</pallas_src>

<mosaic_0001>
module attributes {stable_mosaic.version = 11 : i64} {
  func.func @_mm_scale_shift_kernel(%arg0: i32, %arg1: i32, %arg2: i32, %arg3: memref<2048x128xbf16, #tpu.memory_space<vmem>>, %arg4: memref<128x128xbf16, #tpu.memory_space<vmem>>, %arg5: memref<1x128xf32, #tpu.memory_space<vmem>>, %arg6: memref<1x128xf32, #tpu.memory_space<vmem>>, %arg7: memref<2048x128xbf16, #tpu.memory_space<vmem>>, %arg8: memref<2048x128xf32, #tpu.memory_space<vmem>>) attributes {dimension_semantics = [#tpu.dimension_semantics<parallel>, #tpu.dimension_semantics<parallel>, #tpu.dimension_semantics<arbitrary>], iteration_bounds = array<i64: 25, 1, 1>, scalar_prefetch = 0 : i64, scratch_operands = 1 : i64, tpu.core_type = #tpu.core_type<tc>, window_params = [{transform_indices = @transform_0, window_bounds = array<i64: 2048, 128>}, {transform_indices = @transform_1, window_bounds = array<i64: 128, 128>}, {transform_indices = @transform_2, window_bounds = array<i64: 1, 128>}, {transform_indices = @transform_3, window_bounds = array<i64: 1, 128>}, {transform_indices = @transform_4, window_bounds = array<i64: 2048, 128>}]} {
    %c0_i32 = arith.constant 0 : i32
    %0 = arith.cmpi eq, %arg2, %c0_i32 : i32
    %1 = arith.extui %0 : i1 to i32
    %c0_i32_0 = arith.constant 0 : i32
    %2 = arith.cmpi ne, %1, %c0_i32_0 : i32
    scf.if %2 {
      %cst_10 = arith.constant 0.000000e+00 : f32
      %12 = vector.broadcast %cst_10 : f32 to vector<2048x128xf32>
      %c0_11 = arith.constant 0 : index
      %c0_12 = arith.constant 0 : index
      %13 = vector.load %arg8[%c0_11, %c0_12] : memref<2048x128xf32, #tpu.memory_space<vmem>>, vector<2048x128xf32>
      tpu.vector_store %arg8[%c0_11, %c0_12], %12 {strides = array<i32>} : memref<2048x128xf32, #tpu.memory_space<vmem>>, vector<2048x128xf32>,
    } else {
    }
    %c0 = arith.constant 0 : index
    %c0_1 = arith.constant 0 : index
    %3 = vector.load %arg8[%c0, %c0_1] : memref<2048x128xf32, #tpu.memory_space<vmem>>, vector<2048x128xf32>
    %c0_2 = arith.constant 0 : index
    %c0_3 = arith.constant 0 : index
    %4 = vector.load %arg3[%c0_2, %c0_3] : memref<2048x128xbf16, #tpu.memory_space<vmem>>, vector<2048x128xbf16>
    %c0_4 = arith.constant 0 : index
    %c0_5 = arith.constant 0 : index
    %5 = vector.load %arg4[%c0_4, %c0_5] : memref<128x128xbf16, #tpu.memory_space<vmem>>, vector<128x128xbf16>
    %cst = arith.constant dense<0.000000e+00> : vector<2048x128xf32>
    %6 = tpu.matmul %4, %5, %cst {dimension_numbers = #tpu.dot_dimension_numbers<[1], [0], [0], [1], [0, 0, 1, 1], [], []>} : vector<2048x128xbf16>, vector<128x128xbf16>, vector<2048x128xf32> -> vector<2048x128xf32>
    %7 = arith.addf %3, %6 : vector<2048x128xf32>
    %c0_6 = arith.constant 0 : index
    %c0_7 = arith.constant 0 : index
    %8 = vector.load %arg8[%c0_6, %c0_7] : memref<2048x128xf32, #tpu.memory_space<vmem>>, vector<2048x128xf32>
    tpu.vector_store %arg8[%c0_6, %c0_7], %7 {strides = array<i32>} : memref<2048x128xf32, #tpu.memory_space<vmem>>, vector<2048x128xf32>,
    %c0_i32_8 = arith.constant 0 : i32
    %9 = arith.cmpi eq, %arg2, %c0_i32_8 : i32
    %10 = arith.extui %9 : i1 to i32
    %c0_i32_9 = arith.constant 0 : i32
    %11 = arith.cmpi ne, %10, %c0_i32_9 : i32
    scf.if %11 {
      %c0_10 = arith.constant 0 : index
      %c0_11 = arith.constant 0 : index
      %12 = vector.load %arg8[%c0_10, %c0_11] : memref<2048x128xf32, #tpu.memory_space<vmem>>, vector<2048x128xf32>
      %c0_12 = arith.constant 0 : index
      %c0_13 = arith.constant 0 : index
      %13 = vector.load %arg5[%c0_12, %c0_13] : memref<1x128xf32, #tpu.memory_space<vmem>>, vector<1x128xf32>
      %14 = vector.broadcast %13 : vector<1x128xf32> to vector<2048x128xf32>
      %15 = arith.mulf %12, %14 : vector<2048x128xf32>
      %c0_14 = arith.constant 0 : index
      %c0_15 = arith.constant 0 : index
      %16 = vector.load %arg6[%c0_14, %c0_15] : memref<1x128xf32, #tpu.memory_space<vmem>>, vector<1x128xf32>
      %17 = vector.broadcast %16 : vector<1x128xf32> to vector<2048x128xf32>
      %18 = arith.addf %15, %17 : vector<2048x128xf32>
      %cst_16 = arith.constant 0.000000e+00 : f32
      %19 = vector.broadcast %cst_16 : f32 to vector<2048x128xf32>
      %20 = arith.maximumf %18, %19 : vector<2048x128xf32>
      %21 = arith.truncf %20 : vector<2048x128xf32> to vector<2048x128xbf16>
      %c0_17 = arith.constant 0 : index
      %c0_18 = arith.constant 0 : index
      %22 = vector.load %arg7[%c0_17, %c0_18] : memref<2048x128xbf16, #tpu.memory_space<vmem>>, vector<2048x128xbf16>
      tpu.vector_store %arg7[%c0_17, %c0_18], %21 {strides = array<i32>} : memref<2048x128xbf16, #tpu.memory_space<vmem>>, vector<2048x128xbf16>,
    } else {
    }
    return
  }
  func.func @transform_0(%arg0: i32, %arg1: i32, %arg2: i32) -> (i32, i32) {
    %c0_i32 = arith.constant 0 : i32
    return %arg0, %arg2 : i32, i32
  }
  func.func @transform_1(%arg0: i32, %arg1: i32, %arg2: i32) -> (i32, i32) {
    %c0_i32 = arith.constant 0 : i32
    return %arg2, %arg1 : i32, i32
  }
  func.func @transform_2(%arg0: i32, %arg1: i32, %arg2: i32) -> (i32, i32) {
    %c0_i32 = arith.constant 0 : i32
    %c0_i32_0 = arith.constant 0 : i32
    return %c0_i32, %arg1 : i32, i32
  }
  func.func @transform_3(%arg0: i32, %arg1: i32, %arg2: i32) -> (i32, i32) {
    %c0_i32 = arith.constant 0 : i32
    %c0_i32_0 = arith.constant 0 : i32
    return %c0_i32, %arg1 : i32, i32
  }
  func.func @transform_4(%arg0: i32, %arg1: i32, %arg2: i32) -> (i32, i32) {
    %c0_i32 = arith.constant 0 : i32
    return %arg0, %arg1 : i32, i32
  }
}

</mosaic_0001>

<llo_original>
// kernel: tpu_custom_call.1
$region0: #{tpu_custom_call.1}
  #allocation0 [shape = 'u32[]', space=smem, size = 0x4, offset = 0x4, fixed_abs, tag = 'smem constant byte address 0x4 - core index']
  #allocation1 [shape = 'u32[144,128]{1,0:T(1,128)}', space=vmem, size = 0x12000, scoped, tag = 'internal scratch']
  #allocation2 [shape = 'f32[2048,128]{1,0:T(8,128)}', space=vmem, size = 0x100000, scoped, tag = 'scratch operand']
  %s0 = inlined_call_operand.hbm [shape: bf16[51200,128], index: 0, kind: input, shape index: {}]
  %s1 = inlined_call_operand.hbm [shape: bf16[128,128], index: 1, kind: input, shape index: {}]
  %s2 = inlined_call_operand.hbm [shape: f32[1,128], index: 2, kind: input, shape index: {}]
  %s3 = inlined_call_operand.hbm [shape: f32[1,128], index: 3, kind: input, shape index: {}]
  %s4 = inlined_call_operand.hbm [shape: bf16[51200,128], index: 4, kind: output, shape index: {}]
  %s5 = sld [smem:[#allocation0]]
  $region73: #{tpu_custom_call.1} parent=0
    _
  %s7 = ssub.s32 1, %s5
  %s8 = scalar_select 0, %s7, %s5
  $region1: #{tpu_custom_call.1} parent=0
    #allocation3 [shape = 'u8[1048576]{0}', space=vmem, size = 0x100000, scoped, tag = 'input window, operand 0']
    #allocation4 [shape = 's32[2]{0}', space=sflag, size = 0x8, scoped, tag = 'scoped memory for tpu_custom_call.1']
    #allocation5 [shape = 's32[2]{0}', space=sflag, size = 0x8, scoped, tag = 'scoped memory for tpu_custom_call.1']
    #allocation6 [shape = 'u8[32768]{0}', space=vmem, size = 0x8000, scoped, tag = 'input window, operand 1, single buffered']
    #allocation7 [shape = 's32[1]{0}', space=sflag, size = 0x4, scoped, tag = 'scoped memory for tpu_custom_call.1']
    #allocation8 [shape = 'u8[512]{0}', space=vmem, size = 0x400, scoped, tag = 'input window, operand 2, single buffered']
    #allocation9 [shape = 'u8[512]{0}', space=vmem, size = 0x400, scoped, tag = 'input window, operand 3, single buffered']
    #allocation10 [shape = 's32[1]{0}', space=sflag, size = 0x4, scoped, tag = 'scoped memory for tpu_custom_call.1']
    #allocation11 [shape = 'u8[1048576]{0}', space=vmem, size = 0x100000, scoped, tag = 'output window, operand 0']
    %9 = vsyncpa [#allocation4], 0
    %s10 = scalar_lea.sflag [#allocation4], 1
    %11 = vsyncpa %s10, 0
    %12 = vsyncpa [#allocation7], 0
    %13 = vsyncpa [#allocation10], 0
    %14 = vsyncpa [#allocation5], 0
    %s15 = scalar_lea.sflag [#allocation5], 1
    %16 = vsyncpa %s15, 0
    loop: start=0, step=1, limit=27
    $region2: #{tpu_custom_call.1} parent=1 // loop_pre_header
      _
    $region3: #{tpu_custom_call.1} parent=1 // loop_header
      %s18 = sphi 0, %s22
      %p19 = scmp.ge.s32.totalorder %s18, 27
      %s25 = sphi 0, %s44
      %s26 = sphi 0, %s40
      %s27 = sphi 0, %s36
      %s28 = sphi 0, %s25
      %s29 = sphi 0, %s26
      %s30 = sphi 0, %s27
      %s31 = sphi 0, %s28
      %s32 = sphi 0, %s29
      %s33 = sphi 0, %s30
      %s49 = sphi 0, %s51
      %s52 = sphi 0, %s49
      %s53 = sphi 0, %s52
      %s69 = sphi 0, %s53
      %s77 = sphi 0, %s79
      %s80 = sphi 0, %s77
      %s81 = sphi 0, %s80
      %s97 = sphi 0, %s81
      %s103 = sphi 0, %s105
      %s106 = sphi 0, %s103
      %s107 = sphi 0, %s106
      %s123 = sphi 0, %s107
      %s129 = sphi 0, %s131
      %s132 = sphi 0, %s129
      %s133 = sphi 0, %s132
      %s149 = sphi 0, %s133
      %s157 = sphi 0, %s159
      %s160 = sphi 0, %s157
      %s161 = sphi 0, %s160
      %s177 = sphi 0, %s161
    $region4: #{tpu_custom_call.1} parent=1 // loop_header_branch
      %21 = sbr.rel (%p19) target = $region8
    $region5: #{tpu_custom_call.1} parent=1 // loop_body
      %s23 = ssub.s32 %s18, 1
      %s24 = ssub.s32 %s18, 2
      %s34 = sadd.s32 1, %s27
      %p35 = scmp.ge.s32.totalorder %s34, 1
      %s36 = scalar_select %p35, 0, %s34
      %s37 = sadd.s32 1, %s26
      %s38 = scalar_select %p35, %s37, %s26
      %p39 = scmp.ge.s32.totalorder %s38, 1
      %s40 = scalar_select %p39, 0, %s38
      %s41 = sadd.s32 1, %s25
      %s42 = scalar_select %p39, %s41, %s25
      %p43 = scmp.ge.s32.totalorder %s42, 25
      %s44 = scalar_select %p43, 0, %s42
      %s45 = ssub.s32 %s25, %s44
      %s46 = ssub.s32 %s27, %s36
      %s47 = sor.u32 %s45, %s46
      %p48 = scmp.eq.s32.totalorder %s47, 0
      %s50 = sadd.s32 %s49, 1
      %s51 = scalar_select %p48, %s49, %s50
      %p54 = pneg %p48
      %p55 = scmp.eq.s32.totalorder %s18, 24
      %p56 = por %p54, %p55
      %p57 = scmp.ne.s32.totalorder %s49, %s52
      %p58 = scmp.eq.s32.totalorder %s18, 0
      %p59 = por %p57, %p58
      %p60 = scmp.ne.s32.totalorder %s49, %s52
      %p61 = scmp.eq.s32.totalorder %s23, 24
      %p62 = por %p60, %p61
      %p63 = scmp.ne.s32.totalorder %s52, %s53
      %p64 = scmp.eq.s32.totalorder %s23, 0
      %p65 = por %p63, %p64
      %p66 = scmp.ne.s32.totalorder %s52, %s53
      %p67 = scmp.eq.s32.totalorder %s24, 24
      %p68 = por %p66, %p67
      %p70 = scmp.ne.s32.totalorder %s53, %s69
      %p71 = scmp.eq.s32.totalorder %s24, 0
      %p72 = por %p70, %p71
      %s73 = ssub.s32 %s27, %s36
      %s74 = ssub.s32 %s26, %s40
      %s75 = sor.u32 %s73, %s74
      %p76 = scmp.eq.s32.totalorder %s75, 0
      %s78 = sadd.s32 %s77, 1
      %s79 = scalar_select %p76, %s77, %s78
      %p82 = pneg %p76
      %p83 = scmp.eq.s32.totalorder %s18, 24
      %p84 = por %p82, %p83
      %p85 = scmp.ne.s32.totalorder %s77, %s80
      %p86 = scmp.eq.s32.totalorder %s18, 0
      %p87 = por %p85, %p86
      %p88 = scmp.ne.s32.totalorder %s77, %s80
      %p89 = scmp.eq.s32.totalorder %s23, 24
      %p90 = por %p88, %p89
      %p91 = scmp.ne.s32.totalorder %s80, %s81
      %p92 = scmp.eq.s32.totalorder %s23, 0
      %p93 = por %p91, %p92
      %p94 = scmp.ne.s32.totalorder %s80, %s81
      %p95 = scmp.eq.s32.totalorder %s24, 24
      %p96 = por %p94, %p95
      %p98 = scmp.ne.s32.totalorder %s81, %s97
      %p99 = scmp.eq.s32.totalorder %s24, 0
      %p100 = por %p98, %p99
      %s101 = ssub.s32 %s26, %s40
      %p102 = scmp.eq.s32.totalorder %s101, 0
      %s104 = sadd.s32 %s103, 1
      %s105 = scalar_select %p102, %s103, %s104
      %p108 = pneg %p102
      %p109 = scmp.eq.s32.totalorder %s18, 24
      %p110 = por %p108, %p109
      %p111 = scmp.ne.s32.totalorder %s103, %s106
      %p112 = scmp.eq.s32.totalorder %s18, 0
      %p113 = por %p111, %p112
      %p114 = scmp.ne.s32.totalorder %s103, %s106
      %p115 = scmp.eq.s32.totalorder %s23, 24
      %p116 = por %p114, %p115
      %p117 = scmp.ne.s32.totalorder %s106, %s107
      %p118 = scmp.eq.s32.totalorder %s23, 0
      %p119 = por %p117, %p118
      %p120 = scmp.ne.s32.totalorder %s106, %s107
      %p121 = scmp.eq.s32.totalorder %s24, 24
      %p122 = por %p120, %p121
      %p124 = scmp.ne.s32.totalorder %s107, %s123
      %p125 = scmp.eq.s32.totalorder %s24, 0
      %p126 = por %p124, %p125
      %s127 = ssub.s32 %s26, %s40
      %p128 = scmp.eq.s32.totalorder %s127, 0
      %s130 = sadd.s32 %s129, 1
      %s131 = scalar_select %p128, %s129, %s130
      %p134 = pneg %p128
      %p135 = scmp.eq.s32.totalorder %s18, 24
      %p136 = por %p134, %p135
      %p137 = scmp.ne.s32.totalorder %s129, %s132
      %p138 = scmp.eq.s32.totalorder %s18, 0
      %p139 = por %p137, %p138
      %p140 = scmp.ne.s32.totalorder %s129, %s132
      %p141 = scmp.eq.s32.totalorder %s23, 24
      %p142 = por %p140, %p141
      %p143 = scmp.ne.s32.totalorder %s132, %s133
      %p144 = scmp.eq.s32.totalorder %s23, 0
      %p145 = por %p143, %p144
      %p146 = scmp.ne.s32.totalorder %s132, %s133
      %p147 = scmp.eq.s32.totalorder %s24, 24
      %p148 = por %p146, %p147
      %p150 = scmp.ne.s32.totalorder %s133, %s149
      %p151 = scmp.eq.s32.totalorder %s24, 0
      %p152 = por %p150, %p151
      %s153 = ssub.s32 %s25, %s44
      %s154 = ssub.s32 %s26, %s40
      %s155 = sor.u32 %s153, %s154
      %p156 = scmp.eq.s32.totalorder %s155, 0
      %s158 = sadd.s32 %s157, 1
      %s159 = scalar_select %p156, %s157, %s158
      %p162 = pneg %p156
      %p163 = scmp.eq.s32.totalorder %s18, 24
      %p164 = por %p162, %p163
      %p165 = scmp.ne.s32.totalorder %s157, %s160
      %p166 = scmp.eq.s32.totalorder %s18, 0
      %p167 = por %p165, %p166
      %p168 = scmp.ne.s32.totalorder %s157, %s160
      %p169 = scmp.eq.s32.totalorder %s23, 24
      %p170 = por %p168, %p169
      %p171 = scmp.ne.s32.totalorder %s160, %s161
      %p172 = scmp.eq.s32.totalorder %s23, 0
      %p173 = por %p171, %p172
      %p174 = scmp.ne.s32.totalorder %s160, %s161
      %p175 = scmp.eq.s32.totalorder %s24, 24
      %p176 = por %p174, %p175
      %p178 = scmp.ne.s32.totalorder %s161, %s177
      %p179 = scmp.eq.s32.totalorder %s24, 0
      %p180 = por %p178, %p179
      %p181 = scmp.le.s32.totalorder 1, %s18
      %p182 = scmp.lt.s32.totalorder %s18, 26
      %p183 = pnand %p181, %p182
      %p184 = pneg %p183
      // Predicated region
      $region9: #{tpu_custom_call.1} parent=5 // pred_check
        _
      $region10: #{tpu_custom_call.1} parent=5 // pred_check_branch
        %186 = sbr.rel (%p183) target = $region12
      $region11: #{tpu_custom_call.1} parent=5 // pred_region
        %s187 = ssub.s32 %s18, 1
        // Predicated region
        $region13: #{tpu_custom_call.1} parent=11 // pred_check
          %p188 = pneg %p93
        $region14: #{tpu_custom_call.1} parent=11 // pred_check_branch
          %190 = sbr.rel (%p188) target = $region16
        $region15: #{tpu_custom_call.1} parent=11 // pred_region
          %s191 = smul.u32 16, %s30
          %s193 = ssub.s32 1024, 1024
          %194 = vsyncadd [#allocation7], %s193
          %s195 = sadd.s32 %s29, %s191
          %s196 = smul.addr %s195, 64
          %s197 = scalar_lea.hbm %s1, %s196
          %s198 = sshll.u32 [#allocation6], 4
          %s199 = int_to_ptr.vmem [resolvable:$true] %s198
          %204 = dma.hbm_to_vmem [thread:$0]  %s197, 1024, %s199, [#allocation7], 64, 64, 4
        $region16: #{tpu_custom_call.1} parent=11 // pred_fallthru
          _
        // Predicated region
        $region17: #{tpu_custom_call.1} parent=11 // pred_check
          %p205 = pneg %p119
        $region18: #{tpu_custom_call.1} parent=11 // pred_check_branch
          %207 = sbr.rel (%p205) target = $region20
        $region19: #{tpu_custom_call.1} parent=11 // pred_region
          %s209 = ssub.s32 16, 16
          %210 = vsyncadd [#allocation7], %s209
          %s211 = smul.addr %s29, 16
          %s212 = scalar_lea.hbm %s2, %s211
          %s214 = sshll.u32 [#allocation8], 4
          %s215 = int_to_ptr.vmem [resolvable:$true] %s214
          %217 = dma.hbm_to_vmem [thread:$0]  %s212, 16, %s215, [#allocation7]
        $region20: #{tpu_custom_call.1} parent=11 // pred_fallthru
          _
        // Predicated region
        $region21: #{tpu_custom_call.1} parent=11 // pred_check
          %p218 = pneg %p145
        $region22: #{tpu_custom_call.1} parent=11 // pred_check_branch
          %220 = sbr.rel (%p218) target = $region24
        $region23: #{tpu_custom_call.1} parent=11 // pred_region
          %s222 = ssub.s32 16, 16
          %223 = vsyncadd [#allocation10], %s222
          %s224 = smul.addr %s29, 16
          %s225 = scalar_lea.hbm %s3, %s224
          %s227 = sshll.u32 [#allocation9], 4
          %s228 = int_to_ptr.vmem [resolvable:$true] %s227
          %230 = dma.hbm_to_vmem [thread:$0]  %s225, 16, %s228, [#allocation10]
        $region24: #{tpu_custom_call.1} parent=11 // pred_fallthru
          _
      $region12: #{tpu_custom_call.1} parent=5 // pred_fallthru
        _
      %p231 = scmp.lt.s32.totalorder %s18, 25
      // Predicated region
      $region25: #{tpu_custom_call.1} parent=5 // pred_check
        %p232 = pneg %p231
      $region26: #{tpu_custom_call.1} parent=5 // pred_check_branch
        %234 = sbr.rel (%p232) target = $region28
      $region27: #{tpu_custom_call.1} parent=5 // pred_region
        // Predicated region
        $region29: #{tpu_custom_call.1} parent=27 // pred_check
          %p235 = pneg %p59
        $region30: #{tpu_custom_call.1} parent=27 // pred_check_branch
          %237 = sbr.rel (%p235) target = $region32
        $region31: #{tpu_custom_call.1} parent=27 // pred_region
          %s238 = sand.u32 %s49, 1
          %s239 = scalar_lea.sflag [#allocation4], %s238
          %s240 = sand.u32 %s49, 1
          %s241 = smul.addr %s240, 1024
          %s242 = scalar_lea.vmem [#allocation3], %s241
          %s243 = smul.u32 256, %s25
          %s245 = ssub.s32 16384, 16384
          %246 = vsyncadd %s239, %s245
          %s247 = sadd.s32 %s27, %s243
          %s248 = smul.addr %s247, 64
          %s249 = scalar_lea.hbm %s0, %s248
          %s250 = sshll.u32 %s242, 4
          %s251 = int_to_ptr.vmem [resolvable:$true] %s250
          %256 = dma.hbm_to_vmem [thread:$0]  %s249, 16384, %s251, %s239, 64, 64, 4
        $region32: #{tpu_custom_call.1} parent=27 // pred_fallthru
          _
      $region28: #{tpu_custom_call.1} parent=5 // pred_fallthru
        _
      %p257 = scmp.le.s32.totalorder 1, %s18
      %p258 = scmp.lt.s32.totalorder %s18, 26
      %p259 = pnand %p257, %p258
      %p260 = pneg %p259
      // Predicated region
      $region33: #{tpu_custom_call.1} parent=5 // pred_check
        _
      $region34: #{tpu_custom_call.1} parent=5 // pred_check_branch
        %262 = sbr.rel (%p259) target = $region36
      $region35: #{tpu_custom_call.1} parent=5 // pred_region
        %s263 = ssub.s32 %s18, 1
        %s264 = sand.u32 %s52, 1
        %s265 = scalar_lea.sflag [#allocation4], %s264
        %s266 = sand.u32 %s52, 1
        %s267 = smul.addr %s266, 1024
        %s268 = scalar_lea.vmem [#allocation3], %s267
        // Predicated region
        $region37: #{tpu_custom_call.1} parent=35 // pred_check
          %p269 = pneg %p65
        $region38: #{tpu_custom_call.1} parent=35 // pred_check_branch
          %271 = sbr.rel (%p269) target = $region40
        $region39: #{tpu_custom_call.1} parent=35 // pred_region
          %272 = dma.done %s265, 16384
        $region40: #{tpu_custom_call.1} parent=35 // pred_fallthru
          _
        // Predicated region
        $region41: #{tpu_custom_call.1} parent=35 // pred_check
          %p273 = pneg %p93
        $region42: #{tpu_custom_call.1} parent=35 // pred_check_branch
          %275 = sbr.rel (%p273) target = $region44
        $region43: #{tpu_custom_call.1} parent=35 // pred_region
          %276 = dma.done [#allocation7], 1024
        $region44: #{tpu_custom_call.1} parent=35 // pred_fallthru
          _
        // Predicated region
        $region45: #{tpu_custom_call.1} parent=35 // pred_check
          %p277 = pneg %p119
        $region46: #{tpu_custom_call.1} parent=35 // pred_check_branch
          %279 = sbr.rel (%p277) target = $region48
        $region47: #{tpu_custom_call.1} parent=35 // pred_region
          %280 = dma.done [#allocation7], 16
        $region48: #{tpu_custom_call.1} parent=35 // pred_fallthru
          _
        // Predicated region
        $region49: #{tpu_custom_call.1} parent=35 // pred_check
          %p281 = pneg %p145
        $region50: #{tpu_custom_call.1} parent=35 // pred_check_branch
          %283 = sbr.rel (%p281) target = $region52
        $region51: #{tpu_custom_call.1} parent=35 // pred_region
          %284 = dma.done [#allocation10], 16
        $region52: #{tpu_custom_call.1} parent=35 // pred_fallthru
          _
        %s285 = sand.u32 %s52, 1
        %s286 = scalar_lea.sflag [#allocation4], %s285
        %s287 = sand.u32 %s52, 1
        %s288 = smul.addr %s287, 1024
        %s289 = scalar_lea.vmem [#allocation3], %s288
        %p290 = pneg %p65
        %p291 = pneg %p62
        %p292 = pneg %p93
        %p293 = pneg %p90
        %p294 = pneg %p119
        %p295 = pneg %p116
        %p296 = pneg %p145
        %p297 = pneg %p142
        %p298 = pneg %p173
        %p299 = pneg %p170
        %s300 = sand.u32 %s160, 1
        %s301 = scalar_lea.sflag [#allocation5], %s300
        %s302 = sand.u32 %s160, 1
        %s303 = smul.addr %s302, 1024
        %s304 = scalar_lea.vmem [#allocation11], %s303
        %s305 = smul.u32 256, %s28
        %s306 = smul.u32 16, %s30
        %s307 = smul.u32 256, %s28
        %p309 = scmp.eq.s32.totalorder %s30, 0
        // Predicated region
        $region53: #{tpu_custom_call.1} parent=35 // pred_check
          %p310 = pneg %p309
        $region54: #{tpu_custom_call.1} parent=35 // pred_check_branch
          %312 = sbr.rel (%p310) target = $region56
        $region55: #{tpu_custom_call.1} parent=35 // pred_region
          %313 = vst [vmem:[#allocation2] sm:$0xff] 0.0
          %314 = vst [vmem:[#allocation2 + $0x8] sm:$0xff] 0.0
          %315 = vst [vmem:[#allocation2 + $0x10] sm:$0xff] 0.0
          %316 = vst [vmem:[#allocation2 + $0x18] sm:$0xff] 0.0
          %317 = vst [vmem:[#allocation2 + $0x20] sm:$0xff] 0.0
          %318 = vst [vmem:[#allocation2 + $0x28] sm:$0xff] 0.0
          %319 = vst [vmem:[#allocation2 + $0x30] sm:$0xff] 0.0
          %320 = vst [vmem:[#allocation2 + $0x38] sm:$0xff] 0.0
          %321 = vst [vmem:[#allocation2 + $0x40] sm:$0xff] 0.0
          %322 = vst [vmem:[#allocation2 + $0x48] sm:$0xff] 0.0
          %323 = vst [vmem:[#allocation2 + $0x50] sm:$0xff] 0.0
          %324 = vst [vmem:[#allocation2 + $0x58] sm:$0xff] 0.0
          %325 = vst [vmem:[#allocation2 + $0x60] sm:$0xff] 0.0
          %326 = vst [vmem:[#allocation2 + $0x68] sm:$0xff] 0.0
          %327 = vst [vmem:[#allocation2 + $0x70] sm:$0xff] 0.0
          %328 = vst [vmem:[#allocation2 + $0x78] sm:$0xff] 0.0
          %329 = vst [vmem:[#allocation2 + $0x80] sm:$0xff] 0.0
          %330 = vst [vmem:[#allocation2 + $0x88] sm:$0xff] 0.0
          %331 = vst [vmem:[#allocation2 + $0x90] sm:$0xff] 0.0
          %332 = vst [vmem:[#allocation2 + $0x98] sm:$0xff] 0.0
          %333 = vst [vmem:[#allocation2 + $0xa0] sm:$0xff] 0.0
          %334 = vst [vmem:[#allocation2 + $0xa8] sm:$0xff] 0.0
          %335 = vst [vmem:[#allocation2 + $0xb0] sm:$0xff] 0.0
          %336 = vst [vmem:[#allocation2 + $0xb8] sm:$0xff] 0.0
          %337 = vst [vmem:[#allocation2 + $0xc0] sm:$0xff] 0.0
          %338 = vst [vmem:[#allocation2 + $0xc8] sm:$0xff] 0.0
          %339 = vst [vmem:[#allocation2 + $0xd0] sm:$0xff] 0.0
          %340 = vst [vmem:[#allocation2 + $0xd8] sm:$0xff] 0.0
          %341 = vst [vmem:[#allocation2 + $0xe0] sm:$0xff] 0.0
          %342 = vst [vmem:[#allocation2 + $0xe8] sm:$0xff] 0.0
          %343 = vst [vmem:[#allocation2 + $0xf0] sm:$0xff] 0.0
          %344 = vst [vmem:[#allocation2 + $0xf8] sm:$0xff] 0.0
          %345 = vst [vmem:[#allocation2 + $0x100] sm:$0xff] 0.0
          %346 = vst [vmem:[#allocation2 + $0x108] sm:$0xff] 0.0
          %347 = vst [vmem:[#allocation2 + $0x110] sm:$0xff] 0.0
          %348 = vst [vmem:[#allocation2 + $0x118] sm:$0xff] 0.0
          %349 = vst [vmem:[#allocation2 + $0x120] sm:$0xff] 0.0
          %350 = vst [vmem:[#allocation2 + $0x128] sm:$0xff] 0.0
          %351 = vst [vmem:[#allocation2 + $0x130] sm:$0xff] 0.0
          %352 = vst [vmem:[#allocation2 + $0x138] sm:$0xff] 0.0
          %353 = vst [vmem:[#allocation2 + $0x140] sm:$0xff] 0.0
          %354 = vst [vmem:[#allocation2 + $0x148] sm:$0xff] 0.0
          %355 = vst [vmem:[#allocation2 + $0x150] sm:$0xff] 0.0
          %356 = vst [vmem:[#allocation2 + $0x158] sm:$0xff] 0.0
          %357 = vst [vmem:[#allocation2 + $0x160] sm:$0xff] 0.0
          %358 = vst [vmem:[#allocation2 + $0x168] sm:$0xff] 0.0
          %359 = vst [vmem:[#allocation2 + $0x170] sm:$0xff] 0.0
          %360 = vst [vmem:[#allocation2 + $0x178] sm:$0xff] 0.0
          %361 = vst [vmem:[#allocation2 + $0x180] sm:$0xff] 0.0
          %362 = vst [vmem:[#allocation2 + $0x188] sm:$0xff] 0.0
          %363 = vst [vmem:[#allocation2 + $0x190] sm:$0xff] 0.0
          %364 = vst [vmem:[#allocation2 + $0x198] sm:$0xff] 0.0
          %365 = vst [vmem:[#allocation2 + $0x1a0] sm:$0xff] 0.0
          %366 = vst [vmem:[#allocation2 + $0x1a8] sm:$0xff] 0.0
          %367 = vst [vmem:[#allocation2 + $0x1b0] sm:$0xff] 0.0
          %368 = vst [vmem:[#allocation2 + $0x1b8] sm:$0xff] 0.0
          %369 = vst [vmem:[#allocation2 + $0x1c0] sm:$0xff] 0.0
          %370 = vst [vmem:[#allocation2 + $0x1c8] sm:$0xff] 0.0
          %371 = vst [vmem:[#allocation2 + $0x1d0] sm:$0xff] 0.0
          %372 = vst [vmem:[#allocation2 + $0x1d8] sm:$0xff] 0.0
          %373 = vst [vmem:[#allocation2 + $0x1e0] sm:$0xff] 0.0
          %374 = vst [vmem:[#allocation2 + $0x1e8] sm:$0xff] 0.0
          %375 = vst [vmem:[#allocation2 + $0x1f0] sm:$0xff] 0.0
          %376 = vst [vmem:[#allocation2 + $0x1f8] sm:$0xff] 0.0
          %377 = vst [vmem:[#allocation2 + $0x200] sm:$0xff] 0.0
          %378 = vst [vmem:[#allocation2 + $0x208] sm:$0xff] 0.0
          %379 = vst [vmem:[#allocation2 + $0x210] sm:$0xff] 0.0
          %380 = vst [vmem:[#allocation2 + $0x218] sm:$0xff] 0.0
          %381 = vst [vmem:[#allocation2 + $0x220] sm:$0xff] 0.0
          %382 = vst [vmem:[#allocation2 + $0x228] sm:$0xff] 0.0
          %383 = vst [vmem:[#allocation2 + $0x230] sm:$0xff] 0.0
          %384 = vst [vmem:[#allocation2 + $0x238] sm:$0xff] 0.0
          %385 = vst [vmem:[#allocation2 + $0x240] sm:$0xff] 0.0
          %386 = vst [vmem:[#allocation2 + $0x248] sm:$0xff] 0.0
          %387 = vst [vmem:[#allocation2 + $0x250] sm:$0xff] 0.0
          %388 = vst [vmem:[#allocation2 + $0x258] sm:$0xff] 0.0
          %389 = vst [vmem:[#allocation2 + $0x260] sm:$0xff] 0.0
          %390 = vst [vmem:[#allocation2 + $0x268] sm:$0xff] 0.0
          %391 = vst [vmem:[#allocation2 + $0x270] sm:$0xff] 0.0
          %392 = vst [vmem:[#allocation2 + $0x278] sm:$0xff] 0.0
          %393 = vst [vmem:[#allocation2 + $0x280] sm:$0xff] 0.0
          %394 = vst [vmem:[#allocation2 + $0x288] sm:$0xff] 0.0
          %395 = vst [vmem:[#allocation2 + $0x290] sm:$0xff] 0.0
          %396 = vst [vmem:[#allocation2 + $0x298] sm:$0xff] 0.0
          %397 = vst [vmem:[#allocation2 + $0x2a0] sm:$0xff] 0.0
          %398 = vst [vmem:[#allocation2 + $0x2a8] sm:$0xff] 0.0
          %399 = vst [vmem:[#allocation2 + $0x2b0] sm:$0xff] 0.0
          %400 = vst [vmem:[#allocation2 + $0x2b8] sm:$0xff] 0.0
          %401 = vst [vmem:[#allocation2 + $0x2c0] sm:$0xff] 0.0
          %402 = vst [vmem:[#allocation2 + $0x2c8] sm:$0xff] 0.0
          %403 = vst [vmem:[#allocation2 + $0x2d0] sm:$0xff] 0.0
          %404 = vst [vmem:[#allocation2 + $0x2d8] sm:$0xff] 0.0
          %405 = vst [vmem:[#allocation2 + $0x2e0] sm:$0xff] 0.0
          %406 = vst [vmem:[#allocation2 + $0x2e8] sm:$0xff] 0.0
          %407 = vst [vmem:[#allocation2 + $0x2f0] sm:$0xff] 0.0
          %408 = vst [vmem:[#allocation2 + $0x2f8] sm:$0xff] 0.0
          %409 = vst [vmem:[#allocation2 + $0x300] sm:$0xff] 0.0
          %410 = vst [vmem:[#allocation2 + $0x308] sm:$0xff] 0.0
          %411 = vst [vmem:[#allocation2 + $0x310] sm:$0xff] 0.0
          %412 = vst [vmem:[#allocation2 + $0x318] sm:$0xff] 0.0
          %413 = vst [vmem:[#allocation2 + $0x320] sm:$0xff] 0.0
          %414 = vst [vmem:[#allocation2 + $0x328] sm:$0xff] 0.0
          %415 = vst [vmem:[#allocation2 + $0x330] sm:$0xff] 0.0
          %416 = vst [vmem:[#allocation2 + $0x338] sm:$0xff] 0.0
          %417 = vst [vmem:[#allocation2 + $0x340] sm:$0xff] 0.0
          %418 = vst [vmem:[#allocation2 + $0x348] sm:$0xff] 0.0
          %419 = vst [vmem:[#allocation2 + $0x350] sm:$0xff] 0.0
          %420 = vst [vmem:[#allocation2 + $0x358] sm:$0xff] 0.0
          %421 = vst [vmem:[#allocation2 + $0x360] sm:$0xff] 0.0
          %422 = vst [vmem:[#allocation2 + $0x368] sm:$0xff] 0.0
          %423 = vst [vmem:[#allocation2 + $0x370] sm:$0xff] 0.0
          %424 = vst [vmem:[#allocation2 + $0x378] sm:$0xff] 0.0
          %425 = vst [vmem:[#allocation2 + $0x380] sm:$0xff] 0.0
          %426 = vst [vmem:[#allocation2 + $0x388] sm:$0xff] 0.0
          %427 = vst [vmem:[#allocation2 + $0x390] sm:$0xff] 0.0
          %428 = vst [vmem:[#allocation2 + $0x398] sm:$0xff] 0.0
          %429 = vst [vmem:[#allocation2 + $0x3a0] sm:$0xff] 0.0
          %430 = vst [vmem:[#allocation2 + $0x3a8] sm:$0xff] 0.0
          %431 = vst [vmem:[#allocation2 + $0x3b0] sm:$0xff] 0.0
          %432 = vst [vmem:[#allocation2 + $0x3b8] sm:$0xff] 0.0
          %433 = vst [vmem:[#allocation2 + $0x3c0] sm:$0xff] 0.0
          %434 = vst [vmem:[#allocation2 + $0x3c8] sm:$0xff] 0.0
          %435 = vst [vmem:[#allocation2 + $0x3d0] sm:$0xff] 0.0
          %436 = vst [vmem:[#allocation2 + $0x3d8] sm:$0xff] 0.0
          %437 = vst [vmem:[#allocation2 + $0x3e0] sm:$0xff] 0.0
          %438 = vst [vmem:[#allocation2 + $0x3e8] sm:$0xff] 0.0
          %439 = vst [vmem:[#allocation2 + $0x3f0] sm:$0xff] 0.0
          %440 = vst [vmem:[#allocation2 + $0x3f8] sm:$0xff] 0.0
          %441 = vst [vmem:[#allocation2 + $0x400] sm:$0xff] 0.0
          %442 = vst [vmem:[#allocation2 + $0x408] sm:$0xff] 0.0
          %443 = vst [vmem:[#allocation2 + $0x410] sm:$0xff] 0.0
          %444 = vst [vmem:[#allocation2 + $0x418] sm:$0xff] 0.0
          %445 = vst [vmem:[#allocation2 + $0x420] sm:$0xff] 0.0
          %446 = vst [vmem:[#allocation2 + $0x428] sm:$0xff] 0.0
          %447 = vst [vmem:[#allocation2 + $0x430] sm:$0xff] 0.0
          %448 = vst [vmem:[#allocation2 + $0x438] sm:$0xff] 0.0
          %449 = vst [vmem:[#allocation2 + $0x440] sm:$0xff] 0.0
          %450 = vst [vmem:[#allocation2 + $0x448] sm:$0xff] 0.0
          %451 = vst [vmem:[#allocation2 + $0x450] sm:$0xff] 0.0
          %452 = vst [vmem:[#allocation2 + $0x458] sm:$0xff] 0.0
          %453 = vst [vmem:[#allocation2 + $0x460] sm:$0xff] 0.0
          %454 = vst [vmem:[#allocation2 + $0x468] sm:$0xff] 0.0
          %455 = vst [vmem:[#allocation2 + $0x470] sm:$0xff] 0.0
          %456 = vst [vmem:[#allocation2 + $0x478] sm:$0xff] 0.0
          %457 = vst [vmem:[#allocation2 + $0x480] sm:$0xff] 0.0
          %458 = vst [vmem:[#allocation2 + $0x488] sm:$0xff] 0.0
          %459 = vst [vmem:[#allocation2 + $0x490] sm:$0xff] 0.0
          %460 = vst [vmem:[#allocation2 + $0x498] sm:$0xff] 0.0
          %461 = vst [vmem:[#allocation2 + $0x4a0] sm:$0xff] 0.0
          %462 = vst [vmem:[#allocation2 + $0x4a8] sm:$0xff] 0.0
          %463 = vst [vmem:[#allocation2 + $0x4b0] sm:$0xff] 0.0
          %464 = vst [vmem:[#allocation2 + $0x4b8] sm:$0xff] 0.0
          %465 = vst [vmem:[#allocation2 + $0x4c0] sm:$0xff] 0.0
          %466 = vst [vmem:[#allocation2 + $0x4c8] sm:$0xff] 0.0
          %467 = vst [vmem:[#allocation2 + $0x4d0] sm:$0xff] 0.0
          %468 = vst [vmem:[#allocation2 + $0x4d8] sm:$0xff] 0.0
          %469 = vst [vmem:[#allocation2 + $0x4e0] sm:$0xff] 0.0
          %470 = vst [vmem:[#allocation2 + $0x4e8] sm:$0xff] 0.0
          %471 = vst [vmem:[#allocation2 + $0x4f0] sm:$0xff] 0.0
          %472 = vst [vmem:[#allocation2 + $0x4f8] sm:$0xff] 0.0
          %473 = vst [vmem:[#allocation2 + $0x500] sm:$0xff] 0.0
          %474 = vst [vmem:[#allocation2 + $0x508] sm:$0xff] 0.0
          %475 = vst [vmem:[#allocation2 + $0x510] sm:$0xff] 0.0
          %476 = vst [vmem:[#allocation2 + $0x518] sm:$0xff] 0.0
          %477 = vst [vmem:[#allocation2 + $0x520] sm:$0xff] 0.0
          %478 = vst [vmem:[#allocation2 + $0x528] sm:$0xff] 0.0
          %479 = vst [vmem:[#allocation2 + $0x530] sm:$0xff] 0.0
          %480 = vst [vmem:[#allocation2 + $0x538] sm:$0xff] 0.0
          %481 = vst [vmem:[#allocation2 + $0x540] sm:$0xff] 0.0
          %482 = vst [vmem:[#allocation2 + $0x548] sm:$0xff] 0.0
          %483 = vst [vmem:[#allocation2 + $0x550] sm:$0xff] 0.0
          %484 = vst [vmem:[#allocation2 + $0x558] sm:$0xff] 0.0
          %485 = vst [vmem:[#allocation2 + $0x560] sm:$0xff] 0.0
          %486 = vst [vmem:[#allocation2 + $0x568] sm:$0xff] 0.0
          %487 = vst [vmem:[#allocation2 + $0x570] sm:$0xff] 0.0
          %488 = vst [vmem:[#allocation2 + $0x578] sm:$0xff] 0.0
          %489 = vst [vmem:[#allocation2 + $0x580] sm:$0xff] 0.0
          %490 = vst [vmem:[#allocation2 + $0x588] sm:$0xff] 0.0
          %491 = vst [vmem:[#allocation2 + $0x590] sm:$0xff] 0.0
          %492 = vst [vmem:[#allocation2 + $0x598] sm:$0xff] 0.0
          %493 = vst [vmem:[#allocation2 + $0x5a0] sm:$0xff] 0.0
          %494 = vst [vmem:[#allocation2 + $0x5a8] sm:$0xff] 0.0
          %495 = vst [vmem:[#allocation2 + $0x5b0] sm:$0xff] 0.0
          %496 = vst [vmem:[#allocation2 + $0x5b8] sm:$0xff] 0.0
          %497 = vst [vmem:[#allocation2 + $0x5c0] sm:$0xff] 0.0
          %498 = vst [vmem:[#allocation2 + $0x5c8] sm:$0xff] 0.0
          %499 = vst [vmem:[#allocation2 + $0x5d0] sm:$0xff] 0.0
          %500 = vst [vmem:[#allocation2 + $0x5d8] sm:$0xff] 0.0
          %501 = vst [vmem:[#allocation2 + $0x5e0] sm:$0xff] 0.0
          %502 = vst [vmem:[#allocation2 + $0x5e8] sm:$0xff] 0.0
          %503 = vst [vmem:[#allocation2 + $0x5f0] sm:$0xff] 0.0
          %504 = vst [vmem:[#allocation2 + $0x5f8] sm:$0xff] 0.0
          %505 = vst [vmem:[#allocation2 + $0x600] sm:$0xff] 0.0
          %506 = vst [vmem:[#allocation2 + $0x608] sm:$0xff] 0.0
          %507 = vst [vmem:[#allocation2 + $0x610] sm:$0xff] 0.0
          %508 = vst [vmem:[#allocation2 + $0x618] sm:$0xff] 0.0
          %509 = vst [vmem:[#allocation2 + $0x620] sm:$0xff] 0.0
          %510 = vst [vmem:[#allocation2 + $0x628] sm:$0xff] 0.0
          %511 = vst [vmem:[#allocation2 + $0x630] sm:$0xff] 0.0
          %512 = vst [vmem:[#allocation2 + $0x638] sm:$0xff] 0.0
          %513 = vst [vmem:[#allocation2 + $0x640] sm:$0xff] 0.0
          %514 = vst [vmem:[#allocation2 + $0x648] sm:$0xff] 0.0
          %515 = vst [vmem:[#allocation2 + $0x650] sm:$0xff] 0.0
          %516 = vst [vmem:[#allocation2 + $0x658] sm:$0xff] 0.0
          %517 = vst [vmem:[#allocation2 + $0x660] sm:$0xff] 0.0
          %518 = vst [vmem:[#allocation2 + $0x668] sm:$0xff] 0.0
          %519 = vst [vmem:[#allocation2 + $0x670] sm:$0xff] 0.0
          %520 = vst [vmem:[#allocation2 + $0x678] sm:$0xff] 0.0
          %521 = vst [vmem:[#allocation2 + $0x680] sm:$0xff] 0.0
          %522 = vst [vmem:[#allocation2 + $0x688] sm:$0xff] 0.0
          %523 = vst [vmem:[#allocation2 + $0x690] sm:$0xff] 0.0
          %524 = vst [vmem:[#allocation2 + $0x698] sm:$0xff] 0.0
          %525 = vst [vmem:[#allocation2 + $0x6a0] sm:$0xff] 0.0
          %526 = vst [vmem:[#allocation2 + $0x6a8] sm:$0xff] 0.0
          %527 = vst [vmem:[#allocation2 + $0x6b0] sm:$0xff] 0.0
          %528 = vst [vmem:[#allocation2 + $0x6b8] sm:$0xff] 0.0
          %529 = vst [vmem:[#allocation2 + $0x6c0] sm:$0xff] 0.0
          %530 = vst [vmem:[#allocation2 + $0x6c8] sm:$0xff] 0.0
          %531 = vst [vmem:[#allocation2 + $0x6d0] sm:$0xff] 0.0
          %532 = vst [vmem:[#allocation2 + $0x6d8] sm:$0xff] 0.0
          %533 = vst [vmem:[#allocation2 + $0x6e0] sm:$0xff] 0.0
          %534 = vst [vmem:[#allocation2 + $0x6e8] sm:$0xff] 0.0
          %535 = vst [vmem:[#allocation2 + $0x6f0] sm:$0xff] 0.0
          %536 = vst [vmem:[#allocation2 + $0x6f8] sm:$0xff] 0.0
          %537 = vst [vmem:[#allocation2 + $0x700] sm:$0xff] 0.0
          %538 = vst [vmem:[#allocation2 + $0x708] sm:$0xff] 0.0
          %539 = vst [vmem:[#allocation2 + $0x710] sm:$0xff] 0.0
          %540 = vst [vmem:[#allocation2 + $0x718] sm:$0xff] 0.0
          %541 = vst [vmem:[#allocation2 + $0x720] sm:$0xff] 0.0
          %542 = vst [vmem:[#allocation2 + $0x728] sm:$0xff] 0.0
          %543 = vst [vmem:[#allocation2 + $0x730] sm:$0xff] 0.0
          %544 = vst [vmem:[#allocation2 + $0x738] sm:$0xff] 0.0
          %545 = vst [vmem:[#allocation2 + $0x740] sm:$0xff] 0.0
          %546 = vst [vmem:[#allocation2 + $0x748] sm:$0xff] 0.0
          %547 = vst [vmem:[#allocation2 + $0x750] sm:$0xff] 0.0
          %548 = vst [vmem:[#allocation2 + $0x758] sm:$0xff] 0.0
          %549 = vst [vmem:[#allocation2 + $0x760] sm:$0xff] 0.0
          %550 = vst [vmem:[#allocation2 + $0x768] sm:$0xff] 0.0
          %551 = vst [vmem:[#allocation2 + $0x770] sm:$0xff] 0.0
          %552 = vst [vmem:[#allocation2 + $0x778] sm:$0xff] 0.0
          %553 = vst [vmem:[#allocation2 + $0x780] sm:$0xff] 0.0
          %554 = vst [vmem:[#allocation2 + $0x788] sm:$0xff] 0.0
          %555 = vst [vmem:[#allocation2 + $0x790] sm:$0xff] 0.0
          %556 = vst [vmem:[#allocation2 + $0x798] sm:$0xff] 0.0
          %557 = vst [vmem:[#allocation2 + $0x7a0] sm:$0xff] 0.0
          %558 = vst [vmem:[#allocation2 + $0x7a8] sm:$0xff] 0.0
          %559 = vst [vmem:[#allocation2 + $0x7b0] sm:$0xff] 0.0
          %560 = vst [vmem:[#allocation2 + $0x7b8] sm:$0xff] 0.0
          %561 = vst [vmem:[#allocation2 + $0x7c0] sm:$0xff] 0.0
          %562 = vst [vmem:[#allocation2 + $0x7c8] sm:$0xff] 0.0
          %563 = vst [vmem:[#allocation2 + $0x7d0] sm:$0xff] 0.0
          %564 = vst [vmem:[#allocation2 + $0x7d8] sm:$0xff] 0.0
          %565 = vst [vmem:[#allocation2 + $0x7e0] sm:$0xff] 0.0
          %566 = vst [vmem:[#allocation2 + $0x7e8] sm:$0xff] 0.0
          %567 = vst [vmem:[#allocation2 + $0x7f0] sm:$0xff] 0.0
          %568 = vst [vmem:[#allocation2 + $0x7f8] sm:$0xff] 0.0
        $region56: #{tpu_custom_call.1} parent=35 // pred_fallthru
          _
        %v569 = vld [vmem:[#allocation2] sm:$0xff]
        %v570 = vld [vmem:[#allocation2 + $0x8] sm:$0xff]
        %v571 = vld [vmem:[#allocation2 + $0x10] sm:$0xff]
        %v572 = vld [vmem:[#allocation2 + $0x18] sm:$0xff]
        %v573 = vld [vmem:[#allocation2 + $0x20] sm:$0xff]
        %v574 = vld [vmem:[#allocation2 + $0x28] sm:$0xff]
        %v575 = vld [vmem:[#allocation2 + $0x30] sm:$0xff]
        %v576 = vld [vmem:[#allocation2 + $0x38] sm:$0xff]
        %v577 = vld [vmem:[#allocation2 + $0x40] sm:$0xff]
        %v578 = vld [vmem:[#allocation2 + $0x48] sm:$0xff]
        %v579 = vld [vmem:[#allocation2 + $0x50] sm:$0xff]
        %v580 = vld [vmem:[#allocation2 + $0x58] sm:$0xff]
        %v581 = vld [vmem:[#allocation2 + $0x60] sm:$0xff]
        %v582 = vld [vmem:[#allocation2 + $0x68] sm:$0xff]
        %v583 = vld [vmem:[#allocation2 + $0x70] sm:$0xff]
        %v584 = vld [vmem:[#allocation2 + $0x78] sm:$0xff]
        %v585 = vld [vmem:[#allocation2 + $0x80] sm:$0xff]
        %v586 = vld [vmem:[#allocation2 + $0x88] sm:$0xff]
        %v587 = vld [vmem:[#allocation2 + $0x90] sm:$0xff]
        %v588 = vld [vmem:[#allocation2 + $0x98] sm:$0xff]
        %v589 = vld [vmem:[#allocation2 + $0xa0] sm:$0xff]
        %v590 = vld [vmem:[#allocation2 + $0xa8] sm:$0xff]
        %v591 = vld [vmem:[#allocation2 + $0xb0] sm:$0xff]
        %v592 = vld [vmem:[#allocation2 + $0xb8] sm:$0xff]
        %v593 = vld [vmem:[#allocation2 + $0xc0] sm:$0xff]
        %v594 = vld [vmem:[#allocation2 + $0xc8] sm:$0xff]
        %v595 = vld [vmem:[#allocation2 + $0xd0] sm:$0xff]
        %v596 = vld [vmem:[#allocation2 + $0xd8] sm:$0xff]
        %v597 = vld [vmem:[#allocation2 + $0xe0] sm:$0xff]
        %v598 = vld [vmem:[#allocation2 + $0xe8] sm:$0xff]
        %v599 = vld [vmem:[#allocation2 + $0xf0] sm:$0xff]
        %v600 = vld [vmem:[#allocation2 + $0xf8] sm:$0xff]
        %v601 = vld [vmem:[#allocation2 + $0x100] sm:$0xff]
        %v602 = vld [vmem:[#allocation2 + $0x108] sm:$0xff]
        %v603 = vld [vmem:[#allocation2 + $0x110] sm:$0xff]
        %v604 = vld [vmem:[#allocation2 + $0x118] sm:$0xff]
        %v605 = vld [vmem:[#allocation2 + $0x120] sm:$0xff]
        %v606 = vld [vmem:[#allocation2 + $0x128] sm:$0xff]
        %v607 = vld [vmem:[#allocation2 + $0x130] sm:$0xff]
        %v608 = vld [vmem:[#allocation2 + $0x138] sm:$0xff]
        %v609 = vld [vmem:[#allocation2 + $0x140] sm:$0xff]
        %v610 = vld [vmem:[#allocation2 + $0x148] sm:$0xff]
        %v611 = vld [vmem:[#allocation2 + $0x150] sm:$0xff]
        %v612 = vld [vmem:[#allocation2 + $0x158] sm:$0xff]
        %v613 = vld [vmem:[#allocation2 + $0x160] sm:$0xff]
        %v614 = vld [vmem:[#allocation2 + $0x168] sm:$0xff]
        %v615 = vld [vmem:[#allocation2 + $0x170] sm:$0xff]
        %v616 = vld [vmem:[#allocation2 + $0x178] sm:$0xff]
        %v617 = vld [vmem:[#allocation2 + $0x180] sm:$0xff]
        %v618 = vld [vmem:[#allocation2 + $0x188] sm:$0xff]
        %v619 = vld [vmem:[#allocation2 + $0x190] sm:$0xff]
        %v620 = vld [vmem:[#allocation2 + $0x198] sm:$0xff]
        %v621 = vld [vmem:[#allocation2 + $0x1a0] sm:$0xff]
        %v622 = vld [vmem:[#allocation2 + $0x1a8] sm:$0xff]
        %v623 = vld [vmem:[#allocation2 + $0x1b0] sm:$0xff]
        %v624 = vld [vmem:[#allocation2 + $0x1b8] sm:$0xff]
        %v625 = vld [vmem:[#allocation2 + $0x1c0] sm:$0xff]
        %v626 = vld [vmem:[#allocation2 + $0x1c8] sm:$0xff]
        %v627 = vld [vmem:[#allocation2 + $0x1d0] sm:$0xff]
        %v628 = vld [vmem:[#allocation2 + $0x1d8] sm:$0xff]
        %v629 = vld [vmem:[#allocation2 + $0x1e0] sm:$0xff]
        %v630 = vld [vmem:[#allocation2 + $0x1e8] sm:$0xff]
        %v631 = vld [vmem:[#allocation2 + $0x1f0] sm:$0xff]
        %v632 = vld [vmem:[#allocation2 + $0x1f8] sm:$0xff]
        %v633 = vld [vmem:[#allocation2 + $0x200] sm:$0xff]
        %v634 = vld [vmem:[#allocation2 + $0x208] sm:$0xff]
        %v635 = vld [vmem:[#allocation2 + $0x210] sm:$0xff]
        %v636 = vld [vmem:[#allocation2 + $0x218] sm:$0xff]
        %v637 = vld [vmem:[#allocation2 + $0x220] sm:$0xff]
        %v638 = vld [vmem:[#allocation2 + $0x228] sm:$0xff]
        %v639 = vld [vmem:[#allocation2 + $0x230] sm:$0xff]
        %v640 = vld [vmem:[#allocation2 + $0x238] sm:$0xff]
        %v641 = vld [vmem:[#allocation2 + $0x240] sm:$0xff]
        %v642 = vld [vmem:[#allocation2 + $0x248] sm:$0xff]
        %v643 = vld [vmem:[#allocation2 + $0x250] sm:$0xff]
        %v644 = vld [vmem:[#allocation2 + $0x258] sm:$0xff]
        %v645 = vld [vmem:[#allocation2 + $0x260] sm:$0xff]
        %v646 = vld [vmem:[#allocation2 + $0x268] sm:$0xff]
        %v647 = vld [vmem:[#allocation2 + $0x270] sm:$0xff]
        %v648 = vld [vmem:[#allocation2 + $0x278] sm:$0xff]
        %v649 = vld [vmem:[#allocation2 + $0x280] sm:$0xff]
        %v650 = vld [vmem:[#allocation2 + $0x288] sm:$0xff]
        %v651 = vld [vmem:[#allocation2 + $0x290] sm:$0xff]
        %v652 = vld [vmem:[#allocation2 + $0x298] sm:$0xff]
        %v653 = vld [vmem:[#allocation2 + $0x2a0] sm:$0xff]
        %v654 = vld [vmem:[#allocation2 + $0x2a8] sm:$0xff]
        %v655 = vld [vmem:[#allocation2 + $0x2b0] sm:$0xff]
        %v656 = vld [vmem:[#allocation2 + $0x2b8] sm:$0xff]
        %v657 = vld [vmem:[#allocation2 + $0x2c0] sm:$0xff]
        %v658 = vld [vmem:[#allocation2 + $0x2c8] sm:$0xff]
        %v659 = vld [vmem:[#allocation2 + $0x2d0] sm:$0xff]
        %v660 = vld [vmem:[#allocation2 + $0x2d8] sm:$0xff]
        %v661 = vld [vmem:[#allocation2 + $0x2e0] sm:$0xff]
        %v662 = vld [vmem:[#allocation2 + $0x2e8] sm:$0xff]
        %v663 = vld [vmem:[#allocation2 + $0x2f0] sm:$0xff]
        %v664 = vld [vmem:[#allocation2 + $0x2f8] sm:$0xff]
        %v665 = vld [vmem:[#allocation2 + $0x300] sm:$0xff]
        %v666 = vld [vmem:[#allocation2 + $0x308] sm:$0xff]
        %v667 = vld [vmem:[#allocation2 + $0x310] sm:$0xff]
        %v668 = vld [vmem:[#allocation2 + $0x318] sm:$0xff]
        %v669 = vld [vmem:[#allocation2 + $0x320] sm:$0xff]
        %v670 = vld [vmem:[#allocation2 + $0x328] sm:$0xff]
        %v671 = vld [vmem:[#allocation2 + $0x330] sm:$0xff]
        %v672 = vld [vmem:[#allocation2 + $0x338] sm:$0xff]
        %v673 = vld [vmem:[#allocation2 + $0x340] sm:$0xff]
        %v674 = vld [vmem:[#allocation2 + $0x348] sm:$0xff]
        %v675 = vld [vmem:[#allocation2 + $0x350] sm:$0xff]
        %v676 = vld [vmem:[#allocation2 + $0x358] sm:$0xff]
        %v677 = vld [vmem:[#allocation2 + $0x360] sm:$0xff]
        %v678 = vld [vmem:[#allocation2 + $0x368] sm:$0xff]
        %v679 = vld [vmem:[#allocation2 + $0x370] sm:$0xff]
        %v680 = vld [vmem:[#allocation2 + $0x378] sm:$0xff]
        %v681 = vld [vmem:[#allocation2 + $0x380] sm:$0xff]
        %v682 = vld [vmem:[#allocation2 + $0x388] sm:$0xff]
        %v683 = vld [vmem:[#allocation2 + $0x390] sm:$0xff]
        %v684 = vld [vmem:[#allocation2 + $0x398] sm:$0xff]
        %v685 = vld [vmem:[#allocation2 + $0x3a0] sm:$0xff]
        %v686 = vld [vmem:[#allocation2 + $0x3a8] sm:$0xff]
        %v687 = vld [vmem:[#allocation2 + $0x3b0] sm:$0xff]
        %v688 = vld [vmem:[#allocation2 + $0x3b8] sm:$0xff]
        %v689 = vld [vmem:[#allocation2 + $0x3c0] sm:$0xff]
        %v690 = vld [vmem:[#allocation2 + $0x3c8] sm:$0xff]
        %v691 = vld [vmem:[#allocation2 + $0x3d0] sm:$0xff]
        %v692 = vld [vmem:[#allocation2 + $0x3d8] sm:$0xff]
        %v693 = vld [vmem:[#allocation2 + $0x3e0] sm:$0xff]
        %v694 = vld [vmem:[#allocation2 + $0x3e8] sm:$0xff]
        %v695 = vld [vmem:[#allocation2 + $0x3f0] sm:$0xff]
        %v696 = vld [vmem:[#allocation2 + $0x3f8] sm:$0xff]
        %v697 = vld [vmem:[#allocation2 + $0x400] sm:$0xff]
        %v698 = vld [vmem:[#allocation2 + $0x408] sm:$0xff]
        %v699 = vld [vmem:[#allocation2 + $0x410] sm:$0xff]
        %v700 = vld [vmem:[#allocation2 + $0x418] sm:$0xff]
        %v701 = vld [vmem:[#allocation2 + $0x420] sm:$0xff]
        %v702 = vld [vmem:[#allocation2 + $0x428] sm:$0xff]
        %v703 = vld [vmem:[#allocation2 + $0x430] sm:$0xff]
        %v704 = vld [vmem:[#allocation2 + $0x438] sm:$0xff]
        %v705 = vld [vmem:[#allocation2 + $0x440] sm:$0xff]
        %v706 = vld [vmem:[#allocation2 + $0x448] sm:$0xff]
        %v707 = vld [vmem:[#allocation2 + $0x450] sm:$0xff]
        %v708 = vld [vmem:[#allocation2 + $0x458] sm:$0xff]
        %v709 = vld [vmem:[#allocation2 + $0x460] sm:$0xff]
        %v710 = vld [vmem:[#allocation2 + $0x468] sm:$0xff]
        %v711 = vld [vmem:[#allocation2 + $0x470] sm:$0xff]
        %v712 = vld [vmem:[#allocation2 + $0x478] sm:$0xff]
        %v713 = vld [vmem:[#allocation2 + $0x480] sm:$0xff]
        %v714 = vld [vmem:[#allocation2 + $0x488] sm:$0xff]
        %v715 = vld [vmem:[#allocation2 + $0x490] sm:$0xff]
        %v716 = vld [vmem:[#allocation2 + $0x498] sm:$0xff]
        %v717 = vld [vmem:[#allocation2 + $0x4a0] sm:$0xff]
        %v718 = vld [vmem:[#allocation2 + $0x4a8] sm:$0xff]
        %v719 = vld [vmem:[#allocation2 + $0x4b0] sm:$0xff]
        %v720 = vld [vmem:[#allocation2 + $0x4b8] sm:$0xff]
        %v721 = vld [vmem:[#allocation2 + $0x4c0] sm:$0xff]
        %v722 = vld [vmem:[#allocation2 + $0x4c8] sm:$0xff]
        %v723 = vld [vmem:[#allocation2 + $0x4d0] sm:$0xff]
        %v724 = vld [vmem:[#allocation2 + $0x4d8] sm:$0xff]
        %v725 = vld [vmem:[#allocation2 + $0x4e0] sm:$0xff]
        %v726 = vld [vmem:[#allocation2 + $0x4e8] sm:$0xff]
        %v727 = vld [vmem:[#allocation2 + $0x4f0] sm:$0xff]
        %v728 = vld [vmem:[#allocation2 + $0x4f8] sm:$0xff]
        %v729 = vld [vmem:[#allocation2 + $0x500] sm:$0xff]
        %v730 = vld [vmem:[#allocation2 + $0x508] sm:$0xff]
        %v731 = vld [vmem:[#allocation2 + $0x510] sm:$0xff]
        %v732 = vld [vmem:[#allocation2 + $0x518] sm:$0xff]
        %v733 = vld [vmem:[#allocation2 + $0x520] sm:$0xff]
        %v734 = vld [vmem:[#allocation2 + $0x528] sm:$0xff]
        %v735 = vld [vmem:[#allocation2 + $0x530] sm:$0xff]
        %v736 = vld [vmem:[#allocation2 + $0x538] sm:$0xff]
        %v737 = vld [vmem:[#allocation2 + $0x540] sm:$0xff]
        %v738 = vld [vmem:[#allocation2 + $0x548] sm:$0xff]
        %v739 = vld [vmem:[#allocation2 + $0x550] sm:$0xff]
        %v740 = vld [vmem:[#allocation2 + $0x558] sm:$0xff]
        %v741 = vld [vmem:[#allocation2 + $0x560] sm:$0xff]
        %v742 = vld [vmem:[#allocation2 + $0x568] sm:$0xff]
        %v743 = vld [vmem:[#allocation2 + $0x570] sm:$0xff]
        %v744 = vld [vmem:[#allocation2 + $0x578] sm:$0xff]
        %v745 = vld [vmem:[#allocation2 + $0x580] sm:$0xff]
        %v746 = vld [vmem:[#allocation2 + $0x588] sm:$0xff]
        %v747 = vld [vmem:[#allocation2 + $0x590] sm:$0xff]
        %v748 = vld [vmem:[#allocation2 + $0x598] sm:$0xff]
        %v749 = vld [vmem:[#allocation2 + $0x5a0] sm:$0xff]
        %v750 = vld [vmem:[#allocation2 + $0x5a8] sm:$0xff]
        %v751 = vld [vmem:[#allocation2 + $0x5b0] sm:$0xff]
        %v752 = vld [vmem:[#allocation2 + $0x5b8] sm:$0xff]
        %v753 = vld [vmem:[#allocation2 + $0x5c0] sm:$0xff]
        %v754 = vld [vmem:[#allocation2 + $0x5c8] sm:$0xff]
        %v755 = vld [vmem:[#allocation2 + $0x5d0] sm:$0xff]
        %v756 = vld [vmem:[#allocation2 + $0x5d8] sm:$0xff]
        %v757 = vld [vmem:[#allocation2 + $0x5e0] sm:$0xff]
        %v758 = vld [vmem:[#allocation2 + $0x5e8] sm:$0xff]
        %v759 = vld [vmem:[#allocation2 + $0x5f0] sm:$0xff]
        %v760 = vld [vmem:[#allocation2 + $0x5f8] sm:$0xff]
        %v761 = vld [vmem:[#allocation2 + $0x600] sm:$0xff]
        %v762 = vld [vmem:[#allocation2 + $0x608] sm:$0xff]
        %v763 = vld [vmem:[#allocation2 + $0x610] sm:$0xff]
        %v764 = vld [vmem:[#allocation2 + $0x618] sm:$0xff]
        %v765 = vld [vmem:[#allocation2 + $0x620] sm:$0xff]
        %v766 = vld [vmem:[#allocation2 + $0x628] sm:$0xff]
        %v767 = vld [vmem:[#allocation2 + $0x630] sm:$0xff]
        %v768 = vld [vmem:[#allocation2 + $0x638] sm:$0xff]
        %v769 = vld [vmem:[#allocation2 + $0x640] sm:$0xff]
        %v770 = vld [vmem:[#allocation2 + $0x648] sm:$0xff]
        %v771 = vld [vmem:[#allocation2 + $0x650] sm:$0xff]
        %v772 = vld [vmem:[#allocation2 + $0x658] sm:$0xff]
        %v773 = vld [vmem:[#allocation2 + $0x660] sm:$0xff]
        %v774 = vld [vmem:[#allocation2 + $0x668] sm:$0xff]
        %v775 = vld [vmem:[#allocation2 + $0x670] sm:$0xff]
        %v776 = vld [vmem:[#allocation2 + $0x678] sm:$0xff]
        %v777 = vld [vmem:[#allocation2 + $0x680] sm:$0xff]
        %v778 = vld [vmem:[#allocation2 + $0x688] sm:$0xff]
        %v779 = vld [vmem:[#allocation2 + $0x690] sm:$0xff]
        %v780 = vld [vmem:[#allocation2 + $0x698] sm:$0xff]
        %v781 = vld [vmem:[#allocation2 + $0x6a0] sm:$0xff]
        %v782 = vld [vmem:[#allocation2 + $0x6a8] sm:$0xff]
        %v783 = vld [vmem:[#allocation2 + $0x6b0] sm:$0xff]
        %v784 = vld [vmem:[#allocation2 + $0x6b8] sm:$0xff]
        %v785 = vld [vmem:[#allocation2 + $0x6c0] sm:$0xff]
        %v786 = vld [vmem:[#allocation2 + $0x6c8] sm:$0xff]
        %v787 = vld [vmem:[#allocation2 + $0x6d0] sm:$0xff]
        %v788 = vld [vmem:[#allocation2 + $0x6d8] sm:$0xff]
        %v789 = vld [vmem:[#allocation2 + $0x6e0] sm:$0xff]
        %v790 = vld [vmem:[#allocation2 + $0x6e8] sm:$0xff]
        %v791 = vld [vmem:[#allocation2 + $0x6f0] sm:$0xff]
        %v792 = vld [vmem:[#allocation2 + $0x6f8] sm:$0xff]
        %v793 = vld [vmem:[#allocation2 + $0x700] sm:$0xff]
        %v794 = vld [vmem:[#allocation2 + $0x708] sm:$0xff]
        %v795 = vld [vmem:[#allocation2 + $0x710] sm:$0xff]
        %v796 = vld [vmem:[#allocation2 + $0x718] sm:$0xff]
        %v797 = vld [vmem:[#allocation2 + $0x720] sm:$0xff]
        %v798 = vld [vmem:[#allocation2 + $0x728] sm:$0xff]
        %v799 = vld [vmem:[#allocation2 + $0x730] sm:$0xff]
        %v800 = vld [vmem:[#allocation2 + $0x738] sm:$0xff]
        %v801 = vld [vmem:[#allocation2 + $0x740] sm:$0xff]
        %v802 = vld [vmem:[#allocation2 + $0x748] sm:$0xff]
        %v803 = vld [vmem:[#allocation2 + $0x750] sm:$0xff]
        %v804 = vld [vmem:[#allocation2 + $0x758] sm:$0xff]
        %v805 = vld [vmem:[#allocation2 + $0x760] sm:$0xff]
        %v806 = vld [vmem:[#allocation2 + $0x768] sm:$0xff]
        %v807 = vld [vmem:[#allocation2 + $0x770] sm:$0xff]
        %v808 = vld [vmem:[#allocation2 + $0x778] sm:$0xff]
        %v809 = vld [vmem:[#allocation2 + $0x780] sm:$0xff]
        %v810 = vld [vmem:[#allocation2 + $0x788] sm:$0xff]
        %v811 = vld [vmem:[#allocation2 + $0x790] sm:$0xff]
        %v812 = vld [vmem:[#allocation2 + $0x798] sm:$0xff]
        %v813 = vld [vmem:[#allocation2 + $0x7a0] sm:$0xff]
        %v814 = vld [vmem:[#allocation2 + $0x7a8] sm:$0xff]
        %v815 = vld [vmem:[#allocation2 + $0x7b0] sm:$0xff]
        %v816 = vld [vmem:[#allocation2 + $0x7b8] sm:$0xff]
        %v817 = vld [vmem:[#allocation2 + $0x7c0] sm:$0xff]
        %v818 = vld [vmem:[#allocation2 + $0x7c8] sm:$0xff]
        %v819 = vld [vmem:[#allocation2 + $0x7d0] sm:$0xff]
        %v820 = vld [vmem:[#allocation2 + $0x7d8] sm:$0xff]
        %v821 = vld [vmem:[#allocation2 + $0x7e0] sm:$0xff]
        %v822 = vld [vmem:[#allocation2 + $0x7e8] sm:$0xff]
        %v823 = vld [vmem:[#allocation2 + $0x7f0] sm:$0xff]
        %v824 = vld [vmem:[#allocation2 + $0x7f8] sm:$0xff]
        %v825 = vld [vmem:[%s268] sm:$0xf]
        %v826 = vld [vmem:[%s268 + $0x4] sm:$0xf]
        %v827 = vld [vmem:[%s268 + $0x8] sm:$0xf]
        %v828 = vld [vmem:[%s268 + $0xc] sm:$0xf]
        %v829 = vld [vmem:[%s268 + $0x10] sm:$0xf]
        %v830 = vld [vmem:[%s268 + $0x14] sm:$0xf]
        %v831 = vld [vmem:[%s268 + $0x18] sm:$0xf]
        %v832 = vld [vmem:[%s268 + $0x1c] sm:$0xf]
        %v833 = vld [vmem:[%s268 + $0x20] sm:$0xf]
        %v834 = vld [vmem:[%s268 + $0x24] sm:$0xf]
        %v835 = vld [vmem:[%s268 + $0x28] sm:$0xf]
        %v836 = vld [vmem:[%s268 + $0x2c] sm:$0xf]
        %v837 = vld [vmem:[%s268 + $0x30] sm:$0xf]
        %v838 = vld [vmem:[%s268 + $0x34] sm:$0xf]
        %v839 = vld [vmem:[%s268 + $0x38] sm:$0xf]
        %v840 = vld [vmem:[%s268 + $0x3c] sm:$0xf]
        %v841 = vld [vmem:[%s268 + $0x40] sm:$0xf]
        %v842 = vld [vmem:[%s268 + $0x44] sm:$0xf]
        %v843 = vld [vmem:[%s268 + $0x48] sm:$0xf]
        %v844 = vld [vmem:[%s268 + $0x4c] sm:$0xf]
        %v845 = vld [vmem:[%s268 + $0x50] sm:$0xf]
        %v846 = vld [vmem:[%s268 + $0x54] sm:$0xf]
        %v847 = vld [vmem:[%s268 + $0x58] sm:$0xf]
        %v848 = vld [vmem:[%s268 + $0x5c] sm:$0xf]
        %v849 = vld [vmem:[%s268 + $0x60] sm:$0xf]
        %v850 = vld [vmem:[%s268 + $0x64] sm:$0xf]
        %v851 = vld [vmem:[%s268 + $0x68] sm:$0xf]
        %v852 = vld [vmem:[%s268 + $0x6c] sm:$0xf]
        %v853 = vld [vmem:[%s268 + $0x70] sm:$0xf]
        %v854 = vld [vmem:[%s268 + $0x74] sm:$0xf]
        %v855 = vld [vmem:[%s268 + $0x78] sm:$0xf]
        %v856 = vld [vmem:[%s268 + $0x7c] sm:$0xf]
        %v857 = vld [vmem:[%s268 + $0x80] sm:$0xf]
        %v858 = vld [vmem:[%s268 + $0x84] sm:$0xf]
        %v859 = vld [vmem:[%s268 + $0x88] sm:$0xf]
        %v860 = vld [vmem:[%s268 + $0x8c] sm:$0xf]
        %v861 = vld [vmem:[%s268 + $0x90] sm:$0xf]
        %v862 = vld [vmem:[%s268 + $0x94] sm:$0xf]
        %v863 = vld [vmem:[%s268 + $0x98] sm:$0xf]
        %v864 = vld [vmem:[%s268 + $0x9c] sm:$0xf]
        %v865 = vld [vmem:[%s268 + $0xa0] sm:$0xf]
        %v866 = vld [vmem:[%s268 + $0xa4] sm:$0xf]
        %v867 = vld [vmem:[%s268 + $0xa8] sm:$0xf]
        %v868 = vld [vmem:[%s268 + $0xac] sm:$0xf]
        %v869 = vld [vmem:[%s268 + $0xb0] sm:$0xf]
        %v870 = vld [vmem:[%s268 + $0xb4] sm:$0xf]
        %v871 = vld [vmem:[%s268 + $0xb8] sm:$0xf]
        %v872 = vld [vmem:[%s268 + $0xbc] sm:$0xf]
        %v873 = vld [vmem:[%s268 + $0xc0] sm:$0xf]
        %v874 = vld [vmem:[%s268 + $0xc4] sm:$0xf]
        %v875 = vld [vmem:[%s268 + $0xc8] sm:$0xf]
        %v876 = vld [vmem:[%s268 + $0xcc] sm:$0xf]
        %v877 = vld [vmem:[%s268 + $0xd0] sm:$0xf]
        %v878 = vld [vmem:[%s268 + $0xd4] sm:$0xf]
        %v879 = vld [vmem:[%s268 + $0xd8] sm:$0xf]
        %v880 = vld [vmem:[%s268 + $0xdc] sm:$0xf]
        %v881 = vld [vmem:[%s268 + $0xe0] sm:$0xf]
        %v882 = vld [vmem:[%s268 + $0xe4] sm:$0xf]
        %v883 = vld [vmem:[%s268 + $0xe8] sm:$0xf]
        %v884 = vld [vmem:[%s268 + $0xec] sm:$0xf]
        %v885 = vld [vmem:[%s268 + $0xf0] sm:$0xf]
        %v886 = vld [vmem:[%s268 + $0xf4] sm:$0xf]
        %v887 = vld [vmem:[%s268 + $0xf8] sm:$0xf]
        %v888 = vld [vmem:[%s268 + $0xfc] sm:$0xf]
        %v889 = vld [vmem:[%s268 + $0x100] sm:$0xf]
        %v890 = vld [vmem:[%s268 + $0x104] sm:$0xf]
        %v891 = vld [vmem:[%s268 + $0x108] sm:$0xf]
        %v892 = vld [vmem:[%s268 + $0x10c] sm:$0xf]
        %v893 = vld [vmem:[%s268 + $0x110] sm:$0xf]
        %v894 = vld [vmem:[%s268 + $0x114] sm:$0xf]
        %v895 = vld [vmem:[%s268 + $0x118] sm:$0xf]
        %v896 = vld [vmem:[%s268 + $0x11c] sm:$0xf]
        %v897 = vld [vmem:[%s268 + $0x120] sm:$0xf]
        %v898 = vld [vmem:[%s268 + $0x124] sm:$0xf]
        %v899 = vld [vmem:[%s268 + $0x128] sm:$0xf]
        %v900 = vld [vmem:[%s268 + $0x12c] sm:$0xf]
        %v901 = vld [vmem:[%s268 + $0x130] sm:$0xf]
        %v902 = vld [vmem:[%s268 + $0x134] sm:$0xf]
        %v903 = vld [vmem:[%s268 + $0x138] sm:$0xf]
        %v904 = vld [vmem:[%s268 + $0x13c] sm:$0xf]
        %v905 = vld [vmem:[%s268 + $0x140] sm:$0xf]
        %v906 = vld [vmem:[%s268 + $0x144] sm:$0xf]
        %v907 = vld [vmem:[%s268 + $0x148] sm:$0xf]
        %v908 = vld [vmem:[%s268 + $0x14c] sm:$0xf]
        %v909 = vld [vmem:[%s268 + $0x150] sm:$0xf]
        %v910 = vld [vmem:[%s268 + $0x154] sm:$0xf]
        %v911 = vld [vmem:[%s268 + $0x158] sm:$0xf]
        %v912 = vld [vmem:[%s268 + $0x15c] sm:$0xf]
        %v913 = vld [vmem:[%s268 + $0x160] sm:$0xf]
        %v914 = vld [vmem:[%s268 + $0x164] sm:$0xf]
        %v915 = vld [vmem:[%s268 + $0x168] sm:$0xf]
        %v916 = vld [vmem:[%s268 + $0x16c] sm:$0xf]
        %v917 = vld [vmem:[%s268 + $0x170] sm:$0xf]
        %v918 = vld [vmem:[%s268 + $0x174] sm:$0xf]
        %v919 = vld [vmem:[%s268 + $0x178] sm:$0xf]
        %v920 = vld [vmem:[%s268 + $0x17c] sm:$0xf]
        %v921 = vld [vmem:[%s268 + $0x180] sm:$0xf]
        %v922 = vld [vmem:[%s268 + $0x184] sm:$0xf]
        %v923 = vld [vmem:[%s268 + $0x188] sm:$0xf]
        %v924 = vld [vmem:[%s268 + $0x18c] sm:$0xf]
        %v925 = vld [vmem:[%s268 + $0x190] sm:$0xf]
        %v926 = vld [vmem:[%s268 + $0x194] sm:$0xf]
        %v927 = vld [vmem:[%s268 + $0x198] sm:$0xf]
        %v928 = vld [vmem:[%s268 + $0x19c] sm:$0xf]
        %v929 = vld [vmem:[%s268 + $0x1a0] sm:$0xf]
        %v930 = vld [vmem:[%s268 + $0x1a4] sm:$0xf]
        %v931 = vld [vmem:[%s268 + $0x1a8] sm:$0xf]
        %v932 = vld [vmem:[%s268 + $0x1ac] sm:$0xf]
        %v933 = vld [vmem:[%s268 + $0x1b0] sm:$0xf]
        %v934 = vld [vmem:[%s268 + $0x1b4] sm:$0xf]
        %v935 = vld [vmem:[%s268 + $0x1b8] sm:$0xf]
        %v936 = vld [vmem:[%s268 + $0x1bc] sm:$0xf]
        %v937 = vld [vmem:[%s268 + $0x1c0] sm:$0xf]
        %v938 = vld [vmem:[%s268 + $0x1c4] sm:$0xf]
        %v939 = vld [vmem:[%s268 + $0x1c8] sm:$0xf]
        %v940 = vld [vmem:[%s268 + $0x1cc] sm:$0xf]
        %v941 = vld [vmem:[%s268 + $0x1d0] sm:$0xf]
        %v942 = vld [vmem:[%s268 + $0x1d4] sm:$0xf]
        %v943 = vld [vmem:[%s268 + $0x1d8] sm:$0xf]
        %v944 = vld [vmem:[%s268 + $0x1dc] sm:$0xf]
        %v945 = vld [vmem:[%s268 + $0x1e0] sm:$0xf]
        %v946 = vld [vmem:[%s268 + $0x1e4] sm:$0xf]
        %v947 = vld [vmem:[%s268 + $0x1e8] sm:$0xf]
        %v948 = vld [vmem:[%s268 + $0x1ec] sm:$0xf]
        %v949 = vld [vmem:[%s268 + $0x1f0] sm:$0xf]
        %v950 = vld [vmem:[%s268 + $0x1f4] sm:$0xf]
        %v951 = vld [vmem:[%s268 + $0x1f8] sm:$0xf]
        %v952 = vld [vmem:[%s268 + $0x1fc] sm:$0xf]
        %v953 = vld [vmem:[%s268 + $0x200] sm:$0xf]
        %v954 = vld [vmem:[%s268 + $0x204] sm:$0xf]
        %v955 = vld [vmem:[%s268 + $0x208] sm:$0xf]
        %v956 = vld [vmem:[%s268 + $0x20c] sm:$0xf]
        %v957 = vld [vmem:[%s268 + $0x210] sm:$0xf]
        %v958 = vld [vmem:[%s268 + $0x214] sm:$0xf]
        %v959 = vld [vmem:[%s268 + $0x218] sm:$0xf]
        %v960 = vld [vmem:[%s268 + $0x21c] sm:$0xf]
        %v961 = vld [vmem:[%s268 + $0x220] sm:$0xf]
        %v962 = vld [vmem:[%s268 + $0x224] sm:$0xf]
        %v963 = vld [vmem:[%s268 + $0x228] sm:$0xf]
        %v964 = vld [vmem:[%s268 + $0x22c] sm:$0xf]
        %v965 = vld [vmem:[%s268 + $0x230] sm:$0xf]
        %v966 = vld [vmem:[%s268 + $0x234] sm:$0xf]
        %v967 = vld [vmem:[%s268 + $0x238] sm:$0xf]
        %v968 = vld [vmem:[%s268 + $0x23c] sm:$0xf]
        %v969 = vld [vmem:[%s268 + $0x240] sm:$0xf]
        %v970 = vld [vmem:[%s268 + $0x244] sm:$0xf]
        %v971 = vld [vmem:[%s268 + $0x248] sm:$0xf]
        %v972 = vld [vmem:[%s268 + $0x24c] sm:$0xf]
        %v973 = vld [vmem:[%s268 + $0x250] sm:$0xf]
        %v974 = vld [vmem:[%s268 + $0x254] sm:$0xf]
        %v975 = vld [vmem:[%s268 + $0x258] sm:$0xf]
        %v976 = vld [vmem:[%s268 + $0x25c] sm:$0xf]
        %v977 = vld [vmem:[%s268 + $0x260] sm:$0xf]
        %v978 = vld [vmem:[%s268 + $0x264] sm:$0xf]
        %v979 = vld [vmem:[%s268 + $0x268] sm:$0xf]
        %v980 = vld [vmem:[%s268 + $0x26c] sm:$0xf]
        %v981 = vld [vmem:[%s268 + $0x270] sm:$0xf]
        %v982 = vld [vmem:[%s268 + $0x274] sm:$0xf]
        %v983 = vld [vmem:[%s268 + $0x278] sm:$0xf]
        %v984 = vld [vmem:[%s268 + $0x27c] sm:$0xf]
        %v985 = vld [vmem:[%s268 + $0x280] sm:$0xf]
        %v986 = vld [vmem:[%s268 + $0x284] sm:$0xf]
        %v987 = vld [vmem:[%s268 + $0x288] sm:$0xf]
        %v988 = vld [vmem:[%s268 + $0x28c] sm:$0xf]
        %v989 = vld [vmem:[%s268 + $0x290] sm:$0xf]
        %v990 = vld [vmem:[%s268 + $0x294] sm:$0xf]
        %v991 = vld [vmem:[%s268 + $0x298] sm:$0xf]
        %v992 = vld [vmem:[%s268 + $0x29c] sm:$0xf]
        %v993 = vld [vmem:[%s268 + $0x2a0] sm:$0xf]
        %v994 = vld [vmem:[%s268 + $0x2a4] sm:$0xf]
        %v995 = vld [vmem:[%s268 + $0x2a8] sm:$0xf]
        %v996 = vld [vmem:[%s268 + $0x2ac] sm:$0xf]
        %v997 = vld [vmem:[%s268 + $0x2b0] sm:$0xf]
        %v998 = vld [vmem:[%s268 + $0x2b4] sm:$0xf]
        %v999 = vld [vmem:[%s268 + $0x2b8] sm:$0xf]
        %v1000 = vld [vmem:[%s268 + $0x2bc] sm:$0xf]
        %v1001 = vld [vmem:[%s268 + $0x2c0] sm:$0xf]
        %v1002 = vld [vmem:[%s268 + $0x2c4] sm:$0xf]
        %v1003 = vld [vmem:[%s268 + $0x2c8] sm:$0xf]
        %v1004 = vld [vmem:[%s268 + $0x2cc] sm:$0xf]
        %v1005 = vld [vmem:[%s268 + $0x2d0] sm:$0xf]
        %v1006 = vld [vmem:[%s268 + $0x2d4] sm:$0xf]
        %v1007 = vld [vmem:[%s268 + $0x2d8] sm:$0xf]
        %v1008 = vld [vmem:[%s268 + $0x2dc] sm:$0xf]
        %v1009 = vld [vmem:[%s268 + $0x2e0] sm:$0xf]
        %v1010 = vld [vmem:[%s268 + $0x2e4] sm:$0xf]
        %v1011 = vld [vmem:[%s268 + $0x2e8] sm:$0xf]
        %v1012 = vld [vmem:[%s268 + $0x2ec] sm:$0xf]
        %v1013 = vld [vmem:[%s268 + $0x2f0] sm:$0xf]
        %v1014 = vld [vmem:[%s268 + $0x2f4] sm:$0xf]
        %v1015 = vld [vmem:[%s268 + $0x2f8] sm:$0xf]
        %v1016 = vld [vmem:[%s268 + $0x2fc] sm:$0xf]
        %v1017 = vld [vmem:[%s268 + $0x300] sm:$0xf]
        %v1018 = vld [vmem:[%s268 + $0x304] sm:$0xf]
        %v1019 = vld [vmem:[%s268 + $0x308] sm:$0xf]
        %v1020 = vld [vmem:[%s268 + $0x30c] sm:$0xf]
        %v1021 = vld [vmem:[%s268 + $0x310] sm:$0xf]
        %v1022 = vld [vmem:[%s268 + $0x314] sm:$0xf]
        %v1023 = vld [vmem:[%s268 + $0x318] sm:$0xf]
        %v1024 = vld [vmem:[%s268 + $0x31c] sm:$0xf]
        %v1025 = vld [vmem:[%s268 + $0x320] sm:$0xf]
        %v1026 = vld [vmem:[%s268 + $0x324] sm:$0xf]
        %v1027 = vld [vmem:[%s268 + $0x328] sm:$0xf]
        %v1028 = vld [vmem:[%s268 + $0x32c] sm:$0xf]
        %v1029 = vld [vmem:[%s268 + $0x330] sm:$0xf]
        %v1030 = vld [vmem:[%s268 + $0x334] sm:$0xf]
        %v1031 = vld [vmem:[%s268 + $0x338] sm:$0xf]
        %v1032 = vld [vmem:[%s268 + $0x33c] sm:$0xf]
        %v1033 = vld [vmem:[%s268 + $0x340] sm:$0xf]
        %v1034 = vld [vmem:[%s268 + $0x344] sm:$0xf]
        %v1035 = vld [vmem:[%s268 + $0x348] sm:$0xf]
        %v1036 = vld [vmem:[%s268 + $0x34c] sm:$0xf]
        %v1037 = vld [vmem:[%s268 + $0x350] sm:$0xf]
        %v1038 = vld [vmem:[%s268 + $0x354] sm:$0xf]
        %v1039 = vld [vmem:[%s268 + $0x358] sm:$0xf]
        %v1040 = vld [vmem:[%s268 + $0x35c] sm:$0xf]
        %v1041 = vld [vmem:[%s268 + $0x360] sm:$0xf]
        %v1042 = vld [vmem:[%s268 + $0x364] sm:$0xf]
        %v1043 = vld [vmem:[%s268 + $0x368] sm:$0xf]
        %v1044 = vld [vmem:[%s268 + $0x36c] sm:$0xf]
        %v1045 = vld [vmem:[%s268 + $0x370] sm:$0xf]
        %v1046 = vld [vmem:[%s268 + $0x374] sm:$0xf]
        %v1047 = vld [vmem:[%s268 + $0x378] sm:$0xf]
        %v1048 = vld [vmem:[%s268 + $0x37c] sm:$0xf]
        %v1049 = vld [vmem:[%s268 + $0x380] sm:$0xf]
        %v1050 = vld [vmem:[%s268 + $0x384] sm:$0xf]
        %v1051 = vld [vmem:[%s268 + $0x388] sm:$0xf]
        %v1052 = vld [vmem:[%s268 + $0x38c] sm:$0xf]
        %v1053 = vld [vmem:[%s268 + $0x390] sm:$0xf]
        %v1054 = vld [vmem:[%s268 + $0x394] sm:$0xf]
        %v1055 = vld [vmem:[%s268 + $0x398] sm:$0xf]
        %v1056 = vld [vmem:[%s268 + $0x39c] sm:$0xf]
        %v1057 = vld [vmem:[%s268 + $0x3a0] sm:$0xf]
        %v1058 = vld [vmem:[%s268 + $0x3a4] sm:$0xf]
        %v1059 = vld [vmem:[%s268 + $0x3a8] sm:$0xf]
        %v1060 = vld [vmem:[%s268 + $0x3ac] sm:$0xf]
        %v1061 = vld [vmem:[%s268 + $0x3b0] sm:$0xf]
        %v1062 = vld [vmem:[%s268 + $0x3b4] sm:$0xf]
        %v1063 = vld [vmem:[%s268 + $0x3b8] sm:$0xf]
        %v1064 = vld [vmem:[%s268 + $0x3bc] sm:$0xf]
        %v1065 = vld [vmem:[%s268 + $0x3c0] sm:$0xf]
        %v1066 = vld [vmem:[%s268 + $0x3c4] sm:$0xf]
        %v1067 = vld [vmem:[%s268 + $0x3c8] sm:$0xf]
        %v1068 = vld [vmem:[%s268 + $0x3cc] sm:$0xf]
        %v1069 = vld [vmem:[%s268 + $0x3d0] sm:$0xf]
        %v1070 = vld [vmem:[%s268 + $0x3d4] sm:$0xf]
        %v1071 = vld [vmem:[%s268 + $0x3d8] sm:$0xf]
        %v1072 = vld [vmem:[%s268 + $0x3dc] sm:$0xf]
        %v1073 = vld [vmem:[%s268 + $0x3e0] sm:$0xf]
        %v1074 = vld [vmem:[%s268 + $0x3e4] sm:$0xf]
        %v1075 = vld [vmem:[%s268 + $0x3e8] sm:$0xf]
        %v1076 = vld [vmem:[%s268 + $0x3ec] sm:$0xf]
        %v1077 = vld [vmem:[%s268 + $0x3f0] sm:$0xf]
        %v1078 = vld [vmem:[%s268 + $0x3f4] sm:$0xf]
        %v1079 = vld [vmem:[%s268 + $0x3f8] sm:$0xf]
        %v1080 = vld [vmem:[%s268 + $0x3fc] sm:$0xf]
        %v1081 = vld [vmem:[#allocation6] sm:$0xf]
        %v1082 = vld [vmem:[#allocation6 + $0x4] sm:$0xf]
        %v1083 = vld [vmem:[#allocation6 + $0x8] sm:$0xf]
        %v1084 = vld [vmem:[#allocation6 + $0xc] sm:$0xf]
        %v1085 = vld [vmem:[#allocation6 + $0x10] sm:$0xf]
        %v1086 = vld [vmem:[#allocation6 + $0x14] sm:$0xf]
        %v1087 = vld [vmem:[#allocation6 + $0x18] sm:$0xf]
        %v1088 = vld [vmem:[#allocation6 + $0x1c] sm:$0xf]
        %v1089 = vld [vmem:[#allocation6 + $0x20] sm:$0xf]
        %v1090 = vld [vmem:[#allocation6 + $0x24] sm:$0xf]
        %v1091 = vld [vmem:[#allocation6 + $0x28] sm:$0xf]
        %v1092 = vld [vmem:[#allocation6 + $0x2c] sm:$0xf]
        %v1093 = vld [vmem:[#allocation6 + $0x30] sm:$0xf]
        %v1094 = vld [vmem:[#allocation6 + $0x34] sm:$0xf]
        %v1095 = vld [vmem:[#allocation6 + $0x38] sm:$0xf]
        %v1096 = vld [vmem:[#allocation6 + $0x3c] sm:$0xf]
        %v1353 = vunpack.c.l.b16 %v825
        %v1354 = vunpack.c.l.b16 %v826
        %v1355 = vunpack.c.l.b16 %v827
        %v1356 = vunpack.c.l.b16 %v828
        %v1357 = vunpack.c.l.b16 %v829
        %v1358 = vunpack.c.l.b16 %v830
        %v1359 = vunpack.c.l.b16 %v831
        %v1360 = vunpack.c.l.b16 %v832
        %v1361 = vunpack.c.l.b16 %v833
        %v1362 = vunpack.c.l.b16 %v834
        %v1363 = vunpack.c.l.b16 %v835
        %v1364 = vunpack.c.l.b16 %v836
        %v1365 = vunpack.c.l.b16 %v837
        %v1366 = vunpack.c.l.b16 %v838
        %v1367 = vunpack.c.l.b16 %v839
        %v1368 = vunpack.c.l.b16 %v840
        %v1369 = vunpack.c.l.b16 %v841
        %v1370 = vunpack.c.l.b16 %v842
        %v1371 = vunpack.c.l.b16 %v843
        %v1372 = vunpack.c.l.b16 %v844
        %v1373 = vunpack.c.l.b16 %v845
        %v1374 = vunpack.c.l.b16 %v846
        %v1375 = vunpack.c.l.b16 %v847
        %v1376 = vunpack.c.l.b16 %v848
        %v1377 = vunpack.c.l.b16 %v849
        %v1378 = vunpack.c.l.b16 %v850
        %v1379 = vunpack.c.l.b16 %v851
        %v1380 = vunpack.c.l.b16 %v852
        %v1381 = vunpack.c.l.b16 %v853
        %v1382 = vunpack.c.l.b16 %v854
        %v1383 = vunpack.c.l.b16 %v855
        %v1384 = vunpack.c.l.b16 %v856
        %v1385 = vunpack.c.l.b16 %v857
        %v1386 = vunpack.c.l.b16 %v858
        %v1387 = vunpack.c.l.b16 %v859
        %v1388 = vunpack.c.l.b16 %v860
        %v1389 = vunpack.c.l.b16 %v861
        %v1390 = vunpack.c.l.b16 %v862
        %v1391 = vunpack.c.l.b16 %v863
        %v1392 = vunpack.c.l.b16 %v864
        %v1393 = vunpack.c.l.b16 %v865
        %v1394 = vunpack.c.l.b16 %v866
        %v1395 = vunpack.c.l.b16 %v867
        %v1396 = vunpack.c.l.b16 %v868
        %v1397 = vunpack.c.l.b16 %v869
        %v1398 = vunpack.c.l.b16 %v870
        %v1399 = vunpack.c.l.b16 %v871
        %v1400 = vunpack.c.l.b16 %v872
        %v1401 = vunpack.c.l.b16 %v873
        %v1402 = vunpack.c.l.b16 %v874
        %v1403 = vunpack.c.l.b16 %v875
        %v1404 = vunpack.c.l.b16 %v876
        %v1405 = vunpack.c.l.b16 %v877
        %v1406 = vunpack.c.l.b16 %v878
        %v1407 = vunpack.c.l.b16 %v879
        %v1408 = vunpack.c.l.b16 %v880
        %v1409 = vunpack.c.l.b16 %v881
        %v1410 = vunpack.c.l.b16 %v882
        %v1411 = vunpack.c.l.b16 %v883
        %v1412 = vunpack.c.l.b16 %v884
        %v1413 = vunpack.c.l.b16 %v885
        %v1414 = vunpack.c.l.b16 %v886
        %v1415 = vunpack.c.l.b16 %v887
        %v1416 = vunpack.c.l.b16 %v888
        %v1417 = vunpack.c.l.b16 %v889
        %v1418 = vunpack.c.l.b16 %v890
        %v1419 = vunpack.c.l.b16 %v891
        %v1420 = vunpack.c.l.b16 %v892
        %v1421 = vunpack.c.l.b16 %v893
        %v1422 = vunpack.c.l.b16 %v894
        %v1423 = vunpack.c.l.b16 %v895
        %v1424 = vunpack.c.l.b16 %v896
        %v1425 = vunpack.c.l.b16 %v897
        %v1426 = vunpack.c.l.b16 %v898
        %v1427 = vunpack.c.l.b16 %v899
        %v1428 = vunpack.c.l.b16 %v900
        %v1429 = vunpack.c.l.b16 %v901
        %v1430 = vunpack.c.l.b16 %v902
        %v1431 = vunpack.c.l.b16 %v903
        %v1432 = vunpack.c.l.b16 %v904
        %v1433 = vunpack.c.l.b16 %v905
        %v1434 = vunpack.c.l.b16 %v906
        %v1435 = vunpack.c.l.b16 %v907
        %v1436 = vunpack.c.l.b16 %v908
        %v1437 = vunpack.c.l.b16 %v909
        %v1438 = vunpack.c.l.b16 %v910
        %v1439 = vunpack.c.l.b16 %v911
        %v1440 = vunpack.c.l.b16 %v912
        %v1441 = vunpack.c.l.b16 %v913
        %v1442 = vunpack.c.l.b16 %v914
        %v1443 = vunpack.c.l.b16 %v915
        %v1444 = vunpack.c.l.b16 %v916
        %v1445 = vunpack.c.l.b16 %v917
        %v1446 = vunpack.c.l.b16 %v918
        %v1447 = vunpack.c.l.b16 %v919
        %v1448 = vunpack.c.l.b16 %v920
        %v1449 = vunpack.c.l.b16 %v921
        %v1450 = vunpack.c.l.b16 %v922
        %v1451 = vunpack.c.l.b16 %v923
        %v1452 = vunpack.c.l.b16 %v924
        %v1453 = vunpack.c.l.b16 %v925
        %v1454 = vunpack.c.l.b16 %v926
        %v1455 = vunpack.c.l.b16 %v927
        %v1456 = vunpack.c.l.b16 %v928
        %v1457 = vunpack.c.l.b16 %v929
        %v1458 = vunpack.c.l.b16 %v930
        %v1459 = vunpack.c.l.b16 %v931
        %v1460 = vunpack.c.l.b16 %v932
        %v1461 = vunpack.c.l.b16 %v933
        %v1462 = vunpack.c.l.b16 %v934
        %v1463 = vunpack.c.l.b16 %v935
        %v1464 = vunpack.c.l.b16 %v936
        %v1465 = vunpack.c.l.b16 %v937
        %v1466 = vunpack.c.l.b16 %v938
        %v1467 = vunpack.c.l.b16 %v939
        %v1468 = vunpack.c.l.b16 %v940
        %v1469 = vunpack.c.l.b16 %v941
        %v1470 = vunpack.c.l.b16 %v942
        %v1471 = vunpack.c.l.b16 %v943
        %v1472 = vunpack.c.l.b16 %v944
        %v1473 = vunpack.c.l.b16 %v945
        %v1474 = vunpack.c.l.b16 %v946
        %v1475 = vunpack.c.l.b16 %v947
        %v1476 = vunpack.c.l.b16 %v948
        %v1477 = vunpack.c.l.b16 %v949
        %v1478 = vunpack.c.l.b16 %v950
        %v1479 = vunpack.c.l.b16 %v951
        %v1480 = vunpack.c.l.b16 %v952
        %v1481 = vunpack.c.l.b16 %v953
        %v1482 = vunpack.c.l.b16 %v954
        %v1483 = vunpack.c.l.b16 %v955
        %v1484 = vunpack.c.l.b16 %v956
        %v1485 = vunpack.c.l.b16 %v957
        %v1486 = vunpack.c.l.b16 %v958
        %v1487 = vunpack.c.l.b16 %v959
        %v1488 = vunpack.c.l.b16 %v960
        %v1489 = vunpack.c.l.b16 %v961
        %v1490 = vunpack.c.l.b16 %v962
        %v1491 = vunpack.c.l.b16 %v963
        %v1492 = vunpack.c.l.b16 %v964
        %v1493 = vunpack.c.l.b16 %v965
        %v1494 = vunpack.c.l.b16 %v966
        %v1495 = vunpack.c.l.b16 %v967
        %v1496 = vunpack.c.l.b16 %v968
        %v1497 = vunpack.c.l.b16 %v969
        %v1498 = vunpack.c.l.b16 %v970
        %v1499 = vunpack.c.l.b16 %v971
        %v1500 = vunpack.c.l.b16 %v972
        %v1501 = vunpack.c.l.b16 %v973
        %v1502 = vunpack.c.l.b16 %v974
        %v1503 = vunpack.c.l.b16 %v975
        %v1504 = vunpack.c.l.b16 %v976
        %v1505 = vunpack.c.l.b16 %v977
        %v1506 = vunpack.c.l.b16 %v978
        %v1507 = vunpack.c.l.b16 %v979
        %v1508 = vunpack.c.l.b16 %v980
        %v1509 = vunpack.c.l.b16 %v981
        %v1510 = vunpack.c.l.b16 %v982
        %v1511 = vunpack.c.l.b16 %v983
        %v1512 = vunpack.c.l.b16 %v984
        %v1513 = vunpack.c.l.b16 %v985
        %v1514 = vunpack.c.l.b16 %v986
        %v1515 = vunpack.c.l.b16 %v987
        %v1516 = vunpack.c.l.b16 %v988
        %v1517 = vunpack.c.l.b16 %v989
        %v1518 = vunpack.c.l.b16 %v990
        %v1519 = vunpack.c.l.b16 %v991
        %v1520 = vunpack.c.l.b16 %v992
        %v1521 = vunpack.c.l.b16 %v993
        %v1522 = vunpack.c.l.b16 %v994
        %v1523 = vunpack.c.l.b16 %v995
        %v1524 = vunpack.c.l.b16 %v996
        %v1525 = vunpack.c.l.b16 %v997
        %v1526 = vunpack.c.l.b16 %v998
        %v1527 = vunpack.c.l.b16 %v999
        %v1528 = vunpack.c.l.b16 %v1000
        %v1529 = vunpack.c.l.b16 %v1001
        %v1530 = vunpack.c.l.b16 %v1002
        %v1531 = vunpack.c.l.b16 %v1003
        %v1532 = vunpack.c.l.b16 %v1004
        %v1533 = vunpack.c.l.b16 %v1005
        %v1534 = vunpack.c.l.b16 %v1006
        %v1535 = vunpack.c.l.b16 %v1007
        %v1536 = vunpack.c.l.b16 %v1008
        %v1537 = vunpack.c.l.b16 %v1009
        %v1538 = vunpack.c.l.b16 %v1010
        %v1539 = vunpack.c.l.b16 %v1011
        %v1540 = vunpack.c.l.b16 %v1012
        %v1541 = vunpack.c.l.b16 %v1013
        %v1542 = vunpack.c.l.b16 %v1014
        %v1543 = vunpack.c.l.b16 %v1015
        %v1544 = vunpack.c.l.b16 %v1016
        %v1545 = vunpack.c.l.b16 %v1017
        %v1546 = vunpack.c.l.b16 %v1018
        %v1547 = vunpack.c.l.b16 %v1019
        %v1548 = vunpack.c.l.b16 %v1020
        %v1549 = vunpack.c.l.b16 %v1021
        %v1550 = vunpack.c.l.b16 %v1022
        %v1551 = vunpack.c.l.b16 %v1023
        %v1552 = vunpack.c.l.b16 %v1024
        %v1553 = vunpack.c.l.b16 %v1025
        %v1554 = vunpack.c.l.b16 %v1026
        %v1555 = vunpack.c.l.b16 %v1027
        %v1556 = vunpack.c.l.b16 %v1028
        %v1557 = vunpack.c.l.b16 %v1029
        %v1558 = vunpack.c.l.b16 %v1030
        %v1559 = vunpack.c.l.b16 %v1031
        %v1560 = vunpack.c.l.b16 %v1032
        %v1561 = vunpack.c.l.b16 %v1033
        %v1562 = vunpack.c.l.b16 %v1034
        %v1563 = vunpack.c.l.b16 %v1035
        %v1564 = vunpack.c.l.b16 %v1036
        %v1565 = vunpack.c.l.b16 %v1037
        %v1566 = vunpack.c.l.b16 %v1038
        %v1567 = vunpack.c.l.b16 %v1039
        %v1568 = vunpack.c.l.b16 %v1040
        %v1569 = vunpack.c.l.b16 %v1041
        %v1570 = vunpack.c.l.b16 %v1042
        %v1571 = vunpack.c.l.b16 %v1043
        %v1572 = vunpack.c.l.b16 %v1044
        %v1573 = vunpack.c.l.b16 %v1045
        %v1574 = vunpack.c.l.b16 %v1046
        %v1575 = vunpack.c.l.b16 %v1047
        %v1576 = vunpack.c.l.b16 %v1048
        %v1577 = vunpack.c.l.b16 %v1049
        %v1578 = vunpack.c.l.b16 %v1050
        %v1579 = vunpack.c.l.b16 %v1051
        %v1580 = vunpack.c.l.b16 %v1052
        %v1581 = vunpack.c.l.b16 %v1053
        %v1582 = vunpack.c.l.b16 %v1054
        %v1583 = vunpack.c.l.b16 %v1055
        %v1584 = vunpack.c.l.b16 %v1056
        %v1585 = vunpack.c.l.b16 %v1057
        %v1586 = vunpack.c.l.b16 %v1058
        %v1587 = vunpack.c.l.b16 %v1059
        %v1588 = vunpack.c.l.b16 %v1060
        %v1589 = vunpack.c.l.b16 %v1061
        %v1590 = vunpack.c.l.b16 %v1062
        %v1591 = vunpack.c.l.b16 %v1063
        %v1592 = vunpack.c.l.b16 %v1064
        %v1593 = vunpack.c.l.b16 %v1065
        %v1594 = vunpack.c.l.b16 %v1066
        %v1595 = vunpack.c.l.b16 %v1067
        %v1596 = vunpack.c.l.b16 %v1068
        %v1597 = vunpack.c.l.b16 %v1069
        %v1598 = vunpack.c.l.b16 %v1070
        %v1599 = vunpack.c.l.b16 %v1071
        %v1600 = vunpack.c.l.b16 %v1072
        %v1601 = vunpack.c.l.b16 %v1073
        %v1602 = vunpack.c.l.b16 %v1074
        %v1603 = vunpack.c.l.b16 %v1075
        %v1604 = vunpack.c.l.b16 %v1076
        %v1605 = vunpack.c.l.b16 %v1077
        %v1606 = vunpack.c.l.b16 %v1078
        %v1607 = vunpack.c.l.b16 %v1079
        %v1608 = vunpack.c.l.b16 %v1080
        %v1609 = vpack.c.b16 %v1354, %v1353
        %v1610 = vpack.c.b16 %v1356, %v1355
        %v1611 = vpack.c.b16 %v1358, %v1357
        %v1612 = vpack.c.b16 %v1360, %v1359
        %v1613 = vpack.c.b16 %v1362, %v1361
        %v1614 = vpack.c.b16 %v1364, %v1363
        %v1615 = vpack.c.b16 %v1366, %v1365
        %v1616 = vpack.c.b16 %v1368, %v1367
        %v1617 = vpack.c.b16 %v1370, %v1369
        %v1618 = vpack.c.b16 %v1372, %v1371
        %v1619 = vpack.c.b16 %v1374, %v1373
        %v1620 = vpack.c.b16 %v1376, %v1375
        %v1621 = vpack.c.b16 %v1378, %v1377
        %v1622 = vpack.c.b16 %v1380, %v1379
        %v1623 = vpack.c.b16 %v1382, %v1381
        %v1624 = vpack.c.b16 %v1384, %v1383
        %v1625 = vpack.c.b16 %v1386, %v1385
        %v1626 = vpack.c.b16 %v1388, %v1387
        %v1627 = vpack.c.b16 %v1390, %v1389
        %v1628 = vpack.c.b16 %v1392, %v1391
        %v1629 = vpack.c.b16 %v1394, %v1393
        %v1630 = vpack.c.b16 %v1396, %v1395
        %v1631 = vpack.c.b16 %v1398, %v1397
        %v1632 = vpack.c.b16 %v1400, %v1399
        %v1633 = vpack.c.b16 %v1402, %v1401
        %v1634 = vpack.c.b16 %v1404, %v1403
        %v1635 = vpack.c.b16 %v1406, %v1405
        %v1636 = vpack.c.b16 %v1408, %v1407
        %v1637 = vpack.c.b16 %v1410, %v1409
        %v1638 = vpack.c.b16 %v1412, %v1411
        %v1639 = vpack.c.b16 %v1414, %v1413
        %v1640 = vpack.c.b16 %v1416, %v1415
        %v1641 = vpack.c.b16 %v1418, %v1417
        %v1642 = vpack.c.b16 %v1420, %v1419
        %v1643 = vpack.c.b16 %v1422, %v1421
        %v1644 = vpack.c.b16 %v1424, %v1423
        %v1645 = vpack.c.b16 %v1426, %v1425
        %v1646 = vpack.c.b16 %v1428, %v1427
        %v1647 = vpack.c.b16 %v1430, %v1429
        %v1648 = vpack.c.b16 %v1432, %v1431
        %v1649 = vpack.c.b16 %v1434, %v1433
        %v1650 = vpack.c.b16 %v1436, %v1435
        %v1651 = vpack.c.b16 %v1438, %v1437
        %v1652 = vpack.c.b16 %v1440, %v1439
        %v1653 = vpack.c.b16 %v1442, %v1441
        %v1654 = vpack.c.b16 %v1444, %v1443
        %v1655 = vpack.c.b16 %v1446, %v1445
        %v1656 = vpack.c.b16 %v1448, %v1447
        %v1657 = vpack.c.b16 %v1450, %v1449
        %v1658 = vpack.c.b16 %v1452, %v1451
        %v1659 = vpack.c.b16 %v1454, %v1453
        %v1660 = vpack.c.b16 %v1456, %v1455
        %v1661 = vpack.c.b16 %v1458, %v1457
        %v1662 = vpack.c.b16 %v1460, %v1459
        %v1663 = vpack.c.b16 %v1462, %v1461
        %v1664 = vpack.c.b16 %v1464, %v1463
        %v1665 = vpack.c.b16 %v1466, %v1465
        %v1666 = vpack.c.b16 %v1468, %v1467
        %v1667 = vpack.c.b16 %v1470, %v1469
        %v1668 = vpack.c.b16 %v1472, %v1471
        %v1669 = vpack.c.b16 %v1474, %v1473
        %v1670 = vpack.c.b16 %v1476, %v1475
        %v1671 = vpack.c.b16 %v1478, %v1477
        %v1672 = vpack.c.b16 %v1480, %v1479
        %v1673 = vpack.c.b16 %v1482, %v1481
        %v1674 = vpack.c.b16 %v1484, %v1483
        %v1675 = vpack.c.b16 %v1486, %v1485
        %v1676 = vpack.c.b16 %v1488, %v1487
        %v1677 = vpack.c.b16 %v1490, %v1489
        %v1678 = vpack.c.b16 %v1492, %v1491
        %v1679 = vpack.c.b16 %v1494, %v1493
        %v1680 = vpack.c.b16 %v1496, %v1495
        %v1681 = vpack.c.b16 %v1498, %v1497
        %v1682 = vpack.c.b16 %v1500, %v1499
        %v1683 = vpack.c.b16 %v1502, %v1501
        %v1684 = vpack.c.b16 %v1504, %v1503
        %v1685 = vpack.c.b16 %v1506, %v1505
        %v1686 = vpack.c.b16 %v1508, %v1507
        %v1687 = vpack.c.b16 %v1510, %v1509
        %v1688 = vpack.c.b16 %v1512, %v1511
        %v1689 = vpack.c.b16 %v1514, %v1513
        %v1690 = vpack.c.b16 %v1516, %v1515
        %v1691 = vpack.c.b16 %v1518, %v1517
        %v1692 = vpack.c.b16 %v1520, %v1519
        %v1693 = vpack.c.b16 %v1522, %v1521
        %v1694 = vpack.c.b16 %v1524, %v1523
        %v1695 = vpack.c.b16 %v1526, %v1525
        %v1696 = vpack.c.b16 %v1528, %v1527
        %v1697 = vpack.c.b16 %v1530, %v1529
        %v1698 = vpack.c.b16 %v1532, %v1531
        %v1699 = vpack.c.b16 %v1534, %v1533
        %v1700 = vpack.c.b16 %v1536, %v1535
        %v1701 = vpack.c.b16 %v1538, %v1537
        %v1702 = vpack.c.b16 %v1540, %v1539
        %v1703 = vpack.c.b16 %v1542, %v1541
        %v1704 = vpack.c.b16 %v1544, %v1543
        %v1705 = vpack.c.b16 %v1546, %v1545
        %v1706 = vpack.c.b16 %v1548, %v1547
        %v1707 = vpack.c.b16 %v1550, %v1549
        %v1708 = vpack.c.b16 %v1552, %v1551
        %v1709 = vpack.c.b16 %v1554, %v1553
        %v1710 = vpack.c.b16 %v1556, %v1555
        %v1711 = vpack.c.b16 %v1558, %v1557
        %v1712 = vpack.c.b16 %v1560, %v1559
        %v1713 = vpack.c.b16 %v1562, %v1561
        %v1714 = vpack.c.b16 %v1564, %v1563
        %v1715 = vpack.c.b16 %v1566, %v1565
        %v1716 = vpack.c.b16 %v1568, %v1567
        %v1717 = vpack.c.b16 %v1570, %v1569
        %v1718 = vpack.c.b16 %v1572, %v1571
        %v1719 = vpack.c.b16 %v1574, %v1573
        %v1720 = vpack.c.b16 %v1576, %v1575
        %v1721 = vpack.c.b16 %v1578, %v1577
        %v1722 = vpack.c.b16 %v1580, %v1579
        %v1723 = vpack.c.b16 %v1582, %v1581
        %v1724 = vpack.c.b16 %v1584, %v1583
        %v1725 = vpack.c.b16 %v1586, %v1585
        %v1726 = vpack.c.b16 %v1588, %v1587
        %v1727 = vpack.c.b16 %v1590, %v1589
        %v1728 = vpack.c.b16 %v1592, %v1591
        %v1729 = vpack.c.b16 %v1594, %v1593
        %v1730 = vpack.c.b16 %v1596, %v1595
        %v1731 = vpack.c.b16 %v1598, %v1597
        %v1732 = vpack.c.b16 %v1600, %v1599
        %v1733 = vpack.c.b16 %v1602, %v1601
        %v1734 = vpack.c.b16 %v1604, %v1603
        %v1735 = vpack.c.b16 %v1606, %v1605
        %v1736 = vpack.c.b16 %v1608, %v1607
        %v1881 = vunpack.c.l.b16 %v1081
        %v1882 = vunpack.c.l.b16 %v1082
        %v1883 = vunpack.c.l.b16 %v1083
        %v1884 = vunpack.c.l.b16 %v1084
        %v1885 = vunpack.c.l.b16 %v1085
        %v1886 = vunpack.c.l.b16 %v1086
        %v1887 = vunpack.c.l.b16 %v1087
        %v1888 = vunpack.c.l.b16 %v1088
        %v1889 = vunpack.c.l.b16 %v1089
        %v1890 = vunpack.c.l.b16 %v1090
        %v1891 = vunpack.c.l.b16 %v1091
        %v1892 = vunpack.c.l.b16 %v1092
        %v1893 = vunpack.c.l.b16 %v1093
        %v1894 = vunpack.c.l.b16 %v1094
        %v1895 = vunpack.c.l.b16 %v1095
        %v1896 = vunpack.c.l.b16 %v1096
        %v1897 = vpack.c.b16 %v1882, %v1881
        %v1898 = vpack.c.b16 %v1884, %v1883
        %v1899 = vpack.c.b16 %v1886, %v1885
        %v1900 = vpack.c.b16 %v1888, %v1887
        %v1901 = vpack.c.b16 %v1890, %v1889
        %v1902 = vpack.c.b16 %v1892, %v1891
        %v1903 = vpack.c.b16 %v1894, %v1893
        %v1904 = vpack.c.b16 %v1896, %v1895
        %1913 = vmatprep.subr.bf16.mxu0 0
        %1914 = vmatpush1.bf16.msra.mxu0 %v1904
        %1915 = vmatprep.subr.bf16.mxu0 0
        %1916 = vmatpush1.bf16.msra.mxu0 %v1903
        %1917 = vmatprep.subr.bf16.mxu0 0
        %1918 = vmatpush1.bf16.msra.mxu0 %v1902
        %1919 = vmatprep.subr.bf16.mxu0 0
        %1920 = vmatpush1.bf16.msra.mxu0 %v1901
        %1921 = vmatprep.subr.bf16.mxu0 0
        %1922 = vmatpush1.bf16.msra.mxu0 %v1900
        %1923 = vmatprep.subr.bf16.mxu0 0
        %1924 = vmatpush1.bf16.msra.mxu0 %v1899
        %1925 = vmatprep.subr.bf16.mxu0 0
        %1926 = vmatpush1.bf16.msra.mxu0 %v1898
        %1927 = vmatprep.subr.bf16.mxu0 0
        %1928 = vmatpush1.bf16.msra.mxu0 %v1897
        %1929 = vmatprep.subr.bf16.mxu0 0
        %1930 = vmatpush2.bf16.msra.mxu0 0
        %1931 = vmatprep.subr.bf16.mxu0 0
        %1932 = vmatpush2.bf16.msra.mxu0 0
        %1933 = vmatprep.subr.bf16.mxu0 0
        %1934 = vmatpush2.bf16.msra.mxu0 0
        %1935 = vmatprep.subr.bf16.mxu0 0
        %1936 = vmatpush2.bf16.msra.mxu0 0
        %1937 = vmatprep.subr.bf16.mxu0 0
        %1938 = vmatpush2.bf16.msra.mxu0 0
        %1939 = vmatprep.subr.bf16.mxu0 0
        %1940 = vmatpush2.bf16.msra.mxu0 0
        %1941 = vmatprep.subr.bf16.mxu0 0
        %1942 = vmatpush2.bf16.msra.mxu0 0
        %1943 = vmatprep.subr.bf16.mxu0 0
        %1944 = vmatpush2.bf16.msra.mxu0 0
        %1945 = vmatprep.mubr.bf16.mxu0 0
        %1946 = vmatmul.mubr.bf16.gmra.mxu0 %v1609
        %v1947 = vpop.f32.mrf.mxu0
        %v1948 = vadd.f32 0.0, %v1947
        %v1949 = vpop.f32.mrf.mxu0
        %v1950 = vpop.f32.mrf.mxu0
        %v1951 = vadd.f32 0.0, %v1950
        %v1952 = vpop.f32.mrf.mxu0
        %1953 = vmatprep.mubr.bf16.mxu0 0
        %1954 = vmatmul.mubr.bf16.gmra.mxu0 %v1610
        %v1955 = vpop.f32.mrf.mxu0
        %v1956 = vadd.f32 0.0, %v1955
        %v1957 = vpop.f32.mrf.mxu0
        %v1958 = vpop.f32.mrf.mxu0
        %v1959 = vadd.f32 0.0, %v1958
        %v1960 = vpop.f32.mrf.mxu0
        %1961 = vmatprep.mubr.bf16.mxu0 0
        %1962 = vmatmul.mubr.bf16.gmra.mxu0 %v1611
        %v1963 = vpop.f32.mrf.mxu0
        %v1964 = vadd.f32 0.0, %v1963
        %v1965 = vpop.f32.mrf.mxu0
        %v1966 = vpop.f32.mrf.mxu0
        %v1967 = vadd.f32 0.0, %v1966
        %v1968 = vpop.f32.mrf.mxu0
        %1969 = vmatprep.mubr.bf16.mxu0 0
        %1970 = vmatmul.mubr.bf16.gmra.mxu0 %v1612
        %v1971 = vpop.f32.mrf.mxu0
        %v1972 = vadd.f32 0.0, %v1971
        %v1973 = vpop.f32.mrf.mxu0
        %v1974 = vpop.f32.mrf.mxu0
        %v1975 = vadd.f32 0.0, %v1974
        %v1976 = vpop.f32.mrf.mxu0
        %1977 = vmatprep.mubr.bf16.mxu0 0
        %1978 = vmatmul.mubr.bf16.gmra.mxu0 %v1613
        %v1979 = vpop.f32.mrf.mxu0
        %v1980 = vadd.f32 0.0, %v1979
        %v1981 = vpop.f32.mrf.mxu0
        %v1982 = vpop.f32.mrf.mxu0
        %v1983 = vadd.f32 0.0, %v1982
        %v1984 = vpop.f32.mrf.mxu0
        %1985 = vmatprep.mubr.bf16.mxu0 0
        %1986 = vmatmul.mubr.bf16.gmra.mxu0 %v1614
        %v1987 = vpop.f32.mrf.mxu0
        %v1988 = vadd.f32 0.0, %v1987
        %v1989 = vpop.f32.mrf.mxu0
        %v1990 = vpop.f32.mrf.mxu0
        %v1991 = vadd.f32 0.0, %v1990
        %v1992 = vpop.f32.mrf.mxu0
        %1993 = vmatprep.mubr.bf16.mxu0 0
        %1994 = vmatmul.mubr.bf16.gmra.mxu0 %v1615
        %v1995 = vpop.f32.mrf.mxu0
        %v1996 = vadd.f32 0.0, %v1995
        %v1997 = vpop.f32.mrf.mxu0
        %v1998 = vpop.f32.mrf.mxu0
        %v1999 = vadd.f32 0.0, %v1998
        %v2000 = vpop.f32.mrf.mxu0
        %2001 = vmatprep.mubr.bf16.mxu0 0
        %2002 = vmatmul.mubr.bf16.gmra.mxu0 %v1616
        %v2003 = vpop.f32.mrf.mxu0
        %v2004 = vadd.f32 0.0, %v2003
        %v2005 = vpop.f32.mrf.mxu0
        %v2006 = vpop.f32.mrf.mxu0
        %v2007 = vadd.f32 0.0, %v2006
        %v2008 = vpop.f32.mrf.mxu0
        %2009 = vmatprep.mubr.bf16.mxu0 0
        %2010 = vmatmul.mubr.bf16.gmra.mxu0 %v1617
        %v2011 = vpop.f32.mrf.mxu0
        %v2012 = vadd.f32 0.0, %v2011
        %v2013 = vpop.f32.mrf.mxu0
        %v2014 = vpop.f32.mrf.mxu0
        %v2015 = vadd.f32 0.0, %v2014
        %v2016 = vpop.f32.mrf.mxu0
        %2017 = vmatprep.mubr.bf16.mxu0 0
        %2018 = vmatmul.mubr.bf16.gmra.mxu0 %v1618
        %v2019 = vpop.f32.mrf.mxu0
        %v2020 = vadd.f32 0.0, %v2019
        %v2021 = vpop.f32.mrf.mxu0
        %v2022 = vpop.f32.mrf.mxu0
        %v2023 = vadd.f32 0.0, %v2022
        %v2024 = vpop.f32.mrf.mxu0
        %2025 = vmatprep.mubr.bf16.mxu0 0
        %2026 = vmatmul.mubr.bf16.gmra.mxu0 %v1619
        %v2027 = vpop.f32.mrf.mxu0
        %v2028 = vadd.f32 0.0, %v2027
        %v2029 = vpop.f32.mrf.mxu0
        %v2030 = vpop.f32.mrf.mxu0
        %v2031 = vadd.f32 0.0, %v2030
        %v2032 = vpop.f32.mrf.mxu0
        %2033 = vmatprep.mubr.bf16.mxu0 0
        %2034 = vmatmul.mubr.bf16.gmra.mxu0 %v1620
        %v2035 = vpop.f32.mrf.mxu0
        %v2036 = vadd.f32 0.0, %v2035
        %v2037 = vpop.f32.mrf.mxu0
        %v2038 = vpop.f32.mrf.mxu0
        %v2039 = vadd.f32 0.0, %v2038
        %v2040 = vpop.f32.mrf.mxu0
        %2041 = vmatprep.mubr.bf16.mxu0 0
        %2042 = vmatmul.mubr.bf16.gmra.mxu0 %v1621
        %v2043 = vpop.f32.mrf.mxu0
        %v2044 = vadd.f32 0.0, %v2043
        %v2045 = vpop.f32.mrf.mxu0
        %v2046 = vpop.f32.mrf.mxu0
        %v2047 = vadd.f32 0.0, %v2046
        %v2048 = vpop.f32.mrf.mxu0
        %2049 = vmatprep.mubr.bf16.mxu0 0
        %2050 = vmatmul.mubr.bf16.gmra.mxu0 %v1622
        %v2051 = vpop.f32.mrf.mxu0
        %v2052 = vadd.f32 0.0, %v2051
        %v2053 = vpop.f32.mrf.mxu0
        %v2054 = vpop.f32.mrf.mxu0
        %v2055 = vadd.f32 0.0, %v2054
        %v2056 = vpop.f32.mrf.mxu0
        %2057 = vmatprep.mubr.bf16.mxu0 0
        %2058 = vmatmul.mubr.bf16.gmra.mxu0 %v1623
        %v2059 = vpop.f32.mrf.mxu0
        %v2060 = vadd.f32 0.0, %v2059
        %v2061 = vpop.f32.mrf.mxu0
        %v2062 = vpop.f32.mrf.mxu0
        %v2063 = vadd.f32 0.0, %v2062
        %v2064 = vpop.f32.mrf.mxu0
        %2065 = vmatprep.mubr.bf16.mxu0 0
        %2066 = vmatmul.mubr.bf16.gmra.mxu0 %v1624
        %v2067 = vpop.f32.mrf.mxu0
        %v2068 = vadd.f32 0.0, %v2067
        %v2069 = vpop.f32.mrf.mxu0
        %v2070 = vpop.f32.mrf.mxu0
        %v2071 = vadd.f32 0.0, %v2070
        %v2072 = vpop.f32.mrf.mxu0
        %2073 = vmatprep.mubr.bf16.mxu0 0
        %2074 = vmatmul.mubr.bf16.gmra.mxu0 %v1625
        %v2075 = vpop.f32.mrf.mxu0
        %v2076 = vadd.f32 0.0, %v2075
        %v2077 = vpop.f32.mrf.mxu0
        %v2078 = vpop.f32.mrf.mxu0
        %v2079 = vadd.f32 0.0, %v2078
        %v2080 = vpop.f32.mrf.mxu0
        %2081 = vmatprep.mubr.bf16.mxu0 0
        %2082 = vmatmul.mubr.bf16.gmra.mxu0 %v1626
        %v2083 = vpop.f32.mrf.mxu0
        %v2084 = vadd.f32 0.0, %v2083
        %v2085 = vpop.f32.mrf.mxu0
        %v2086 = vpop.f32.mrf.mxu0
        %v2087 = vadd.f32 0.0, %v2086
        %v2088 = vpop.f32.mrf.mxu0
        %2089 = vmatprep.mubr.bf16.mxu0 0
        %2090 = vmatmul.mubr.bf16.gmra.mxu0 %v1627
        %v2091 = vpop.f32.mrf.mxu0
        %v2092 = vadd.f32 0.0, %v2091
        %v2093 = vpop.f32.mrf.mxu0
        %v2094 = vpop.f32.mrf.mxu0
        %v2095 = vadd.f32 0.0, %v2094
        %v2096 = vpop.f32.mrf.mxu0
        %2097 = vmatprep.mubr.bf16.mxu0 0
        %2098 = vmatmul.mubr.bf16.gmra.mxu0 %v1628
        %v2099 = vpop.f32.mrf.mxu0
        %v2100 = vadd.f32 0.0, %v2099
        %v2101 = vpop.f32.mrf.mxu0
        %v2102 = vpop.f32.mrf.mxu0
        %v2103 = vadd.f32 0.0, %v2102
        %v2104 = vpop.f32.mrf.mxu0
        %2105 = vmatprep.mubr.bf16.mxu0 0
        %2106 = vmatmul.mubr.bf16.gmra.mxu0 %v1629
        %v2107 = vpop.f32.mrf.mxu0
        %v2108 = vadd.f32 0.0, %v2107
        %v2109 = vpop.f32.mrf.mxu0
        %v2110 = vpop.f32.mrf.mxu0
        %v2111 = vadd.f32 0.0, %v2110
        %v2112 = vpop.f32.mrf.mxu0
        %2113 = vmatprep.mubr.bf16.mxu0 0
        %2114 = vmatmul.mubr.bf16.gmra.mxu0 %v1630
        %v2115 = vpop.f32.mrf.mxu0
        %v2116 = vadd.f32 0.0, %v2115
        %v2117 = vpop.f32.mrf.mxu0
        %v2118 = vpop.f32.mrf.mxu0
        %v2119 = vadd.f32 0.0, %v2118
        %v2120 = vpop.f32.mrf.mxu0
        %2121 = vmatprep.mubr.bf16.mxu0 0
        %2122 = vmatmul.mubr.bf16.gmra.mxu0 %v1631
        %v2123 = vpop.f32.mrf.mxu0
        %v2124 = vadd.f32 0.0, %v2123
        %v2125 = vpop.f32.mrf.mxu0
        %v2126 = vpop.f32.mrf.mxu0
        %v2127 = vadd.f32 0.0, %v2126
        %v2128 = vpop.f32.mrf.mxu0
        %2129 = vmatprep.mubr.bf16.mxu0 0
        %2130 = vmatmul.mubr.bf16.gmra.mxu0 %v1632
        %v2131 = vpop.f32.mrf.mxu0
        %v2132 = vadd.f32 0.0, %v2131
        %v2133 = vpop.f32.mrf.mxu0
        %v2134 = vpop.f32.mrf.mxu0
        %v2135 = vadd.f32 0.0, %v2134
        %v2136 = vpop.f32.mrf.mxu0
        %2137 = vmatprep.mubr.bf16.mxu0 0
        %2138 = vmatmul.mubr.bf16.gmra.mxu0 %v1633
        %v2139 = vpop.f32.mrf.mxu0
        %v2140 = vadd.f32 0.0, %v2139
        %v2141 = vpop.f32.mrf.mxu0
        %v2142 = vpop.f32.mrf.mxu0
        %v2143 = vadd.f32 0.0, %v2142
        %v2144 = vpop.f32.mrf.mxu0
        %2145 = vmatprep.mubr.bf16.mxu0 0
        %2146 = vmatmul.mubr.bf16.gmra.mxu0 %v1634
        %v2147 = vpop.f32.mrf.mxu0
        %v2148 = vadd.f32 0.0, %v2147
        %v2149 = vpop.f32.mrf.mxu0
        %v2150 = vpop.f32.mrf.mxu0
        %v2151 = vadd.f32 0.0, %v2150
        %v2152 = vpop.f32.mrf.mxu0
        %2153 = vmatprep.mubr.bf16.mxu0 0
        %2154 = vmatmul.mubr.bf16.gmra.mxu0 %v1635
        %v2155 = vpop.f32.mrf.mxu0
        %v2156 = vadd.f32 0.0, %v2155
        %v2157 = vpop.f32.mrf.mxu0
        %v2158 = vpop.f32.mrf.mxu0
        %v2159 = vadd.f32 0.0, %v2158
        %v2160 = vpop.f32.mrf.mxu0
        %2161 = vmatprep.mubr.bf16.mxu0 0
        %2162 = vmatmul.mubr.bf16.gmra.mxu0 %v1636
        %v2163 = vpop.f32.mrf.mxu0
        %v2164 = vadd.f32 0.0, %v2163
        %v2165 = vpop.f32.mrf.mxu0
        %v2166 = vpop.f32.mrf.mxu0
        %v2167 = vadd.f32 0.0, %v2166
        %v2168 = vpop.f32.mrf.mxu0
        %2169 = vmatprep.mubr.bf16.mxu0 0
        %2170 = vmatmul.mubr.bf16.gmra.mxu0 %v1637
        %v2171 = vpop.f32.mrf.mxu0
        %v2172 = vadd.f32 0.0, %v2171
        %v2173 = vpop.f32.mrf.mxu0
        %v2174 = vpop.f32.mrf.mxu0
        %v2175 = vadd.f32 0.0, %v2174
        %v2176 = vpop.f32.mrf.mxu0
        %2177 = vmatprep.mubr.bf16.mxu0 0
        %2178 = vmatmul.mubr.bf16.gmra.mxu0 %v1638
        %v2179 = vpop.f32.mrf.mxu0
        %v2180 = vadd.f32 0.0, %v2179
        %v2181 = vpop.f32.mrf.mxu0
        %v2182 = vpop.f32.mrf.mxu0
        %v2183 = vadd.f32 0.0, %v2182
        %v2184 = vpop.f32.mrf.mxu0
        %2185 = vmatprep.mubr.bf16.mxu0 0
        %2186 = vmatmul.mubr.bf16.gmra.mxu0 %v1639
        %v2187 = vpop.f32.mrf.mxu0
        %v2188 = vadd.f32 0.0, %v2187
        %v2189 = vpop.f32.mrf.mxu0
        %v2190 = vpop.f32.mrf.mxu0
        %v2191 = vadd.f32 0.0, %v2190
        %v2192 = vpop.f32.mrf.mxu0
        %2193 = vmatprep.mubr.bf16.mxu0 0
        %2194 = vmatmul.mubr.bf16.gmra.mxu0 %v1640
        %v2195 = vpop.f32.mrf.mxu0
        %v2196 = vadd.f32 0.0, %v2195
        %v2197 = vpop.f32.mrf.mxu0
        %v2198 = vpop.f32.mrf.mxu0
        %v2199 = vadd.f32 0.0, %v2198
        %v2200 = vpop.f32.mrf.mxu0
        %2201 = vmatprep.mubr.bf16.mxu0 0
        %2202 = vmatmul.mubr.bf16.gmra.mxu0 %v1641
        %v2203 = vpop.f32.mrf.mxu0
        %v2204 = vadd.f32 0.0, %v2203
        %v2205 = vpop.f32.mrf.mxu0
        %v2206 = vpop.f32.mrf.mxu0
        %v2207 = vadd.f32 0.0, %v2206
        %v2208 = vpop.f32.mrf.mxu0
        %2209 = vmatprep.mubr.bf16.mxu0 0
        %2210 = vmatmul.mubr.bf16.gmra.mxu0 %v1642
        %v2211 = vpop.f32.mrf.mxu0
        %v2212 = vadd.f32 0.0, %v2211
        %v2213 = vpop.f32.mrf.mxu0
        %v2214 = vpop.f32.mrf.mxu0
        %v2215 = vadd.f32 0.0, %v2214
        %v2216 = vpop.f32.mrf.mxu0
        %2217 = vmatprep.mubr.bf16.mxu0 0
        %2218 = vmatmul.mubr.bf16.gmra.mxu0 %v1643
        %v2219 = vpop.f32.mrf.mxu0
        %v2220 = vadd.f32 0.0, %v2219
        %v2221 = vpop.f32.mrf.mxu0
        %v2222 = vpop.f32.mrf.mxu0
        %v2223 = vadd.f32 0.0, %v2222
        %v2224 = vpop.f32.mrf.mxu0
        %2225 = vmatprep.mubr.bf16.mxu0 0
        %2226 = vmatmul.mubr.bf16.gmra.mxu0 %v1644
        %v2227 = vpop.f32.mrf.mxu0
        %v2228 = vadd.f32 0.0, %v2227
        %v2229 = vpop.f32.mrf.mxu0
        %v2230 = vpop.f32.mrf.mxu0
        %v2231 = vadd.f32 0.0, %v2230
        %v2232 = vpop.f32.mrf.mxu0
        %2233 = vmatprep.mubr.bf16.mxu0 0
        %2234 = vmatmul.mubr.bf16.gmra.mxu0 %v1645
        %v2235 = vpop.f32.mrf.mxu0
        %v2236 = vadd.f32 0.0, %v2235
        %v2237 = vpop.f32.mrf.mxu0
        %v2238 = vpop.f32.mrf.mxu0
        %v2239 = vadd.f32 0.0, %v2238
        %v2240 = vpop.f32.mrf.mxu0
        %2241 = vmatprep.mubr.bf16.mxu0 0
        %2242 = vmatmul.mubr.bf16.gmra.mxu0 %v1646
        %v2243 = vpop.f32.mrf.mxu0
        %v2244 = vadd.f32 0.0, %v2243
        %v2245 = vpop.f32.mrf.mxu0
        %v2246 = vpop.f32.mrf.mxu0
        %v2247 = vadd.f32 0.0, %v2246
        %v2248 = vpop.f32.mrf.mxu0
        %2249 = vmatprep.mubr.bf16.mxu0 0
        %2250 = vmatmul.mubr.bf16.gmra.mxu0 %v1647
        %v2251 = vpop.f32.mrf.mxu0
        %v2252 = vadd.f32 0.0, %v2251
        %v2253 = vpop.f32.mrf.mxu0
        %v2254 = vpop.f32.mrf.mxu0
        %v2255 = vadd.f32 0.0, %v2254
        %v2256 = vpop.f32.mrf.mxu0
        %2257 = vmatprep.mubr.bf16.mxu0 0
        %2258 = vmatmul.mubr.bf16.gmra.mxu0 %v1648
        %v2259 = vpop.f32.mrf.mxu0
        %v2260 = vadd.f32 0.0, %v2259
        %v2261 = vpop.f32.mrf.mxu0
        %v2262 = vpop.f32.mrf.mxu0
        %v2263 = vadd.f32 0.0, %v2262
        %v2264 = vpop.f32.mrf.mxu0
        %2265 = vmatprep.mubr.bf16.mxu0 0
        %2266 = vmatmul.mubr.bf16.gmra.mxu0 %v1649
        %v2267 = vpop.f32.mrf.mxu0
        %v2268 = vadd.f32 0.0, %v2267
        %v2269 = vpop.f32.mrf.mxu0
        %v2270 = vpop.f32.mrf.mxu0
        %v2271 = vadd.f32 0.0, %v2270
        %v2272 = vpop.f32.mrf.mxu0
        %2273 = vmatprep.mubr.bf16.mxu0 0
        %2274 = vmatmul.mubr.bf16.gmra.mxu0 %v1650
        %v2275 = vpop.f32.mrf.mxu0
        %v2276 = vadd.f32 0.0, %v2275
        %v2277 = vpop.f32.mrf.mxu0
        %v2278 = vpop.f32.mrf.mxu0
        %v2279 = vadd.f32 0.0, %v2278
        %v2280 = vpop.f32.mrf.mxu0
        %2281 = vmatprep.mubr.bf16.mxu0 0
        %2282 = vmatmul.mubr.bf16.gmra.mxu0 %v1651
        %v2283 = vpop.f32.mrf.mxu0
        %v2284 = vadd.f32 0.0, %v2283
        %v2285 = vpop.f32.mrf.mxu0
        %v2286 = vpop.f32.mrf.mxu0
        %v2287 = vadd.f32 0.0, %v2286
        %v2288 = vpop.f32.mrf.mxu0
        %2289 = vmatprep.mubr.bf16.mxu0 0
        %2290 = vmatmul.mubr.bf16.gmra.mxu0 %v1652
        %v2291 = vpop.f32.mrf.mxu0
        %v2292 = vadd.f32 0.0, %v2291
        %v2293 = vpop.f32.mrf.mxu0
        %v2294 = vpop.f32.mrf.mxu0
        %v2295 = vadd.f32 0.0, %v2294
        %v2296 = vpop.f32.mrf.mxu0
        %2297 = vmatprep.mubr.bf16.mxu0 0
        %2298 = vmatmul.mubr.bf16.gmra.mxu0 %v1653
        %v2299 = vpop.f32.mrf.mxu0
        %v2300 = vadd.f32 0.0, %v2299
        %v2301 = vpop.f32.mrf.mxu0
        %v2302 = vpop.f32.mrf.mxu0
        %v2303 = vadd.f32 0.0, %v2302
        %v2304 = vpop.f32.mrf.mxu0
        %2305 = vmatprep.mubr.bf16.mxu0 0
        %2306 = vmatmul.mubr.bf16.gmra.mxu0 %v1654
        %v2307 = vpop.f32.mrf.mxu0
        %v2308 = vadd.f32 0.0, %v2307
        %v2309 = vpop.f32.mrf.mxu0
        %v2310 = vpop.f32.mrf.mxu0
        %v2311 = vadd.f32 0.0, %v2310
        %v2312 = vpop.f32.mrf.mxu0
        %2313 = vmatprep.mubr.bf16.mxu0 0
        %2314 = vmatmul.mubr.bf16.gmra.mxu0 %v1655
        %v2315 = vpop.f32.mrf.mxu0
        %v2316 = vadd.f32 0.0, %v2315
        %v2317 = vpop.f32.mrf.mxu0
        %v2318 = vpop.f32.mrf.mxu0
        %v2319 = vadd.f32 0.0, %v2318
        %v2320 = vpop.f32.mrf.mxu0
        %2321 = vmatprep.mubr.bf16.mxu0 0
        %2322 = vmatmul.mubr.bf16.gmra.mxu0 %v1656
        %v2323 = vpop.f32.mrf.mxu0
        %v2324 = vadd.f32 0.0, %v2323
        %v2325 = vpop.f32.mrf.mxu0
        %v2326 = vpop.f32.mrf.mxu0
        %v2327 = vadd.f32 0.0, %v2326
        %v2328 = vpop.f32.mrf.mxu0
        %2329 = vmatprep.mubr.bf16.mxu0 0
        %2330 = vmatmul.mubr.bf16.gmra.mxu0 %v1657
        %v2331 = vpop.f32.mrf.mxu0
        %v2332 = vadd.f32 0.0, %v2331
        %v2333 = vpop.f32.mrf.mxu0
        %v2334 = vpop.f32.mrf.mxu0
        %v2335 = vadd.f32 0.0, %v2334
        %v2336 = vpop.f32.mrf.mxu0
        %2337 = vmatprep.mubr.bf16.mxu0 0
        %2338 = vmatmul.mubr.bf16.gmra.mxu0 %v1658
        %v2339 = vpop.f32.mrf.mxu0
        %v2340 = vadd.f32 0.0, %v2339
        %v2341 = vpop.f32.mrf.mxu0
        %v2342 = vpop.f32.mrf.mxu0
        %v2343 = vadd.f32 0.0, %v2342
        %v2344 = vpop.f32.mrf.mxu0
        %2345 = vmatprep.mubr.bf16.mxu0 0
        %2346 = vmatmul.mubr.bf16.gmra.mxu0 %v1659
        %v2347 = vpop.f32.mrf.mxu0
        %v2348 = vadd.f32 0.0, %v2347
        %v2349 = vpop.f32.mrf.mxu0
        %v2350 = vpop.f32.mrf.mxu0
        %v2351 = vadd.f32 0.0, %v2350
        %v2352 = vpop.f32.mrf.mxu0
        %2353 = vmatprep.mubr.bf16.mxu0 0
        %2354 = vmatmul.mubr.bf16.gmra.mxu0 %v1660
        %v2355 = vpop.f32.mrf.mxu0
        %v2356 = vadd.f32 0.0, %v2355
        %v2357 = vpop.f32.mrf.mxu0
        %v2358 = vpop.f32.mrf.mxu0
        %v2359 = vadd.f32 0.0, %v2358
        %v2360 = vpop.f32.mrf.mxu0
        %2361 = vmatprep.mubr.bf16.mxu0 0
        %2362 = vmatmul.mubr.bf16.gmra.mxu0 %v1661
        %v2363 = vpop.f32.mrf.mxu0
        %v2364 = vadd.f32 0.0, %v2363
        %v2365 = vpop.f32.mrf.mxu0
        %v2366 = vpop.f32.mrf.mxu0
        %v2367 = vadd.f32 0.0, %v2366
        %v2368 = vpop.f32.mrf.mxu0
        %2369 = vmatprep.mubr.bf16.mxu0 0
        %2370 = vmatmul.mubr.bf16.gmra.mxu0 %v1662
        %v2371 = vpop.f32.mrf.mxu0
        %v2372 = vadd.f32 0.0, %v2371
        %v2373 = vpop.f32.mrf.mxu0
        %v2374 = vpop.f32.mrf.mxu0
        %v2375 = vadd.f32 0.0, %v2374
        %v2376 = vpop.f32.mrf.mxu0
        %2377 = vmatprep.mubr.bf16.mxu0 0
        %2378 = vmatmul.mubr.bf16.gmra.mxu0 %v1663
        %v2379 = vpop.f32.mrf.mxu0
        %v2380 = vadd.f32 0.0, %v2379
        %v2381 = vpop.f32.mrf.mxu0
        %v2382 = vpop.f32.mrf.mxu0
        %v2383 = vadd.f32 0.0, %v2382
        %v2384 = vpop.f32.mrf.mxu0
        %2385 = vmatprep.mubr.bf16.mxu0 0
        %2386 = vmatmul.mubr.bf16.gmra.mxu0 %v1664
        %v2387 = vpop.f32.mrf.mxu0
        %v2388 = vadd.f32 0.0, %v2387
        %v2389 = vpop.f32.mrf.mxu0
        %v2390 = vpop.f32.mrf.mxu0
        %v2391 = vadd.f32 0.0, %v2390
        %v2392 = vpop.f32.mrf.mxu0
        %2393 = vmatprep.mubr.bf16.mxu0 0
        %2394 = vmatmul.mubr.bf16.gmra.mxu0 %v1665
        %v2395 = vpop.f32.mrf.mxu0
        %v2396 = vadd.f32 0.0, %v2395
        %v2397 = vpop.f32.mrf.mxu0
        %v2398 = vpop.f32.mrf.mxu0
        %v2399 = vadd.f32 0.0, %v2398
        %v2400 = vpop.f32.mrf.mxu0
        %2401 = vmatprep.mubr.bf16.mxu0 0
        %2402 = vmatmul.mubr.bf16.gmra.mxu0 %v1666
        %v2403 = vpop.f32.mrf.mxu0
        %v2404 = vadd.f32 0.0, %v2403
        %v2405 = vpop.f32.mrf.mxu0
        %v2406 = vpop.f32.mrf.mxu0
        %v2407 = vadd.f32 0.0, %v2406
        %v2408 = vpop.f32.mrf.mxu0
        %2409 = vmatprep.mubr.bf16.mxu0 0
        %2410 = vmatmul.mubr.bf16.gmra.mxu0 %v1667
        %v2411 = vpop.f32.mrf.mxu0
        %v2412 = vadd.f32 0.0, %v2411
        %v2413 = vpop.f32.mrf.mxu0
        %v2414 = vpop.f32.mrf.mxu0
        %v2415 = vadd.f32 0.0, %v2414
        %v2416 = vpop.f32.mrf.mxu0
        %2417 = vmatprep.mubr.bf16.mxu0 0
        %2418 = vmatmul.mubr.bf16.gmra.mxu0 %v1668
        %v2419 = vpop.f32.mrf.mxu0
        %v2420 = vadd.f32 0.0, %v2419
        %v2421 = vpop.f32.mrf.mxu0
        %v2422 = vpop.f32.mrf.mxu0
        %v2423 = vadd.f32 0.0, %v2422
        %v2424 = vpop.f32.mrf.mxu0
        %2425 = vmatprep.mubr.bf16.mxu0 0
        %2426 = vmatmul.mubr.bf16.gmra.mxu0 %v1669
        %v2427 = vpop.f32.mrf.mxu0
        %v2428 = vadd.f32 0.0, %v2427
        %v2429 = vpop.f32.mrf.mxu0
        %v2430 = vpop.f32.mrf.mxu0
        %v2431 = vadd.f32 0.0, %v2430
        %v2432 = vpop.f32.mrf.mxu0
        %2433 = vmatprep.mubr.bf16.mxu0 0
        %2434 = vmatmul.mubr.bf16.gmra.mxu0 %v1670
        %v2435 = vpop.f32.mrf.mxu0
        %v2436 = vadd.f32 0.0, %v2435
        %v2437 = vpop.f32.mrf.mxu0
        %v2438 = vpop.f32.mrf.mxu0
        %v2439 = vadd.f32 0.0, %v2438
        %v2440 = vpop.f32.mrf.mxu0
        %2441 = vmatprep.mubr.bf16.mxu0 0
        %2442 = vmatmul.mubr.bf16.gmra.mxu0 %v1671
        %v2443 = vpop.f32.mrf.mxu0
        %v2444 = vadd.f32 0.0, %v2443
        %v2445 = vpop.f32.mrf.mxu0
        %v2446 = vpop.f32.mrf.mxu0
        %v2447 = vadd.f32 0.0, %v2446
        %v2448 = vpop.f32.mrf.mxu0
        %2449 = vmatprep.mubr.bf16.mxu0 0
        %2450 = vmatmul.mubr.bf16.gmra.mxu0 %v1672
        %v2451 = vpop.f32.mrf.mxu0
        %v2452 = vadd.f32 0.0, %v2451
        %v2453 = vpop.f32.mrf.mxu0
        %v2454 = vpop.f32.mrf.mxu0
        %v2455 = vadd.f32 0.0, %v2454
        %v2456 = vpop.f32.mrf.mxu0
        %2457 = vmatprep.mubr.bf16.mxu0 0
        %2458 = vmatmul.mubr.bf16.gmra.mxu0 %v1673
        %v2459 = vpop.f32.mrf.mxu0
        %v2460 = vadd.f32 0.0, %v2459
        %v2461 = vpop.f32.mrf.mxu0
        %v2462 = vpop.f32.mrf.mxu0
        %v2463 = vadd.f32 0.0, %v2462
        %v2464 = vpop.f32.mrf.mxu0
        %2465 = vmatprep.mubr.bf16.mxu0 0
        %2466 = vmatmul.mubr.bf16.gmra.mxu0 %v1674
        %v2467 = vpop.f32.mrf.mxu0
        %v2468 = vadd.f32 0.0, %v2467
        %v2469 = vpop.f32.mrf.mxu0
        %v2470 = vpop.f32.mrf.mxu0
        %v2471 = vadd.f32 0.0, %v2470
        %v2472 = vpop.f32.mrf.mxu0
        %2473 = vmatprep.mubr.bf16.mxu0 0
        %2474 = vmatmul.mubr.bf16.gmra.mxu0 %v1675
        %v2475 = vpop.f32.mrf.mxu0
        %v2476 = vadd.f32 0.0, %v2475
        %v2477 = vpop.f32.mrf.mxu0
        %v2478 = vpop.f32.mrf.mxu0
        %v2479 = vadd.f32 0.0, %v2478
        %v2480 = vpop.f32.mrf.mxu0
        %2481 = vmatprep.mubr.bf16.mxu0 0
        %2482 = vmatmul.mubr.bf16.gmra.mxu0 %v1676
        %v2483 = vpop.f32.mrf.mxu0
        %v2484 = vadd.f32 0.0, %v2483
        %v2485 = vpop.f32.mrf.mxu0
        %v2486 = vpop.f32.mrf.mxu0
        %v2487 = vadd.f32 0.0, %v2486
        %v2488 = vpop.f32.mrf.mxu0
        %2489 = vmatprep.mubr.bf16.mxu0 0
        %2490 = vmatmul.mubr.bf16.gmra.mxu0 %v1677
        %v2491 = vpop.f32.mrf.mxu0
        %v2492 = vadd.f32 0.0, %v2491
        %v2493 = vpop.f32.mrf.mxu0
        %v2494 = vpop.f32.mrf.mxu0
        %v2495 = vadd.f32 0.0, %v2494
        %v2496 = vpop.f32.mrf.mxu0
        %2497 = vmatprep.mubr.bf16.mxu0 0
        %2498 = vmatmul.mubr.bf16.gmra.mxu0 %v1678
        %v2499 = vpop.f32.mrf.mxu0
        %v2500 = vadd.f32 0.0, %v2499
        %v2501 = vpop.f32.mrf.mxu0
        %v2502 = vpop.f32.mrf.mxu0
        %v2503 = vadd.f32 0.0, %v2502
        %v2504 = vpop.f32.mrf.mxu0
        %2505 = vmatprep.mubr.bf16.mxu0 0
        %2506 = vmatmul.mubr.bf16.gmra.mxu0 %v1679
        %v2507 = vpop.f32.mrf.mxu0
        %v2508 = vadd.f32 0.0, %v2507
        %v2509 = vpop.f32.mrf.mxu0
        %v2510 = vpop.f32.mrf.mxu0
        %v2511 = vadd.f32 0.0, %v2510
        %v2512 = vpop.f32.mrf.mxu0
        %2513 = vmatprep.mubr.bf16.mxu0 0
        %2514 = vmatmul.mubr.bf16.gmra.mxu0 %v1680
        %v2515 = vpop.f32.mrf.mxu0
        %v2516 = vadd.f32 0.0, %v2515
        %v2517 = vpop.f32.mrf.mxu0
        %v2518 = vpop.f32.mrf.mxu0
        %v2519 = vadd.f32 0.0, %v2518
        %v2520 = vpop.f32.mrf.mxu0
        %2521 = vmatprep.mubr.bf16.mxu0 0
        %2522 = vmatmul.mubr.bf16.gmra.mxu0 %v1681
        %v2523 = vpop.f32.mrf.mxu0
        %v2524 = vadd.f32 0.0, %v2523
        %v2525 = vpop.f32.mrf.mxu0
        %v2526 = vpop.f32.mrf.mxu0
        %v2527 = vadd.f32 0.0, %v2526
        %v2528 = vpop.f32.mrf.mxu0
        %2529 = vmatprep.mubr.bf16.mxu0 0
        %2530 = vmatmul.mubr.bf16.gmra.mxu0 %v1682
        %v2531 = vpop.f32.mrf.mxu0
        %v2532 = vadd.f32 0.0, %v2531
        %v2533 = vpop.f32.mrf.mxu0
        %v2534 = vpop.f32.mrf.mxu0
        %v2535 = vadd.f32 0.0, %v2534
        %v2536 = vpop.f32.mrf.mxu0
        %2537 = vmatprep.mubr.bf16.mxu0 0
        %2538 = vmatmul.mubr.bf16.gmra.mxu0 %v1683
        %v2539 = vpop.f32.mrf.mxu0
        %v2540 = vadd.f32 0.0, %v2539
        %v2541 = vpop.f32.mrf.mxu0
        %v2542 = vpop.f32.mrf.mxu0
        %v2543 = vadd.f32 0.0, %v2542
        %v2544 = vpop.f32.mrf.mxu0
        %2545 = vmatprep.mubr.bf16.mxu0 0
        %2546 = vmatmul.mubr.bf16.gmra.mxu0 %v1684
        %v2547 = vpop.f32.mrf.mxu0
        %v2548 = vadd.f32 0.0, %v2547
        %v2549 = vpop.f32.mrf.mxu0
        %v2550 = vpop.f32.mrf.mxu0
        %v2551 = vadd.f32 0.0, %v2550
        %v2552 = vpop.f32.mrf.mxu0
        %2553 = vmatprep.mubr.bf16.mxu0 0
        %2554 = vmatmul.mubr.bf16.gmra.mxu0 %v1685
        %v2555 = vpop.f32.mrf.mxu0
        %v2556 = vadd.f32 0.0, %v2555
        %v2557 = vpop.f32.mrf.mxu0
        %v2558 = vpop.f32.mrf.mxu0
        %v2559 = vadd.f32 0.0, %v2558
        %v2560 = vpop.f32.mrf.mxu0
        %2561 = vmatprep.mubr.bf16.mxu0 0
        %2562 = vmatmul.mubr.bf16.gmra.mxu0 %v1686
        %v2563 = vpop.f32.mrf.mxu0
        %v2564 = vadd.f32 0.0, %v2563
        %v2565 = vpop.f32.mrf.mxu0
        %v2566 = vpop.f32.mrf.mxu0
        %v2567 = vadd.f32 0.0, %v2566
        %v2568 = vpop.f32.mrf.mxu0
        %2569 = vmatprep.mubr.bf16.mxu0 0
        %2570 = vmatmul.mubr.bf16.gmra.mxu0 %v1687
        %v2571 = vpop.f32.mrf.mxu0
        %v2572 = vadd.f32 0.0, %v2571
        %v2573 = vpop.f32.mrf.mxu0
        %v2574 = vpop.f32.mrf.mxu0
        %v2575 = vadd.f32 0.0, %v2574
        %v2576 = vpop.f32.mrf.mxu0
        %2577 = vmatprep.mubr.bf16.mxu0 0
        %2578 = vmatmul.mubr.bf16.gmra.mxu0 %v1688
        %v2579 = vpop.f32.mrf.mxu0
        %v2580 = vadd.f32 0.0, %v2579
        %v2581 = vpop.f32.mrf.mxu0
        %v2582 = vpop.f32.mrf.mxu0
        %v2583 = vadd.f32 0.0, %v2582
        %v2584 = vpop.f32.mrf.mxu0
        %2585 = vmatprep.mubr.bf16.mxu0 0
        %2586 = vmatmul.mubr.bf16.gmra.mxu0 %v1689
        %v2587 = vpop.f32.mrf.mxu0
        %v2588 = vadd.f32 0.0, %v2587
        %v2589 = vpop.f32.mrf.mxu0
        %v2590 = vpop.f32.mrf.mxu0
        %v2591 = vadd.f32 0.0, %v2590
        %v2592 = vpop.f32.mrf.mxu0
        %2593 = vmatprep.mubr.bf16.mxu0 0
        %2594 = vmatmul.mubr.bf16.gmra.mxu0 %v1690
        %v2595 = vpop.f32.mrf.mxu0
        %v2596 = vadd.f32 0.0, %v2595
        %v2597 = vpop.f32.mrf.mxu0
        %v2598 = vpop.f32.mrf.mxu0
        %v2599 = vadd.f32 0.0, %v2598
        %v2600 = vpop.f32.mrf.mxu0
        %2601 = vmatprep.mubr.bf16.mxu0 0
        %2602 = vmatmul.mubr.bf16.gmra.mxu0 %v1691
        %v2603 = vpop.f32.mrf.mxu0
        %v2604 = vadd.f32 0.0, %v2603
        %v2605 = vpop.f32.mrf.mxu0
        %v2606 = vpop.f32.mrf.mxu0
        %v2607 = vadd.f32 0.0, %v2606
        %v2608 = vpop.f32.mrf.mxu0
        %2609 = vmatprep.mubr.bf16.mxu0 0
        %2610 = vmatmul.mubr.bf16.gmra.mxu0 %v1692
        %v2611 = vpop.f32.mrf.mxu0
        %v2612 = vadd.f32 0.0, %v2611
        %v2613 = vpop.f32.mrf.mxu0
        %v2614 = vpop.f32.mrf.mxu0
        %v2615 = vadd.f32 0.0, %v2614
        %v2616 = vpop.f32.mrf.mxu0
        %2617 = vmatprep.mubr.bf16.mxu0 0
        %2618 = vmatmul.mubr.bf16.gmra.mxu0 %v1693
        %v2619 = vpop.f32.mrf.mxu0
        %v2620 = vadd.f32 0.0, %v2619
        %v2621 = vpop.f32.mrf.mxu0
        %v2622 = vpop.f32.mrf.mxu0
        %v2623 = vadd.f32 0.0, %v2622
        %v2624 = vpop.f32.mrf.mxu0
        %2625 = vmatprep.mubr.bf16.mxu0 0
        %2626 = vmatmul.mubr.bf16.gmra.mxu0 %v1694
        %v2627 = vpop.f32.mrf.mxu0
        %v2628 = vadd.f32 0.0, %v2627
        %v2629 = vpop.f32.mrf.mxu0
        %v2630 = vpop.f32.mrf.mxu0
        %v2631 = vadd.f32 0.0, %v2630
        %v2632 = vpop.f32.mrf.mxu0
        %2633 = vmatprep.mubr.bf16.mxu0 0
        %2634 = vmatmul.mubr.bf16.gmra.mxu0 %v1695
        %v2635 = vpop.f32.mrf.mxu0
        %v2636 = vadd.f32 0.0, %v2635
        %v2637 = vpop.f32.mrf.mxu0
        %v2638 = vpop.f32.mrf.mxu0
        %v2639 = vadd.f32 0.0, %v2638
        %v2640 = vpop.f32.mrf.mxu0
        %2641 = vmatprep.mubr.bf16.mxu0 0
        %2642 = vmatmul.mubr.bf16.gmra.mxu0 %v1696
        %v2643 = vpop.f32.mrf.mxu0
        %v2644 = vadd.f32 0.0, %v2643
        %v2645 = vpop.f32.mrf.mxu0
        %v2646 = vpop.f32.mrf.mxu0
        %v2647 = vadd.f32 0.0, %v2646
        %v2648 = vpop.f32.mrf.mxu0
        %2649 = vmatprep.mubr.bf16.mxu0 0
        %2650 = vmatmul.mubr.bf16.gmra.mxu0 %v1697
        %v2651 = vpop.f32.mrf.mxu0
        %v2652 = vadd.f32 0.0, %v2651
        %v2653 = vpop.f32.mrf.mxu0
        %v2654 = vpop.f32.mrf.mxu0
        %v2655 = vadd.f32 0.0, %v2654
        %v2656 = vpop.f32.mrf.mxu0
        %2657 = vmatprep.mubr.bf16.mxu0 0
        %2658 = vmatmul.mubr.bf16.gmra.mxu0 %v1698
        %v2659 = vpop.f32.mrf.mxu0
        %v2660 = vadd.f32 0.0, %v2659
        %v2661 = vpop.f32.mrf.mxu0
        %v2662 = vpop.f32.mrf.mxu0
        %v2663 = vadd.f32 0.0, %v2662
        %v2664 = vpop.f32.mrf.mxu0
        %2665 = vmatprep.mubr.bf16.mxu0 0
        %2666 = vmatmul.mubr.bf16.gmra.mxu0 %v1699
        %v2667 = vpop.f32.mrf.mxu0
        %v2668 = vadd.f32 0.0, %v2667
        %v2669 = vpop.f32.mrf.mxu0
        %v2670 = vpop.f32.mrf.mxu0
        %v2671 = vadd.f32 0.0, %v2670
        %v2672 = vpop.f32.mrf.mxu0
        %2673 = vmatprep.mubr.bf16.mxu0 0
        %2674 = vmatmul.mubr.bf16.gmra.mxu0 %v1700
        %v2675 = vpop.f32.mrf.mxu0
        %v2676 = vadd.f32 0.0, %v2675
        %v2677 = vpop.f32.mrf.mxu0
        %v2678 = vpop.f32.mrf.mxu0
        %v2679 = vadd.f32 0.0, %v2678
        %v2680 = vpop.f32.mrf.mxu0
        %2681 = vmatprep.mubr.bf16.mxu0 0
        %2682 = vmatmul.mubr.bf16.gmra.mxu0 %v1701
        %v2683 = vpop.f32.mrf.mxu0
        %v2684 = vadd.f32 0.0, %v2683
        %v2685 = vpop.f32.mrf.mxu0
        %v2686 = vpop.f32.mrf.mxu0
        %v2687 = vadd.f32 0.0, %v2686
        %v2688 = vpop.f32.mrf.mxu0
        %2689 = vmatprep.mubr.bf16.mxu0 0
        %2690 = vmatmul.mubr.bf16.gmra.mxu0 %v1702
        %v2691 = vpop.f32.mrf.mxu0
        %v2692 = vadd.f32 0.0, %v2691
        %v2693 = vpop.f32.mrf.mxu0
        %v2694 = vpop.f32.mrf.mxu0
        %v2695 = vadd.f32 0.0, %v2694
        %v2696 = vpop.f32.mrf.mxu0
        %2697 = vmatprep.mubr.bf16.mxu0 0
        %2698 = vmatmul.mubr.bf16.gmra.mxu0 %v1703
        %v2699 = vpop.f32.mrf.mxu0
        %v2700 = vadd.f32 0.0, %v2699
        %v2701 = vpop.f32.mrf.mxu0
        %v2702 = vpop.f32.mrf.mxu0
        %v2703 = vadd.f32 0.0, %v2702
        %v2704 = vpop.f32.mrf.mxu0
        %2705 = vmatprep.mubr.bf16.mxu0 0
        %2706 = vmatmul.mubr.bf16.gmra.mxu0 %v1704
        %v2707 = vpop.f32.mrf.mxu0
        %v2708 = vadd.f32 0.0, %v2707
        %v2709 = vpop.f32.mrf.mxu0
        %v2710 = vpop.f32.mrf.mxu0
        %v2711 = vadd.f32 0.0, %v2710
        %v2712 = vpop.f32.mrf.mxu0
        %2713 = vmatprep.mubr.bf16.mxu0 0
        %2714 = vmatmul.mubr.bf16.gmra.mxu0 %v1705
        %v2715 = vpop.f32.mrf.mxu0
        %v2716 = vadd.f32 0.0, %v2715
        %v2717 = vpop.f32.mrf.mxu0
        %v2718 = vpop.f32.mrf.mxu0
        %v2719 = vadd.f32 0.0, %v2718
        %v2720 = vpop.f32.mrf.mxu0
        %2721 = vmatprep.mubr.bf16.mxu0 0
        %2722 = vmatmul.mubr.bf16.gmra.mxu0 %v1706
        %v2723 = vpop.f32.mrf.mxu0
        %v2724 = vadd.f32 0.0, %v2723
        %v2725 = vpop.f32.mrf.mxu0
        %v2726 = vpop.f32.mrf.mxu0
        %v2727 = vadd.f32 0.0, %v2726
        %v2728 = vpop.f32.mrf.mxu0
        %2729 = vmatprep.mubr.bf16.mxu0 0
        %2730 = vmatmul.mubr.bf16.gmra.mxu0 %v1707
        %v2731 = vpop.f32.mrf.mxu0
        %v2732 = vadd.f32 0.0, %v2731
        %v2733 = vpop.f32.mrf.mxu0
        %v2734 = vpop.f32.mrf.mxu0
        %v2735 = vadd.f32 0.0, %v2734
        %v2736 = vpop.f32.mrf.mxu0
        %2737 = vmatprep.mubr.bf16.mxu0 0
        %2738 = vmatmul.mubr.bf16.gmra.mxu0 %v1708
        %v2739 = vpop.f32.mrf.mxu0
        %v2740 = vadd.f32 0.0, %v2739
        %v2741 = vpop.f32.mrf.mxu0
        %v2742 = vpop.f32.mrf.mxu0
        %v2743 = vadd.f32 0.0, %v2742
        %v2744 = vpop.f32.mrf.mxu0
        %2745 = vmatprep.mubr.bf16.mxu0 0
        %2746 = vmatmul.mubr.bf16.gmra.mxu0 %v1709
        %v2747 = vpop.f32.mrf.mxu0
        %v2748 = vadd.f32 0.0, %v2747
        %v2749 = vpop.f32.mrf.mxu0
        %v2750 = vpop.f32.mrf.mxu0
        %v2751 = vadd.f32 0.0, %v2750
        %v2752 = vpop.f32.mrf.mxu0
        %2753 = vmatprep.mubr.bf16.mxu0 0
        %2754 = vmatmul.mubr.bf16.gmra.mxu0 %v1710
        %v2755 = vpop.f32.mrf.mxu0
        %v2756 = vadd.f32 0.0, %v2755
        %v2757 = vpop.f32.mrf.mxu0
        %v2758 = vpop.f32.mrf.mxu0
        %v2759 = vadd.f32 0.0, %v2758
        %v2760 = vpop.f32.mrf.mxu0
        %2761 = vmatprep.mubr.bf16.mxu0 0
        %2762 = vmatmul.mubr.bf16.gmra.mxu0 %v1711
        %v2763 = vpop.f32.mrf.mxu0
        %v2764 = vadd.f32 0.0, %v2763
        %v2765 = vpop.f32.mrf.mxu0
        %v2766 = vpop.f32.mrf.mxu0
        %v2767 = vadd.f32 0.0, %v2766
        %v2768 = vpop.f32.mrf.mxu0
        %2769 = vmatprep.mubr.bf16.mxu0 0
        %2770 = vmatmul.mubr.bf16.gmra.mxu0 %v1712
        %v2771 = vpop.f32.mrf.mxu0
        %v2772 = vadd.f32 0.0, %v2771
        %v2773 = vpop.f32.mrf.mxu0
        %v2774 = vpop.f32.mrf.mxu0
        %v2775 = vadd.f32 0.0, %v2774
        %v2776 = vpop.f32.mrf.mxu0
        %2777 = vmatprep.mubr.bf16.mxu0 0
        %2778 = vmatmul.mubr.bf16.gmra.mxu0 %v1713
        %v2779 = vpop.f32.mrf.mxu0
        %v2780 = vadd.f32 0.0, %v2779
        %v2781 = vpop.f32.mrf.mxu0
        %v2782 = vpop.f32.mrf.mxu0
        %v2783 = vadd.f32 0.0, %v2782
        %v2784 = vpop.f32.mrf.mxu0
        %2785 = vmatprep.mubr.bf16.mxu0 0
        %2786 = vmatmul.mubr.bf16.gmra.mxu0 %v1714
        %v2787 = vpop.f32.mrf.mxu0
        %v2788 = vadd.f32 0.0, %v2787
        %v2789 = vpop.f32.mrf.mxu0
        %v2790 = vpop.f32.mrf.mxu0
        %v2791 = vadd.f32 0.0, %v2790
        %v2792 = vpop.f32.mrf.mxu0
        %2793 = vmatprep.mubr.bf16.mxu0 0
        %2794 = vmatmul.mubr.bf16.gmra.mxu0 %v1715
        %v2795 = vpop.f32.mrf.mxu0
        %v2796 = vadd.f32 0.0, %v2795
        %v2797 = vpop.f32.mrf.mxu0
        %v2798 = vpop.f32.mrf.mxu0
        %v2799 = vadd.f32 0.0, %v2798
        %v2800 = vpop.f32.mrf.mxu0
        %2801 = vmatprep.mubr.bf16.mxu0 0
        %2802 = vmatmul.mubr.bf16.gmra.mxu0 %v1716
        %v2803 = vpop.f32.mrf.mxu0
        %v2804 = vadd.f32 0.0, %v2803
        %v2805 = vpop.f32.mrf.mxu0
        %v2806 = vpop.f32.mrf.mxu0
        %v2807 = vadd.f32 0.0, %v2806
        %v2808 = vpop.f32.mrf.mxu0
        %2809 = vmatprep.mubr.bf16.mxu0 0
        %2810 = vmatmul.mubr.bf16.gmra.mxu0 %v1717
        %v2811 = vpop.f32.mrf.mxu0
        %v2812 = vadd.f32 0.0, %v2811
        %v2813 = vpop.f32.mrf.mxu0
        %v2814 = vpop.f32.mrf.mxu0
        %v2815 = vadd.f32 0.0, %v2814
        %v2816 = vpop.f32.mrf.mxu0
        %2817 = vmatprep.mubr.bf16.mxu0 0
        %2818 = vmatmul.mubr.bf16.gmra.mxu0 %v1718
        %v2819 = vpop.f32.mrf.mxu0
        %v2820 = vadd.f32 0.0, %v2819
        %v2821 = vpop.f32.mrf.mxu0
        %v2822 = vpop.f32.mrf.mxu0
        %v2823 = vadd.f32 0.0, %v2822
        %v2824 = vpop.f32.mrf.mxu0
        %2825 = vmatprep.mubr.bf16.mxu0 0
        %2826 = vmatmul.mubr.bf16.gmra.mxu0 %v1719
        %v2827 = vpop.f32.mrf.mxu0
        %v2828 = vadd.f32 0.0, %v2827
        %v2829 = vpop.f32.mrf.mxu0
        %v2830 = vpop.f32.mrf.mxu0
        %v2831 = vadd.f32 0.0, %v2830
        %v2832 = vpop.f32.mrf.mxu0
        %2833 = vmatprep.mubr.bf16.mxu0 0
        %2834 = vmatmul.mubr.bf16.gmra.mxu0 %v1720
        %v2835 = vpop.f32.mrf.mxu0
        %v2836 = vadd.f32 0.0, %v2835
        %v2837 = vpop.f32.mrf.mxu0
        %v2838 = vpop.f32.mrf.mxu0
        %v2839 = vadd.f32 0.0, %v2838
        %v2840 = vpop.f32.mrf.mxu0
        %2841 = vmatprep.mubr.bf16.mxu0 0
        %2842 = vmatmul.mubr.bf16.gmra.mxu0 %v1721
        %v2843 = vpop.f32.mrf.mxu0
        %v2844 = vadd.f32 0.0, %v2843
        %v2845 = vpop.f32.mrf.mxu0
        %v2846 = vpop.f32.mrf.mxu0
        %v2847 = vadd.f32 0.0, %v2846
        %v2848 = vpop.f32.mrf.mxu0
        %2849 = vmatprep.mubr.bf16.mxu0 0
        %2850 = vmatmul.mubr.bf16.gmra.mxu0 %v1722
        %v2851 = vpop.f32.mrf.mxu0
        %v2852 = vadd.f32 0.0, %v2851
        %v2853 = vpop.f32.mrf.mxu0
        %v2854 = vpop.f32.mrf.mxu0
        %v2855 = vadd.f32 0.0, %v2854
        %v2856 = vpop.f32.mrf.mxu0
        %2857 = vmatprep.mubr.bf16.mxu0 0
        %2858 = vmatmul.mubr.bf16.gmra.mxu0 %v1723
        %v2859 = vpop.f32.mrf.mxu0
        %v2860 = vadd.f32 0.0, %v2859
        %v2861 = vpop.f32.mrf.mxu0
        %v2862 = vpop.f32.mrf.mxu0
        %v2863 = vadd.f32 0.0, %v2862
        %v2864 = vpop.f32.mrf.mxu0
        %2865 = vmatprep.mubr.bf16.mxu0 0
        %2866 = vmatmul.mubr.bf16.gmra.mxu0 %v1724
        %v2867 = vpop.f32.mrf.mxu0
        %v2868 = vadd.f32 0.0, %v2867
        %v2869 = vpop.f32.mrf.mxu0
        %v2870 = vpop.f32.mrf.mxu0
        %v2871 = vadd.f32 0.0, %v2870
        %v2872 = vpop.f32.mrf.mxu0
        %2873 = vmatprep.mubr.bf16.mxu0 0
        %2874 = vmatmul.mubr.bf16.gmra.mxu0 %v1725
        %v2875 = vpop.f32.mrf.mxu0
        %v2876 = vadd.f32 0.0, %v2875
        %v2877 = vpop.f32.mrf.mxu0
        %v2878 = vpop.f32.mrf.mxu0
        %v2879 = vadd.f32 0.0, %v2878
        %v2880 = vpop.f32.mrf.mxu0
        %2881 = vmatprep.mubr.bf16.mxu0 0
        %2882 = vmatmul.mubr.bf16.gmra.mxu0 %v1726
        %v2883 = vpop.f32.mrf.mxu0
        %v2884 = vadd.f32 0.0, %v2883
        %v2885 = vpop.f32.mrf.mxu0
        %v2886 = vpop.f32.mrf.mxu0
        %v2887 = vadd.f32 0.0, %v2886
        %v2888 = vpop.f32.mrf.mxu0
        %2889 = vmatprep.mubr.bf16.mxu0 0
        %2890 = vmatmul.mubr.bf16.gmra.mxu0 %v1727
        %v2891 = vpop.f32.mrf.mxu0
        %v2892 = vadd.f32 0.0, %v2891
        %v2893 = vpop.f32.mrf.mxu0
        %v2894 = vpop.f32.mrf.mxu0
        %v2895 = vadd.f32 0.0, %v2894
        %v2896 = vpop.f32.mrf.mxu0
        %2897 = vmatprep.mubr.bf16.mxu0 0
        %2898 = vmatmul.mubr.bf16.gmra.mxu0 %v1728
        %v2899 = vpop.f32.mrf.mxu0
        %v2900 = vadd.f32 0.0, %v2899
        %v2901 = vpop.f32.mrf.mxu0
        %v2902 = vpop.f32.mrf.mxu0
        %v2903 = vadd.f32 0.0, %v2902
        %v2904 = vpop.f32.mrf.mxu0
        %2905 = vmatprep.mubr.bf16.mxu0 0
        %2906 = vmatmul.mubr.bf16.gmra.mxu0 %v1729
        %v2907 = vpop.f32.mrf.mxu0
        %v2908 = vadd.f32 0.0, %v2907
        %v2909 = vpop.f32.mrf.mxu0
        %v2910 = vpop.f32.mrf.mxu0
        %v2911 = vadd.f32 0.0, %v2910
        %v2912 = vpop.f32.mrf.mxu0
        %2913 = vmatprep.mubr.bf16.mxu0 0
        %2914 = vmatmul.mubr.bf16.gmra.mxu0 %v1730
        %v2915 = vpop.f32.mrf.mxu0
        %v2916 = vadd.f32 0.0, %v2915
        %v2917 = vpop.f32.mrf.mxu0
        %v2918 = vpop.f32.mrf.mxu0
        %v2919 = vadd.f32 0.0, %v2918
        %v2920 = vpop.f32.mrf.mxu0
        %2921 = vmatprep.mubr.bf16.mxu0 0
        %2922 = vmatmul.mubr.bf16.gmra.mxu0 %v1731
        %v2923 = vpop.f32.mrf.mxu0
        %v2924 = vadd.f32 0.0, %v2923
        %v2925 = vpop.f32.mrf.mxu0
        %v2926 = vpop.f32.mrf.mxu0
        %v2927 = vadd.f32 0.0, %v2926
        %v2928 = vpop.f32.mrf.mxu0
        %2929 = vmatprep.mubr.bf16.mxu0 0
        %2930 = vmatmul.mubr.bf16.gmra.mxu0 %v1732
        %v2931 = vpop.f32.mrf.mxu0
        %v2932 = vadd.f32 0.0, %v2931
        %v2933 = vpop.f32.mrf.mxu0
        %v2934 = vpop.f32.mrf.mxu0
        %v2935 = vadd.f32 0.0, %v2934
        %v2936 = vpop.f32.mrf.mxu0
        %2937 = vmatprep.mubr.bf16.mxu0 0
        %2938 = vmatmul.mubr.bf16.gmra.mxu0 %v1733
        %v2939 = vpop.f32.mrf.mxu0
        %v2940 = vadd.f32 0.0, %v2939
        %v2941 = vpop.f32.mrf.mxu0
        %v2942 = vpop.f32.mrf.mxu0
        %v2943 = vadd.f32 0.0, %v2942
        %v2944 = vpop.f32.mrf.mxu0
        %2945 = vmatprep.mubr.bf16.mxu0 0
        %2946 = vmatmul.mubr.bf16.gmra.mxu0 %v1734
        %v2947 = vpop.f32.mrf.mxu0
        %v2948 = vadd.f32 0.0, %v2947
        %v2949 = vpop.f32.mrf.mxu0
        %v2950 = vpop.f32.mrf.mxu0
        %v2951 = vadd.f32 0.0, %v2950
        %v2952 = vpop.f32.mrf.mxu0
        %2953 = vmatprep.mubr.bf16.mxu0 0
        %2954 = vmatmul.mubr.bf16.gmra.mxu0 %v1735
        %v2955 = vpop.f32.mrf.mxu0
        %v2956 = vadd.f32 0.0, %v2955
        %v2957 = vpop.f32.mrf.mxu0
        %v2958 = vpop.f32.mrf.mxu0
        %v2959 = vadd.f32 0.0, %v2958
        %v2960 = vpop.f32.mrf.mxu0
        %2961 = vmatprep.mubr.bf16.mxu0 0
        %2962 = vmatmul.mubr.bf16.gmra.mxu0 %v1736
        %v2963 = vpop.f32.mrf.mxu0
        %v2964 = vadd.f32 0.0, %v2963
        %v2965 = vpop.f32.mrf.mxu0
        %v2966 = vpop.f32.mrf.mxu0
        %v2967 = vadd.f32 0.0, %v2966
        %v2968 = vpop.f32.mrf.mxu0
        %2969 = vdwg.mxu0
        %v2970 = vadd.f32 %v569, %v1948
        %v2971 = vadd.f32 %v570, %v1951
        %v2972 = vadd.f32 %v571, %v1956
        %v2973 = vadd.f32 %v572, %v1959
        %v2974 = vadd.f32 %v573, %v1964
        %v2975 = vadd.f32 %v574, %v1967
        %v2976 = vadd.f32 %v575, %v1972
        %v2977 = vadd.f32 %v576, %v1975
        %v2978 = vadd.f32 %v577, %v1980
        %v2979 = vadd.f32 %v578, %v1983
        %v2980 = vadd.f32 %v579, %v1988
        %v2981 = vadd.f32 %v580, %v1991
        %v2982 = vadd.f32 %v581, %v1996
        %v2983 = vadd.f32 %v582, %v1999
        %v2984 = vadd.f32 %v583, %v2004
        %v2985 = vadd.f32 %v584, %v2007
        %v2986 = vadd.f32 %v585, %v2012
        %v2987 = vadd.f32 %v586, %v2015
        %v2988 = vadd.f32 %v587, %v2020
        %v2989 = vadd.f32 %v588, %v2023
        %v2990 = vadd.f32 %v589, %v2028
        %v2991 = vadd.f32 %v590, %v2031
        %v2992 = vadd.f32 %v591, %v2036
        %v2993 = vadd.f32 %v592, %v2039
        %v2994 = vadd.f32 %v593, %v2044
        %v2995 = vadd.f32 %v594, %v2047
        %v2996 = vadd.f32 %v595, %v2052
        %v2997 = vadd.f32 %v596, %v2055
        %v2998 = vadd.f32 %v597, %v2060
        %v2999 = vadd.f32 %v598, %v2063
        %v3000 = vadd.f32 %v599, %v2068
        %v3001 = vadd.f32 %v600, %v2071
        %v3002 = vadd.f32 %v601, %v2076
        %v3003 = vadd.f32 %v602, %v2079
        %v3004 = vadd.f32 %v603, %v2084
        %v3005 = vadd.f32 %v604, %v2087
        %v3006 = vadd.f32 %v605, %v2092
        %v3007 = vadd.f32 %v606, %v2095
        %v3008 = vadd.f32 %v607, %v2100
        %v3009 = vadd.f32 %v608, %v2103
        %v3010 = vadd.f32 %v609, %v2108
        %v3011 = vadd.f32 %v610, %v2111
        %v3012 = vadd.f32 %v611, %v2116
        %v3013 = vadd.f32 %v612, %v2119
        %v3014 = vadd.f32 %v613, %v2124
        %v3015 = vadd.f32 %v614, %v2127
        %v3016 = vadd.f32 %v615, %v2132
        %v3017 = vadd.f32 %v616, %v2135
        %v3018 = vadd.f32 %v617, %v2140
        %v3019 = vadd.f32 %v618, %v2143
        %v3020 = vadd.f32 %v619, %v2148
        %v3021 = vadd.f32 %v620, %v2151
        %v3022 = vadd.f32 %v621, %v2156
        %v3023 = vadd.f32 %v622, %v2159
        %v3024 = vadd.f32 %v623, %v2164
        %v3025 = vadd.f32 %v624, %v2167
        %v3026 = vadd.f32 %v625, %v2172
        %v3027 = vadd.f32 %v626, %v2175
        %v3028 = vadd.f32 %v627, %v2180
        %v3029 = vadd.f32 %v628, %v2183
        %v3030 = vadd.f32 %v629, %v2188
        %v3031 = vadd.f32 %v630, %v2191
        %v3032 = vadd.f32 %v631, %v2196
        %v3033 = vadd.f32 %v632, %v2199
        %v3034 = vadd.f32 %v633, %v2204
        %v3035 = vadd.f32 %v634, %v2207
        %v3036 = vadd.f32 %v635, %v2212
        %v3037 = vadd.f32 %v636, %v2215
        %v3038 = vadd.f32 %v637, %v2220
        %v3039 = vadd.f32 %v638, %v2223
        %v3040 = vadd.f32 %v639, %v2228
        %v3041 = vadd.f32 %v640, %v2231
        %v3042 = vadd.f32 %v641, %v2236
        %v3043 = vadd.f32 %v642, %v2239
        %v3044 = vadd.f32 %v643, %v2244
        %v3045 = vadd.f32 %v644, %v2247
        %v3046 = vadd.f32 %v645, %v2252
        %v3047 = vadd.f32 %v646, %v2255
        %v3048 = vadd.f32 %v647, %v2260
        %v3049 = vadd.f32 %v648, %v2263
        %v3050 = vadd.f32 %v649, %v2268
        %v3051 = vadd.f32 %v650, %v2271
        %v3052 = vadd.f32 %v651, %v2276
        %v3053 = vadd.f32 %v652, %v2279
        %v3054 = vadd.f32 %v653, %v2284
        %v3055 = vadd.f32 %v654, %v2287
        %v3056 = vadd.f32 %v655, %v2292
        %v3057 = vadd.f32 %v656, %v2295
        %v3058 = vadd.f32 %v657, %v2300
        %v3059 = vadd.f32 %v658, %v2303
        %v3060 = vadd.f32 %v659, %v2308
        %v3061 = vadd.f32 %v660, %v2311
        %v3062 = vadd.f32 %v661, %v2316
        %v3063 = vadd.f32 %v662, %v2319
        %v3064 = vadd.f32 %v663, %v2324
        %v3065 = vadd.f32 %v664, %v2327
        %v3066 = vadd.f32 %v665, %v2332
        %v3067 = vadd.f32 %v666, %v2335
        %v3068 = vadd.f32 %v667, %v2340
        %v3069 = vadd.f32 %v668, %v2343
        %v3070 = vadd.f32 %v669, %v2348
        %v3071 = vadd.f32 %v670, %v2351
        %v3072 = vadd.f32 %v671, %v2356
        %v3073 = vadd.f32 %v672, %v2359
        %v3074 = vadd.f32 %v673, %v2364
        %v3075 = vadd.f32 %v674, %v2367
        %v3076 = vadd.f32 %v675, %v2372
        %v3077 = vadd.f32 %v676, %v2375
        %v3078 = vadd.f32 %v677, %v2380
        %v3079 = vadd.f32 %v678, %v2383
        %v3080 = vadd.f32 %v679, %v2388
        %v3081 = vadd.f32 %v680, %v2391
        %v3082 = vadd.f32 %v681, %v2396
        %v3083 = vadd.f32 %v682, %v2399
        %v3084 = vadd.f32 %v683, %v2404
        %v3085 = vadd.f32 %v684, %v2407
        %v3086 = vadd.f32 %v685, %v2412
        %v3087 = vadd.f32 %v686, %v2415
        %v3088 = vadd.f32 %v687, %v2420
        %v3089 = vadd.f32 %v688, %v2423
        %v3090 = vadd.f32 %v689, %v2428
        %v3091 = vadd.f32 %v690, %v2431
        %v3092 = vadd.f32 %v691, %v2436
        %v3093 = vadd.f32 %v692, %v2439
        %v3094 = vadd.f32 %v693, %v2444
        %v3095 = vadd.f32 %v694, %v2447
        %v3096 = vadd.f32 %v695, %v2452
        %v3097 = vadd.f32 %v696, %v2455
        %v3098 = vadd.f32 %v697, %v2460
        %v3099 = vadd.f32 %v698, %v2463
        %v3100 = vadd.f32 %v699, %v2468
        %v3101 = vadd.f32 %v700, %v2471
        %v3102 = vadd.f32 %v701, %v2476
        %v3103 = vadd.f32 %v702, %v2479
        %v3104 = vadd.f32 %v703, %v2484
        %v3105 = vadd.f32 %v704, %v2487
        %v3106 = vadd.f32 %v705, %v2492
        %v3107 = vadd.f32 %v706, %v2495
        %v3108 = vadd.f32 %v707, %v2500
        %v3109 = vadd.f32 %v708, %v2503
        %v3110 = vadd.f32 %v709, %v2508
        %v3111 = vadd.f32 %v710, %v2511
        %v3112 = vadd.f32 %v711, %v2516
        %v3113 = vadd.f32 %v712, %v2519
        %v3114 = vadd.f32 %v713, %v2524
        %v3115 = vadd.f32 %v714, %v2527
        %v3116 = vadd.f32 %v715, %v2532
        %v3117 = vadd.f32 %v716, %v2535
        %v3118 = vadd.f32 %v717, %v2540
        %v3119 = vadd.f32 %v718, %v2543
        %v3120 = vadd.f32 %v719, %v2548
        %v3121 = vadd.f32 %v720, %v2551
        %v3122 = vadd.f32 %v721, %v2556
        %v3123 = vadd.f32 %v722, %v2559
        %v3124 = vadd.f32 %v723, %v2564
        %v3125 = vadd.f32 %v724, %v2567
        %v3126 = vadd.f32 %v725, %v2572
        %v3127 = vadd.f32 %v726, %v2575
        %v3128 = vadd.f32 %v727, %v2580
        %v3129 = vadd.f32 %v728, %v2583
        %v3130 = vadd.f32 %v729, %v2588
        %v3131 = vadd.f32 %v730, %v2591
        %v3132 = vadd.f32 %v731, %v2596
        %v3133 = vadd.f32 %v732, %v2599
        %v3134 = vadd.f32 %v733, %v2604
        %v3135 = vadd.f32 %v734, %v2607
        %v3136 = vadd.f32 %v735, %v2612
        %v3137 = vadd.f32 %v736, %v2615
        %v3138 = vadd.f32 %v737, %v2620
        %v3139 = vadd.f32 %v738, %v2623
        %v3140 = vadd.f32 %v739, %v2628
        %v3141 = vadd.f32 %v740, %v2631
        %v3142 = vadd.f32 %v741, %v2636
        %v3143 = vadd.f32 %v742, %v2639
        %v3144 = vadd.f32 %v743, %v2644
        %v3145 = vadd.f32 %v744, %v2647
        %v3146 = vadd.f32 %v745, %v2652
        %v3147 = vadd.f32 %v746, %v2655
        %v3148 = vadd.f32 %v747, %v2660
        %v3149 = vadd.f32 %v748, %v2663
        %v3150 = vadd.f32 %v749, %v2668
        %v3151 = vadd.f32 %v750, %v2671
        %v3152 = vadd.f32 %v751, %v2676
        %v3153 = vadd.f32 %v752, %v2679
        %v3154 = vadd.f32 %v753, %v2684
        %v3155 = vadd.f32 %v754, %v2687
        %v3156 = vadd.f32 %v755, %v2692
        %v3157 = vadd.f32 %v756, %v2695
        %v3158 = vadd.f32 %v757, %v2700
        %v3159 = vadd.f32 %v758, %v2703
        %v3160 = vadd.f32 %v759, %v2708
        %v3161 = vadd.f32 %v760, %v2711
        %v3162 = vadd.f32 %v761, %v2716
        %v3163 = vadd.f32 %v762, %v2719
        %v3164 = vadd.f32 %v763, %v2724
        %v3165 = vadd.f32 %v764, %v2727
        %v3166 = vadd.f32 %v765, %v2732
        %v3167 = vadd.f32 %v766, %v2735
        %v3168 = vadd.f32 %v767, %v2740
        %v3169 = vadd.f32 %v768, %v2743
        %v3170 = vadd.f32 %v769, %v2748
        %v3171 = vadd.f32 %v770, %v2751
        %v3172 = vadd.f32 %v771, %v2756
        %v3173 = vadd.f32 %v772, %v2759
        %v3174 = vadd.f32 %v773, %v2764
        %v3175 = vadd.f32 %v774, %v2767
        %v3176 = vadd.f32 %v775, %v2772
        %v3177 = vadd.f32 %v776, %v2775
        %v3178 = vadd.f32 %v777, %v2780
        %v3179 = vadd.f32 %v778, %v2783
        %v3180 = vadd.f32 %v779, %v2788
        %v3181 = vadd.f32 %v780, %v2791
        %v3182 = vadd.f32 %v781, %v2796
        %v3183 = vadd.f32 %v782, %v2799
        %v3184 = vadd.f32 %v783, %v2804
        %v3185 = vadd.f32 %v784, %v2807
        %v3186 = vadd.f32 %v785, %v2812
        %v3187 = vadd.f32 %v786, %v2815
        %v3188 = vadd.f32 %v787, %v2820
        %v3189 = vadd.f32 %v788, %v2823
        %v3190 = vadd.f32 %v789, %v2828
        %v3191 = vadd.f32 %v790, %v2831
        %v3192 = vadd.f32 %v791, %v2836
        %v3193 = vadd.f32 %v792, %v2839
        %v3194 = vadd.f32 %v793, %v2844
        %v3195 = vadd.f32 %v794, %v2847
        %v3196 = vadd.f32 %v795, %v2852
        %v3197 = vadd.f32 %v796, %v2855
        %v3198 = vadd.f32 %v797, %v2860
        %v3199 = vadd.f32 %v798, %v2863
        %v3200 = vadd.f32 %v799, %v2868
        %v3201 = vadd.f32 %v800, %v2871
        %v3202 = vadd.f32 %v801, %v2876
        %v3203 = vadd.f32 %v802, %v2879
        %v3204 = vadd.f32 %v803, %v2884
        %v3205 = vadd.f32 %v804, %v2887
        %v3206 = vadd.f32 %v805, %v2892
        %v3207 = vadd.f32 %v806, %v2895
        %v3208 = vadd.f32 %v807, %v2900
        %v3209 = vadd.f32 %v808, %v2903
        %v3210 = vadd.f32 %v809, %v2908
        %v3211 = vadd.f32 %v810, %v2911
        %v3212 = vadd.f32 %v811, %v2916
        %v3213 = vadd.f32 %v812, %v2919
        %v3214 = vadd.f32 %v813, %v2924
        %v3215 = vadd.f32 %v814, %v2927
        %v3216 = vadd.f32 %v815, %v2932
        %v3217 = vadd.f32 %v816, %v2935
        %v3218 = vadd.f32 %v817, %v2940
        %v3219 = vadd.f32 %v818, %v2943
        %v3220 = vadd.f32 %v819, %v2948
        %v3221 = vadd.f32 %v820, %v2951
        %v3222 = vadd.f32 %v821, %v2956
        %v3223 = vadd.f32 %v822, %v2959
        %v3224 = vadd.f32 %v823, %v2964
        %v3225 = vadd.f32 %v824, %v2967
        %3226 = vst [vmem:[#allocation2] sm:$0xff] %v2970
        %3227 = vst [vmem:[#allocation2 + $0x8] sm:$0xff] %v2971
        %3228 = vst [vmem:[#allocation2 + $0x10] sm:$0xff] %v2972
        %3229 = vst [vmem:[#allocation2 + $0x18] sm:$0xff] %v2973
        %3230 = vst [vmem:[#allocation2 + $0x20] sm:$0xff] %v2974
        %3231 = vst [vmem:[#allocation2 + $0x28] sm:$0xff] %v2975
        %3232 = vst [vmem:[#allocation2 + $0x30] sm:$0xff] %v2976
        %3233 = vst [vmem:[#allocation2 + $0x38] sm:$0xff] %v2977
        %3234 = vst [vmem:[#allocation2 + $0x40] sm:$0xff] %v2978
        %3235 = vst [vmem:[#allocation2 + $0x48] sm:$0xff] %v2979
        %3236 = vst [vmem:[#allocation2 + $0x50] sm:$0xff] %v2980
        %3237 = vst [vmem:[#allocation2 + $0x58] sm:$0xff] %v2981
        %3238 = vst [vmem:[#allocation2 + $0x60] sm:$0xff] %v2982
        %3239 = vst [vmem:[#allocation2 + $0x68] sm:$0xff] %v2983
        %3240 = vst [vmem:[#allocation2 + $0x70] sm:$0xff] %v2984
        %3241 = vst [vmem:[#allocation2 + $0x78] sm:$0xff] %v2985
        %3242 = vst [vmem:[#allocation2 + $0x80] sm:$0xff] %v2986
        %3243 = vst [vmem:[#allocation2 + $0x88] sm:$0xff] %v2987
        %3244 = vst [vmem:[#allocation2 + $0x90] sm:$0xff] %v2988
        %3245 = vst [vmem:[#allocation2 + $0x98] sm:$0xff] %v2989
        %3246 = vst [vmem:[#allocation2 + $0xa0] sm:$0xff] %v2990
        %3247 = vst [vmem:[#allocation2 + $0xa8] sm:$0xff] %v2991
        %3248 = vst [vmem:[#allocation2 + $0xb0] sm:$0xff] %v2992
        %3249 = vst [vmem:[#allocation2 + $0xb8] sm:$0xff] %v2993
        %3250 = vst [vmem:[#allocation2 + $0xc0] sm:$0xff] %v2994
        %3251 = vst [vmem:[#allocation2 + $0xc8] sm:$0xff] %v2995
        %3252 = vst [vmem:[#allocation2 + $0xd0] sm:$0xff] %v2996
        %3253 = vst [vmem:[#allocation2 + $0xd8] sm:$0xff] %v2997
        %3254 = vst [vmem:[#allocation2 + $0xe0] sm:$0xff] %v2998
        %3255 = vst [vmem:[#allocation2 + $0xe8] sm:$0xff] %v2999
        %3256 = vst [vmem:[#allocation2 + $0xf0] sm:$0xff] %v3000
        %3257 = vst [vmem:[#allocation2 + $0xf8] sm:$0xff] %v3001
        %3258 = vst [vmem:[#allocation2 + $0x100] sm:$0xff] %v3002
        %3259 = vst [vmem:[#allocation2 + $0x108] sm:$0xff] %v3003
        %3260 = vst [vmem:[#allocation2 + $0x110] sm:$0xff] %v3004
        %3261 = vst [vmem:[#allocation2 + $0x118] sm:$0xff] %v3005
        %3262 = vst [vmem:[#allocation2 + $0x120] sm:$0xff] %v3006
        %3263 = vst [vmem:[#allocation2 + $0x128] sm:$0xff] %v3007
        %3264 = vst [vmem:[#allocation2 + $0x130] sm:$0xff] %v3008
        %3265 = vst [vmem:[#allocation2 + $0x138] sm:$0xff] %v3009
        %3266 = vst [vmem:[#allocation2 + $0x140] sm:$0xff] %v3010
        %3267 = vst [vmem:[#allocation2 + $0x148] sm:$0xff] %v3011
        %3268 = vst [vmem:[#allocation2 + $0x150] sm:$0xff] %v3012
        %3269 = vst [vmem:[#allocation2 + $0x158] sm:$0xff] %v3013
        %3270 = vst [vmem:[#allocation2 + $0x160] sm:$0xff] %v3014
        %3271 = vst [vmem:[#allocation2 + $0x168] sm:$0xff] %v3015
        %3272 = vst [vmem:[#allocation2 + $0x170] sm:$0xff] %v3016
        %3273 = vst [vmem:[#allocation2 + $0x178] sm:$0xff] %v3017
        %3274 = vst [vmem:[#allocation2 + $0x180] sm:$0xff] %v3018
        %3275 = vst [vmem:[#allocation2 + $0x188] sm:$0xff] %v3019
        %3276 = vst [vmem:[#allocation2 + $0x190] sm:$0xff] %v3020
        %3277 = vst [vmem:[#allocation2 + $0x198] sm:$0xff] %v3021
        %3278 = vst [vmem:[#allocation2 + $0x1a0] sm:$0xff] %v3022
        %3279 = vst [vmem:[#allocation2 + $0x1a8] sm:$0xff] %v3023
        %3280 = vst [vmem:[#allocation2 + $0x1b0] sm:$0xff] %v3024
        %3281 = vst [vmem:[#allocation2 + $0x1b8] sm:$0xff] %v3025
        %3282 = vst [vmem:[#allocation2 + $0x1c0] sm:$0xff] %v3026
        %3283 = vst [vmem:[#allocation2 + $0x1c8] sm:$0xff] %v3027
        %3284 = vst [vmem:[#allocation2 + $0x1d0] sm:$0xff] %v3028
        %3285 = vst [vmem:[#allocation2 + $0x1d8] sm:$0xff] %v3029
        %3286 = vst [vmem:[#allocation2 + $0x1e0] sm:$0xff] %v3030
        %3287 = vst [vmem:[#allocation2 + $0x1e8] sm:$0xff] %v3031
        %3288 = vst [vmem:[#allocation2 + $0x1f0] sm:$0xff] %v3032
        %3289 = vst [vmem:[#allocation2 + $0x1f8] sm:$0xff] %v3033
        %3290 = vst [vmem:[#allocation2 + $0x200] sm:$0xff] %v3034
        %3291 = vst [vmem:[#allocation2 + $0x208] sm:$0xff] %v3035
        %3292 = vst [vmem:[#allocation2 + $0x210] sm:$0xff] %v3036
        %3293 = vst [vmem:[#allocation2 + $0x218] sm:$0xff] %v3037
        %3294 = vst [vmem:[#allocation2 + $0x220] sm:$0xff] %v3038
        %3295 = vst [vmem:[#allocation2 + $0x228] sm:$0xff] %v3039
        %3296 = vst [vmem:[#allocation2 + $0x230] sm:$0xff] %v3040
        %3297 = vst [vmem:[#allocation2 + $0x238] sm:$0xff] %v3041
        %3298 = vst [vmem:[#allocation2 + $0x240] sm:$0xff] %v3042
        %3299 = vst [vmem:[#allocation2 + $0x248] sm:$0xff] %v3043
        %3300 = vst [vmem:[#allocation2 + $0x250] sm:$0xff] %v3044
        %3301 = vst [vmem:[#allocation2 + $0x258] sm:$0xff] %v3045
        %3302 = vst [vmem:[#allocation2 + $0x260] sm:$0xff] %v3046
        %3303 = vst [vmem:[#allocation2 + $0x268] sm:$0xff] %v3047
        %3304 = vst [vmem:[#allocation2 + $0x270] sm:$0xff] %v3048
        %3305 = vst [vmem:[#allocation2 + $0x278] sm:$0xff] %v3049
        %3306 = vst [vmem:[#allocation2 + $0x280] sm:$0xff] %v3050
        %3307 = vst [vmem:[#allocation2 + $0x288] sm:$0xff] %v3051
        %3308 = vst [vmem:[#allocation2 + $0x290] sm:$0xff] %v3052
        %3309 = vst [vmem:[#allocation2 + $0x298] sm:$0xff] %v3053
        %3310 = vst [vmem:[#allocation2 + $0x2a0] sm:$0xff] %v3054
        %3311 = vst [vmem:[#allocation2 + $0x2a8] sm:$0xff] %v3055
        %3312 = vst [vmem:[#allocation2 + $0x2b0] sm:$0xff] %v3056
        %3313 = vst [vmem:[#allocation2 + $0x2b8] sm:$0xff] %v3057
        %3314 = vst [vmem:[#allocation2 + $0x2c0] sm:$0xff] %v3058
        %3315 = vst [vmem:[#allocation2 + $0x2c8] sm:$0xff] %v3059
        %3316 = vst [vmem:[#allocation2 + $0x2d0] sm:$0xff] %v3060
        %3317 = vst [vmem:[#allocation2 + $0x2d8] sm:$0xff] %v3061
        %3318 = vst [vmem:[#allocation2 + $0x2e0] sm:$0xff] %v3062
        %3319 = vst [vmem:[#allocation2 + $0x2e8] sm:$0xff] %v3063
        %3320 = vst [vmem:[#allocation2 + $0x2f0] sm:$0xff] %v3064
        %3321 = vst [vmem:[#allocation2 + $0x2f8] sm:$0xff] %v3065
        %3322 = vst [vmem:[#allocation2 + $0x300] sm:$0xff] %v3066
        %3323 = vst [vmem:[#allocation2 + $0x308] sm:$0xff] %v3067
        %3324 = vst [vmem:[#allocation2 + $0x310] sm:$0xff] %v3068
        %3325 = vst [vmem:[#allocation2 + $0x318] sm:$0xff] %v3069
        %3326 = vst [vmem:[#allocation2 + $0x320] sm:$0xff] %v3070
        %3327 = vst [vmem:[#allocation2 + $0x328] sm:$0xff] %v3071
        %3328 = vst [vmem:[#allocation2 + $0x330] sm:$0xff] %v3072
        %3329 = vst [vmem:[#allocation2 + $0x338] sm:$0xff] %v3073
        %3330 = vst [vmem:[#allocation2 + $0x340] sm:$0xff] %v3074
        %3331 = vst [vmem:[#allocation2 + $0x348] sm:$0xff] %v3075
        %3332 = vst [vmem:[#allocation2 + $0x350] sm:$0xff] %v3076
        %3333 = vst [vmem:[#allocation2 + $0x358] sm:$0xff] %v3077
        %3334 = vst [vmem:[#allocation2 + $0x360] sm:$0xff] %v3078
        %3335 = vst [vmem:[#allocation2 + $0x368] sm:$0xff] %v3079
        %3336 = vst [vmem:[#allocation2 + $0x370] sm:$0xff] %v3080
        %3337 = vst [vmem:[#allocation2 + $0x378] sm:$0xff] %v3081
        %3338 = vst [vmem:[#allocation2 + $0x380] sm:$0xff] %v3082
        %3339 = vst [vmem:[#allocation2 + $0x388] sm:$0xff] %v3083
        %3340 = vst [vmem:[#allocation2 + $0x390] sm:$0xff] %v3084
        %3341 = vst [vmem:[#allocation2 + $0x398] sm:$0xff] %v3085
        %3342 = vst [vmem:[#allocation2 + $0x3a0] sm:$0xff] %v3086
        %3343 = vst [vmem:[#allocation2 + $0x3a8] sm:$0xff] %v3087
        %3344 = vst [vmem:[#allocation2 + $0x3b0] sm:$0xff] %v3088
        %3345 = vst [vmem:[#allocation2 + $0x3b8] sm:$0xff] %v3089
        %3346 = vst [vmem:[#allocation2 + $0x3c0] sm:$0xff] %v3090
        %3347 = vst [vmem:[#allocation2 + $0x3c8] sm:$0xff] %v3091
        %3348 = vst [vmem:[#allocation2 + $0x3d0] sm:$0xff] %v3092
        %3349 = vst [vmem:[#allocation2 + $0x3d8] sm:$0xff] %v3093
        %3350 = vst [vmem:[#allocation2 + $0x3e0] sm:$0xff] %v3094
        %3351 = vst [vmem:[#allocation2 + $0x3e8] sm:$0xff] %v3095
        %3352 = vst [vmem:[#allocation2 + $0x3f0] sm:$0xff] %v3096
        %3353 = vst [vmem:[#allocation2 + $0x3f8] sm:$0xff] %v3097
        %3354 = vst [vmem:[#allocation2 + $0x400] sm:$0xff] %v3098
        %3355 = vst [vmem:[#allocation2 + $0x408] sm:$0xff] %v3099
        %3356 = vst [vmem:[#allocation2 + $0x410] sm:$0xff] %v3100
        %3357 = vst [vmem:[#allocation2 + $0x418] sm:$0xff] %v3101
        %3358 = vst [vmem:[#allocation2 + $0x420] sm:$0xff] %v3102
        %3359 = vst [vmem:[#allocation2 + $0x428] sm:$0xff] %v3103
        %3360 = vst [vmem:[#allocation2 + $0x430] sm:$0xff] %v3104
        %3361 = vst [vmem:[#allocation2 + $0x438] sm:$0xff] %v3105
        %3362 = vst [vmem:[#allocation2 + $0x440] sm:$0xff] %v3106
        %3363 = vst [vmem:[#allocation2 + $0x448] sm:$0xff] %v3107
        %3364 = vst [vmem:[#allocation2 + $0x450] sm:$0xff] %v3108
        %3365 = vst [vmem:[#allocation2 + $0x458] sm:$0xff] %v3109
        %3366 = vst [vmem:[#allocation2 + $0x460] sm:$0xff] %v3110
        %3367 = vst [vmem:[#allocation2 + $0x468] sm:$0xff] %v3111
        %3368 = vst [vmem:[#allocation2 + $0x470] sm:$0xff] %v3112
        %3369 = vst [vmem:[#allocation2 + $0x478] sm:$0xff] %v3113
        %3370 = vst [vmem:[#allocation2 + $0x480] sm:$0xff] %v3114
        %3371 = vst [vmem:[#allocation2 + $0x488] sm:$0xff] %v3115
        %3372 = vst [vmem:[#allocation2 + $0x490] sm:$0xff] %v3116
        %3373 = vst [vmem:[#allocation2 + $0x498] sm:$0xff] %v3117
        %3374 = vst [vmem:[#allocation2 + $0x4a0] sm:$0xff] %v3118
        %3375 = vst [vmem:[#allocation2 + $0x4a8] sm:$0xff] %v3119
        %3376 = vst [vmem:[#allocation2 + $0x4b0] sm:$0xff] %v3120
        %3377 = vst [vmem:[#allocation2 + $0x4b8] sm:$0xff] %v3121
        %3378 = vst [vmem:[#allocation2 + $0x4c0] sm:$0xff] %v3122
        %3379 = vst [vmem:[#allocation2 + $0x4c8] sm:$0xff] %v3123
        %3380 = vst [vmem:[#allocation2 + $0x4d0] sm:$0xff] %v3124
        %3381 = vst [vmem:[#allocation2 + $0x4d8] sm:$0xff] %v3125
        %3382 = vst [vmem:[#allocation2 + $0x4e0] sm:$0xff] %v3126
        %3383 = vst [vmem:[#allocation2 + $0x4e8] sm:$0xff] %v3127
        %3384 = vst [vmem:[#allocation2 + $0x4f0] sm:$0xff] %v3128
        %3385 = vst [vmem:[#allocation2 + $0x4f8] sm:$0xff] %v3129
        %3386 = vst [vmem:[#allocation2 + $0x500] sm:$0xff] %v3130
        %3387 = vst [vmem:[#allocation2 + $0x508] sm:$0xff] %v3131
        %3388 = vst [vmem:[#allocation2 + $0x510] sm:$0xff] %v3132
        %3389 = vst [vmem:[#allocation2 + $0x518] sm:$0xff] %v3133
        %3390 = vst [vmem:[#allocation2 + $0x520] sm:$0xff] %v3134
        %3391 = vst [vmem:[#allocation2 + $0x528] sm:$0xff] %v3135
        %3392 = vst [vmem:[#allocation2 + $0x530] sm:$0xff] %v3136
        %3393 = vst [vmem:[#allocation2 + $0x538] sm:$0xff] %v3137
        %3394 = vst [vmem:[#allocation2 + $0x540] sm:$0xff] %v3138
        %3395 = vst [vmem:[#allocation2 + $0x548] sm:$0xff] %v3139
        %3396 = vst [vmem:[#allocation2 + $0x550] sm:$0xff] %v3140
        %3397 = vst [vmem:[#allocation2 + $0x558] sm:$0xff] %v3141
        %3398 = vst [vmem:[#allocation2 + $0x560] sm:$0xff] %v3142
        %3399 = vst [vmem:[#allocation2 + $0x568] sm:$0xff] %v3143
        %3400 = vst [vmem:[#allocation2 + $0x570] sm:$0xff] %v3144
        %3401 = vst [vmem:[#allocation2 + $0x578] sm:$0xff] %v3145
        %3402 = vst [vmem:[#allocation2 + $0x580] sm:$0xff] %v3146
        %3403 = vst [vmem:[#allocation2 + $0x588] sm:$0xff] %v3147
        %3404 = vst [vmem:[#allocation2 + $0x590] sm:$0xff] %v3148
        %3405 = vst [vmem:[#allocation2 + $0x598] sm:$0xff] %v3149
        %3406 = vst [vmem:[#allocation2 + $0x5a0] sm:$0xff] %v3150
        %3407 = vst [vmem:[#allocation2 + $0x5a8] sm:$0xff] %v3151
        %3408 = vst [vmem:[#allocation2 + $0x5b0] sm:$0xff] %v3152
        %3409 = vst [vmem:[#allocation2 + $0x5b8] sm:$0xff] %v3153
        %3410 = vst [vmem:[#allocation2 + $0x5c0] sm:$0xff] %v3154
        %3411 = vst [vmem:[#allocation2 + $0x5c8] sm:$0xff] %v3155
        %3412 = vst [vmem:[#allocation2 + $0x5d0] sm:$0xff] %v3156
        %3413 = vst [vmem:[#allocation2 + $0x5d8] sm:$0xff] %v3157
        %3414 = vst [vmem:[#allocation2 + $0x5e0] sm:$0xff] %v3158
        %3415 = vst [vmem:[#allocation2 + $0x5e8] sm:$0xff] %v3159
        %3416 = vst [vmem:[#allocation2 + $0x5f0] sm:$0xff] %v3160
        %3417 = vst [vmem:[#allocation2 + $0x5f8] sm:$0xff] %v3161
        %3418 = vst [vmem:[#allocation2 + $0x600] sm:$0xff] %v3162
        %3419 = vst [vmem:[#allocation2 + $0x608] sm:$0xff] %v3163
        %3420 = vst [vmem:[#allocation2 + $0x610] sm:$0xff] %v3164
        %3421 = vst [vmem:[#allocation2 + $0x618] sm:$0xff] %v3165
        %3422 = vst [vmem:[#allocation2 + $0x620] sm:$0xff] %v3166
        %3423 = vst [vmem:[#allocation2 + $0x628] sm:$0xff] %v3167
        %3424 = vst [vmem:[#allocation2 + $0x630] sm:$0xff] %v3168
        %3425 = vst [vmem:[#allocation2 + $0x638] sm:$0xff] %v3169
        %3426 = vst [vmem:[#allocation2 + $0x640] sm:$0xff] %v3170
        %3427 = vst [vmem:[#allocation2 + $0x648] sm:$0xff] %v3171
        %3428 = vst [vmem:[#allocation2 + $0x650] sm:$0xff] %v3172
        %3429 = vst [vmem:[#allocation2 + $0x658] sm:$0xff] %v3173
        %3430 = vst [vmem:[#allocation2 + $0x660] sm:$0xff] %v3174
        %3431 = vst [vmem:[#allocation2 + $0x668] sm:$0xff] %v3175
        %3432 = vst [vmem:[#allocation2 + $0x670] sm:$0xff] %v3176
        %3433 = vst [vmem:[#allocation2 + $0x678] sm:$0xff] %v3177
        %3434 = vst [vmem:[#allocation2 + $0x680] sm:$0xff] %v3178
        %3435 = vst [vmem:[#allocation2 + $0x688] sm:$0xff] %v3179
        %3436 = vst [vmem:[#allocation2 + $0x690] sm:$0xff] %v3180
        %3437 = vst [vmem:[#allocation2 + $0x698] sm:$0xff] %v3181
        %3438 = vst [vmem:[#allocation2 + $0x6a0] sm:$0xff] %v3182
        %3439 = vst [vmem:[#allocation2 + $0x6a8] sm:$0xff] %v3183
        %3440 = vst [vmem:[#allocation2 + $0x6b0] sm:$0xff] %v3184
        %3441 = vst [vmem:[#allocation2 + $0x6b8] sm:$0xff] %v3185
        %3442 = vst [vmem:[#allocation2 + $0x6c0] sm:$0xff] %v3186
        %3443 = vst [vmem:[#allocation2 + $0x6c8] sm:$0xff] %v3187
        %3444 = vst [vmem:[#allocation2 + $0x6d0] sm:$0xff] %v3188
        %3445 = vst [vmem:[#allocation2 + $0x6d8] sm:$0xff] %v3189
        %3446 = vst [vmem:[#allocation2 + $0x6e0] sm:$0xff] %v3190
        %3447 = vst [vmem:[#allocation2 + $0x6e8] sm:$0xff] %v3191
        %3448 = vst [vmem:[#allocation2 + $0x6f0] sm:$0xff] %v3192
        %3449 = vst [vmem:[#allocation2 + $0x6f8] sm:$0xff] %v3193
        %3450 = vst [vmem:[#allocation2 + $0x700] sm:$0xff] %v3194
        %3451 = vst [vmem:[#allocation2 + $0x708] sm:$0xff] %v3195
        %3452 = vst [vmem:[#allocation2 + $0x710] sm:$0xff] %v3196
        %3453 = vst [vmem:[#allocation2 + $0x718] sm:$0xff] %v3197
        %3454 = vst [vmem:[#allocation2 + $0x720] sm:$0xff] %v3198
        %3455 = vst [vmem:[#allocation2 + $0x728] sm:$0xff] %v3199
        %3456 = vst [vmem:[#allocation2 + $0x730] sm:$0xff] %v3200
        %3457 = vst [vmem:[#allocation2 + $0x738] sm:$0xff] %v3201
        %3458 = vst [vmem:[#allocation2 + $0x740] sm:$0xff] %v3202
        %3459 = vst [vmem:[#allocation2 + $0x748] sm:$0xff] %v3203
        %3460 = vst [vmem:[#allocation2 + $0x750] sm:$0xff] %v3204
        %3461 = vst [vmem:[#allocation2 + $0x758] sm:$0xff] %v3205
        %3462 = vst [vmem:[#allocation2 + $0x760] sm:$0xff] %v3206
        %3463 = vst [vmem:[#allocation2 + $0x768] sm:$0xff] %v3207
        %3464 = vst [vmem:[#allocation2 + $0x770] sm:$0xff] %v3208
        %3465 = vst [vmem:[#allocation2 + $0x778] sm:$0xff] %v3209
        %3466 = vst [vmem:[#allocation2 + $0x780] sm:$0xff] %v3210
        %3467 = vst [vmem:[#allocation2 + $0x788] sm:$0xff] %v3211
        %3468 = vst [vmem:[#allocation2 + $0x790] sm:$0xff] %v3212
        %3469 = vst [vmem:[#allocation2 + $0x798] sm:$0xff] %v3213
        %3470 = vst [vmem:[#allocation2 + $0x7a0] sm:$0xff] %v3214
        %3471 = vst [vmem:[#allocation2 + $0x7a8] sm:$0xff] %v3215
        %3472 = vst [vmem:[#allocation2 + $0x7b0] sm:$0xff] %v3216
        %3473 = vst [vmem:[#allocation2 + $0x7b8] sm:$0xff] %v3217
        %3474 = vst [vmem:[#allocation2 + $0x7c0] sm:$0xff] %v3218
        %3475 = vst [vmem:[#allocation2 + $0x7c8] sm:$0xff] %v3219
        %3476 = vst [vmem:[#allocation2 + $0x7d0] sm:$0xff] %v3220
        %3477 = vst [vmem:[#allocation2 + $0x7d8] sm:$0xff] %v3221
        %3478 = vst [vmem:[#allocation2 + $0x7e0] sm:$0xff] %v3222
        %3479 = vst [vmem:[#allocation2 + $0x7e8] sm:$0xff] %v3223
        %3480 = vst [vmem:[#allocation2 + $0x7f0] sm:$0xff] %v3224
        %3481 = vst [vmem:[#allocation2 + $0x7f8] sm:$0xff] %v3225
        // Predicated region
        $region57: #{tpu_custom_call.1} parent=35 // pred_check
          %p3482 = pneg %p309
        $region58: #{tpu_custom_call.1} parent=35 // pred_check_branch
          %3484 = sbr.rel (%p3482) target = $region60
        $region59: #{tpu_custom_call.1} parent=35 // pred_region
          %v3485 = vld [vmem:[#allocation2] sm:$0xff]
          %v3486 = vld [vmem:[#allocation2 + $0x8] sm:$0xff]
          %v3487 = vld [vmem:[#allocation2 + $0x10] sm:$0xff]
          %v3488 = vld [vmem:[#allocation2 + $0x18] sm:$0xff]
          %v3489 = vld [vmem:[#allocation2 + $0x20] sm:$0xff]
          %v3490 = vld [vmem:[#allocation2 + $0x28] sm:$0xff]
          %v3491 = vld [vmem:[#allocation2 + $0x30] sm:$0xff]
          %v3492 = vld [vmem:[#allocation2 + $0x38] sm:$0xff]
          %v3493 = vld [vmem:[#allocation2 + $0x40] sm:$0xff]
          %v3494 = vld [vmem:[#allocation2 + $0x48] sm:$0xff]
          %v3495 = vld [vmem:[#allocation2 + $0x50] sm:$0xff]
          %v3496 = vld [vmem:[#allocation2 + $0x58] sm:$0xff]
          %v3497 = vld [vmem:[#allocation2 + $0x60] sm:$0xff]
          %v3498 = vld [vmem:[#allocation2 + $0x68] sm:$0xff]
          %v3499 = vld [vmem:[#allocation2 + $0x70] sm:$0xff]
          %v3500 = vld [vmem:[#allocation2 + $0x78] sm:$0xff]
          %v3501 = vld [vmem:[#allocation2 + $0x80] sm:$0xff]
          %v3502 = vld [vmem:[#allocation2 + $0x88] sm:$0xff]
          %v3503 = vld [vmem:[#allocation2 + $0x90] sm:$0xff]
          %v3504 = vld [vmem:[#allocation2 + $0x98] sm:$0xff]
          %v3505 = vld [vmem:[#allocation2 + $0xa0] sm:$0xff]
          %v3506 = vld [vmem:[#allocation2 + $0xa8] sm:$0xff]
          %v3507 = vld [vmem:[#allocation2 + $0xb0] sm:$0xff]
          %v3508 = vld [vmem:[#allocation2 + $0xb8] sm:$0xff]
          %v3509 = vld [vmem:[#allocation2 + $0xc0] sm:$0xff]
          %v3510 = vld [vmem:[#allocation2 + $0xc8] sm:$0xff]
          %v3511 = vld [vmem:[#allocation2 + $0xd0] sm:$0xff]
          %v3512 = vld [vmem:[#allocation2 + $0xd8] sm:$0xff]
          %v3513 = vld [vmem:[#allocation2 + $0xe0] sm:$0xff]
          %v3514 = vld [vmem:[#allocation2 + $0xe8] sm:$0xff]
          %v3515 = vld [vmem:[#allocation2 + $0xf0] sm:$0xff]
          %v3516 = vld [vmem:[#allocation2 + $0xf8] sm:$0xff]
          %v3517 = vld [vmem:[#allocation2 + $0x100] sm:$0xff]
          %v3518 = vld [vmem:[#allocation2 + $0x108] sm:$0xff]
          %v3519 = vld [vmem:[#allocation2 + $0x110] sm:$0xff]
          %v3520 = vld [vmem:[#allocation2 + $0x118] sm:$0xff]
          %v3521 = vld [vmem:[#allocation2 + $0x120] sm:$0xff]
          %v3522 = vld [vmem:[#allocation2 + $0x128] sm:$0xff]
          %v3523 = vld [vmem:[#allocation2 + $0x130] sm:$0xff]
          %v3524 = vld [vmem:[#allocation2 + $0x138] sm:$0xff]
          %v3525 = vld [vmem:[#allocation2 + $0x140] sm:$0xff]
          %v3526 = vld [vmem:[#allocation2 + $0x148] sm:$0xff]
          %v3527 = vld [vmem:[#allocation2 + $0x150] sm:$0xff]
          %v3528 = vld [vmem:[#allocation2 + $0x158] sm:$0xff]
          %v3529 = vld [vmem:[#allocation2 + $0x160] sm:$0xff]
          %v3530 = vld [vmem:[#allocation2 + $0x168] sm:$0xff]
          %v3531 = vld [vmem:[#allocation2 + $0x170] sm:$0xff]
          %v3532 = vld [vmem:[#allocation2 + $0x178] sm:$0xff]
          %v3533 = vld [vmem:[#allocation2 + $0x180] sm:$0xff]
          %v3534 = vld [vmem:[#allocation2 + $0x188] sm:$0xff]
          %v3535 = vld [vmem:[#allocation2 + $0x190] sm:$0xff]
          %v3536 = vld [vmem:[#allocation2 + $0x198] sm:$0xff]
          %v3537 = vld [vmem:[#allocation2 + $0x1a0] sm:$0xff]
          %v3538 = vld [vmem:[#allocation2 + $0x1a8] sm:$0xff]
          %v3539 = vld [vmem:[#allocation2 + $0x1b0] sm:$0xff]
          %v3540 = vld [vmem:[#allocation2 + $0x1b8] sm:$0xff]
          %v3541 = vld [vmem:[#allocation2 + $0x1c0] sm:$0xff]
          %v3542 = vld [vmem:[#allocation2 + $0x1c8] sm:$0xff]
          %v3543 = vld [vmem:[#allocation2 + $0x1d0] sm:$0xff]
          %v3544 = vld [vmem:[#allocation2 + $0x1d8] sm:$0xff]
          %v3545 = vld [vmem:[#allocation2 + $0x1e0] sm:$0xff]
          %v3546 = vld [vmem:[#allocation2 + $0x1e8] sm:$0xff]
          %v3547 = vld [vmem:[#allocation2 + $0x1f0] sm:$0xff]
          %v3548 = vld [vmem:[#allocation2 + $0x1f8] sm:$0xff]
          %v3549 = vld [vmem:[#allocation2 + $0x200] sm:$0xff]
          %v3550 = vld [vmem:[#allocation2 + $0x208] sm:$0xff]
          %v3551 = vld [vmem:[#allocation2 + $0x210] sm:$0xff]
          %v3552 = vld [vmem:[#allocation2 + $0x218] sm:$0xff]
          %v3553 = vld [vmem:[#allocation2 + $0x220] sm:$0xff]
          %v3554 = vld [vmem:[#allocation2 + $0x228] sm:$0xff]
          %v3555 = vld [vmem:[#allocation2 + $0x230] sm:$0xff]
          %v3556 = vld [vmem:[#allocation2 + $0x238] sm:$0xff]
          %v3557 = vld [vmem:[#allocation2 + $0x240] sm:$0xff]
          %v3558 = vld [vmem:[#allocation2 + $0x248] sm:$0xff]
          %v3559 = vld [vmem:[#allocation2 + $0x250] sm:$0xff]
          %v3560 = vld [vmem:[#allocation2 + $0x258] sm:$0xff]
          %v3561 = vld [vmem:[#allocation2 + $0x260] sm:$0xff]
          %v3562 = vld [vmem:[#allocation2 + $0x268] sm:$0xff]
          %v3563 = vld [vmem:[#allocation2 + $0x270] sm:$0xff]
          %v3564 = vld [vmem:[#allocation2 + $0x278] sm:$0xff]
          %v3565 = vld [vmem:[#allocation2 + $0x280] sm:$0xff]
          %v3566 = vld [vmem:[#allocation2 + $0x288] sm:$0xff]
          %v3567 = vld [vmem:[#allocation2 + $0x290] sm:$0xff]
          %v3568 = vld [vmem:[#allocation2 + $0x298] sm:$0xff]
          %v3569 = vld [vmem:[#allocation2 + $0x2a0] sm:$0xff]
          %v3570 = vld [vmem:[#allocation2 + $0x2a8] sm:$0xff]
          %v3571 = vld [vmem:[#allocation2 + $0x2b0] sm:$0xff]
          %v3572 = vld [vmem:[#allocation2 + $0x2b8] sm:$0xff]
          %v3573 = vld [vmem:[#allocation2 + $0x2c0] sm:$0xff]
          %v3574 = vld [vmem:[#allocation2 + $0x2c8] sm:$0xff]
          %v3575 = vld [vmem:[#allocation2 + $0x2d0] sm:$0xff]
          %v3576 = vld [vmem:[#allocation2 + $0x2d8] sm:$0xff]
          %v3577 = vld [vmem:[#allocation2 + $0x2e0] sm:$0xff]
          %v3578 = vld [vmem:[#allocation2 + $0x2e8] sm:$0xff]
          %v3579 = vld [vmem:[#allocation2 + $0x2f0] sm:$0xff]
          %v3580 = vld [vmem:[#allocation2 + $0x2f8] sm:$0xff]
          %v3581 = vld [vmem:[#allocation2 + $0x300] sm:$0xff]
          %v3582 = vld [vmem:[#allocation2 + $0x308] sm:$0xff]
          %v3583 = vld [vmem:[#allocation2 + $0x310] sm:$0xff]
          %v3584 = vld [vmem:[#allocation2 + $0x318] sm:$0xff]
          %v3585 = vld [vmem:[#allocation2 + $0x320] sm:$0xff]
          %v3586 = vld [vmem:[#allocation2 + $0x328] sm:$0xff]
          %v3587 = vld [vmem:[#allocation2 + $0x330] sm:$0xff]
          %v3588 = vld [vmem:[#allocation2 + $0x338] sm:$0xff]
          %v3589 = vld [vmem:[#allocation2 + $0x340] sm:$0xff]
          %v3590 = vld [vmem:[#allocation2 + $0x348] sm:$0xff]
          %v3591 = vld [vmem:[#allocation2 + $0x350] sm:$0xff]
          %v3592 = vld [vmem:[#allocation2 + $0x358] sm:$0xff]
          %v3593 = vld [vmem:[#allocation2 + $0x360] sm:$0xff]
          %v3594 = vld [vmem:[#allocation2 + $0x368] sm:$0xff]
          %v3595 = vld [vmem:[#allocation2 + $0x370] sm:$0xff]
          %v3596 = vld [vmem:[#allocation2 + $0x378] sm:$0xff]
          %v3597 = vld [vmem:[#allocation2 + $0x380] sm:$0xff]
          %v3598 = vld [vmem:[#allocation2 + $0x388] sm:$0xff]
          %v3599 = vld [vmem:[#allocation2 + $0x390] sm:$0xff]
          %v3600 = vld [vmem:[#allocation2 + $0x398] sm:$0xff]
          %v3601 = vld [vmem:[#allocation2 + $0x3a0] sm:$0xff]
          %v3602 = vld [vmem:[#allocation2 + $0x3a8] sm:$0xff]
          %v3603 = vld [vmem:[#allocation2 + $0x3b0] sm:$0xff]
          %v3604 = vld [vmem:[#allocation2 + $0x3b8] sm:$0xff]
          %v3605 = vld [vmem:[#allocation2 + $0x3c0] sm:$0xff]
          %v3606 = vld [vmem:[#allocation2 + $0x3c8] sm:$0xff]
          %v3607 = vld [vmem:[#allocation2 + $0x3d0] sm:$0xff]
          %v3608 = vld [vmem:[#allocation2 + $0x3d8] sm:$0xff]
          %v3609 = vld [vmem:[#allocation2 + $0x3e0] sm:$0xff]
          %v3610 = vld [vmem:[#allocation2 + $0x3e8] sm:$0xff]
          %v3611 = vld [vmem:[#allocation2 + $0x3f0] sm:$0xff]
          %v3612 = vld [vmem:[#allocation2 + $0x3f8] sm:$0xff]
          %v3613 = vld [vmem:[#allocation2 + $0x400] sm:$0xff]
          %v3614 = vld [vmem:[#allocation2 + $0x408] sm:$0xff]
          %v3615 = vld [vmem:[#allocation2 + $0x410] sm:$0xff]
          %v3616 = vld [vmem:[#allocation2 + $0x418] sm:$0xff]
          %v3617 = vld [vmem:[#allocation2 + $0x420] sm:$0xff]
          %v3618 = vld [vmem:[#allocation2 + $0x428] sm:$0xff]
          %v3619 = vld [vmem:[#allocation2 + $0x430] sm:$0xff]
          %v3620 = vld [vmem:[#allocation2 + $0x438] sm:$0xff]
          %v3621 = vld [vmem:[#allocation2 + $0x440] sm:$0xff]
          %v3622 = vld [vmem:[#allocation2 + $0x448] sm:$0xff]
          %v3623 = vld [vmem:[#allocation2 + $0x450] sm:$0xff]
          %v3624 = vld [vmem:[#allocation2 + $0x458] sm:$0xff]
          %v3625 = vld [vmem:[#allocation2 + $0x460] sm:$0xff]
          %v3626 = vld [vmem:[#allocation2 + $0x468] sm:$0xff]
          %v3627 = vld [vmem:[#allocation2 + $0x470] sm:$0xff]
          %v3628 = vld [vmem:[#allocation2 + $0x478] sm:$0xff]
          %v3629 = vld [vmem:[#allocation2 + $0x480] sm:$0xff]
          %v3630 = vld [vmem:[#allocation2 + $0x488] sm:$0xff]
          %v3631 = vld [vmem:[#allocation2 + $0x490] sm:$0xff]
          %v3632 = vld [vmem:[#allocation2 + $0x498] sm:$0xff]
          %v3633 = vld [vmem:[#allocation2 + $0x4a0] sm:$0xff]
          %v3634 = vld [vmem:[#allocation2 + $0x4a8] sm:$0xff]
          %v3635 = vld [vmem:[#allocation2 + $0x4b0] sm:$0xff]
          %v3636 = vld [vmem:[#allocation2 + $0x4b8] sm:$0xff]
          %v3637 = vld [vmem:[#allocation2 + $0x4c0] sm:$0xff]
          %v3638 = vld [vmem:[#allocation2 + $0x4c8] sm:$0xff]
          %v3639 = vld [vmem:[#allocation2 + $0x4d0] sm:$0xff]
          %v3640 = vld [vmem:[#allocation2 + $0x4d8] sm:$0xff]
          %v3641 = vld [vmem:[#allocation2 + $0x4e0] sm:$0xff]
          %v3642 = vld [vmem:[#allocation2 + $0x4e8] sm:$0xff]
          %v3643 = vld [vmem:[#allocation2 + $0x4f0] sm:$0xff]
          %v3644 = vld [vmem:[#allocation2 + $0x4f8] sm:$0xff]
          %v3645 = vld [vmem:[#allocation2 + $0x500] sm:$0xff]
          %v3646 = vld [vmem:[#allocation2 + $0x508] sm:$0xff]
          %v3647 = vld [vmem:[#allocation2 + $0x510] sm:$0xff]
          %v3648 = vld [vmem:[#allocation2 + $0x518] sm:$0xff]
          %v3649 = vld [vmem:[#allocation2 + $0x520] sm:$0xff]
          %v3650 = vld [vmem:[#allocation2 + $0x528] sm:$0xff]
          %v3651 = vld [vmem:[#allocation2 + $0x530] sm:$0xff]
          %v3652 = vld [vmem:[#allocation2 + $0x538] sm:$0xff]
          %v3653 = vld [vmem:[#allocation2 + $0x540] sm:$0xff]
          %v3654 = vld [vmem:[#allocation2 + $0x548] sm:$0xff]
          %v3655 = vld [vmem:[#allocation2 + $0x550] sm:$0xff]
          %v3656 = vld [vmem:[#allocation2 + $0x558] sm:$0xff]
          %v3657 = vld [vmem:[#allocation2 + $0x560] sm:$0xff]
          %v3658 = vld [vmem:[#allocation2 + $0x568] sm:$0xff]
          %v3659 = vld [vmem:[#allocation2 + $0x570] sm:$0xff]
          %v3660 = vld [vmem:[#allocation2 + $0x578] sm:$0xff]
          %v3661 = vld [vmem:[#allocation2 + $0x580] sm:$0xff]
          %v3662 = vld [vmem:[#allocation2 + $0x588] sm:$0xff]
          %v3663 = vld [vmem:[#allocation2 + $0x590] sm:$0xff]
          %v3664 = vld [vmem:[#allocation2 + $0x598] sm:$0xff]
          %v3665 = vld [vmem:[#allocation2 + $0x5a0] sm:$0xff]
          %v3666 = vld [vmem:[#allocation2 + $0x5a8] sm:$0xff]
          %v3667 = vld [vmem:[#allocation2 + $0x5b0] sm:$0xff]
          %v3668 = vld [vmem:[#allocation2 + $0x5b8] sm:$0xff]
          %v3669 = vld [vmem:[#allocation2 + $0x5c0] sm:$0xff]
          %v3670 = vld [vmem:[#allocation2 + $0x5c8] sm:$0xff]
          %v3671 = vld [vmem:[#allocation2 + $0x5d0] sm:$0xff]
          %v3672 = vld [vmem:[#allocation2 + $0x5d8] sm:$0xff]
          %v3673 = vld [vmem:[#allocation2 + $0x5e0] sm:$0xff]
          %v3674 = vld [vmem:[#allocation2 + $0x5e8] sm:$0xff]
          %v3675 = vld [vmem:[#allocation2 + $0x5f0] sm:$0xff]
          %v3676 = vld [vmem:[#allocation2 + $0x5f8] sm:$0xff]
          %v3677 = vld [vmem:[#allocation2 + $0x600] sm:$0xff]
          %v3678 = vld [vmem:[#allocation2 + $0x608] sm:$0xff]
          %v3679 = vld [vmem:[#allocation2 + $0x610] sm:$0xff]
          %v3680 = vld [vmem:[#allocation2 + $0x618] sm:$0xff]
          %v3681 = vld [vmem:[#allocation2 + $0x620] sm:$0xff]
          %v3682 = vld [vmem:[#allocation2 + $0x628] sm:$0xff]
          %v3683 = vld [vmem:[#allocation2 + $0x630] sm:$0xff]
          %v3684 = vld [vmem:[#allocation2 + $0x638] sm:$0xff]
          %v3685 = vld [vmem:[#allocation2 + $0x640] sm:$0xff]
          %v3686 = vld [vmem:[#allocation2 + $0x648] sm:$0xff]
          %v3687 = vld [vmem:[#allocation2 + $0x650] sm:$0xff]
          %v3688 = vld [vmem:[#allocation2 + $0x658] sm:$0xff]
          %v3689 = vld [vmem:[#allocation2 + $0x660] sm:$0xff]
          %v3690 = vld [vmem:[#allocation2 + $0x668] sm:$0xff]
          %v3691 = vld [vmem:[#allocation2 + $0x670] sm:$0xff]
          %v3692 = vld [vmem:[#allocation2 + $0x678] sm:$0xff]
          %v3693 = vld [vmem:[#allocation2 + $0x680] sm:$0xff]
          %v3694 = vld [vmem:[#allocation2 + $0x688] sm:$0xff]
          %v3695 = vld [vmem:[#allocation2 + $0x690] sm:$0xff]
          %v3696 = vld [vmem:[#allocation2 + $0x698] sm:$0xff]
          %v3697 = vld [vmem:[#allocation2 + $0x6a0] sm:$0xff]
          %v3698 = vld [vmem:[#allocation2 + $0x6a8] sm:$0xff]
          %v3699 = vld [vmem:[#allocation2 + $0x6b0] sm:$0xff]
          %v3700 = vld [vmem:[#allocation2 + $0x6b8] sm:$0xff]
          %v3701 = vld [vmem:[#allocation2 + $0x6c0] sm:$0xff]
          %v3702 = vld [vmem:[#allocation2 + $0x6c8] sm:$0xff]
          %v3703 = vld [vmem:[#allocation2 + $0x6d0] sm:$0xff]
          %v3704 = vld [vmem:[#allocation2 + $0x6d8] sm:$0xff]
          %v3705 = vld [vmem:[#allocation2 + $0x6e0] sm:$0xff]
          %v3706 = vld [vmem:[#allocation2 + $0x6e8] sm:$0xff]
          %v3707 = vld [vmem:[#allocation2 + $0x6f0] sm:$0xff]
          %v3708 = vld [vmem:[#allocation2 + $0x6f8] sm:$0xff]
          %v3709 = vld [vmem:[#allocation2 + $0x700] sm:$0xff]
          %v3710 = vld [vmem:[#allocation2 + $0x708] sm:$0xff]
          %v3711 = vld [vmem:[#allocation2 + $0x710] sm:$0xff]
          %v3712 = vld [vmem:[#allocation2 + $0x718] sm:$0xff]
          %v3713 = vld [vmem:[#allocation2 + $0x720] sm:$0xff]
          %v3714 = vld [vmem:[#allocation2 + $0x728] sm:$0xff]
          %v3715 = vld [vmem:[#allocation2 + $0x730] sm:$0xff]
          %v3716 = vld [vmem:[#allocation2 + $0x738] sm:$0xff]
          %v3717 = vld [vmem:[#allocation2 + $0x740] sm:$0xff]
          %v3718 = vld [vmem:[#allocation2 + $0x748] sm:$0xff]
          %v3719 = vld [vmem:[#allocation2 + $0x750] sm:$0xff]
          %v3720 = vld [vmem:[#allocation2 + $0x758] sm:$0xff]
          %v3721 = vld [vmem:[#allocation2 + $0x760] sm:$0xff]
          %v3722 = vld [vmem:[#allocation2 + $0x768] sm:$0xff]
          %v3723 = vld [vmem:[#allocation2 + $0x770] sm:$0xff]
          %v3724 = vld [vmem:[#allocation2 + $0x778] sm:$0xff]
          %v3725 = vld [vmem:[#allocation2 + $0x780] sm:$0xff]
          %v3726 = vld [vmem:[#allocation2 + $0x788] sm:$0xff]
          %v3727 = vld [vmem:[#allocation2 + $0x790] sm:$0xff]
          %v3728 = vld [vmem:[#allocation2 + $0x798] sm:$0xff]
          %v3729 = vld [vmem:[#allocation2 + $0x7a0] sm:$0xff]
          %v3730 = vld [vmem:[#allocation2 + $0x7a8] sm:$0xff]
          %v3731 = vld [vmem:[#allocation2 + $0x7b0] sm:$0xff]
          %v3732 = vld [vmem:[#allocation2 + $0x7b8] sm:$0xff]
          %v3733 = vld [vmem:[#allocation2 + $0x7c0] sm:$0xff]
          %v3734 = vld [vmem:[#allocation2 + $0x7c8] sm:$0xff]
          %v3735 = vld [vmem:[#allocation2 + $0x7d0] sm:$0xff]
          %v3736 = vld [vmem:[#allocation2 + $0x7d8] sm:$0xff]
          %v3737 = vld [vmem:[#allocation2 + $0x7e0] sm:$0xff]
          %v3738 = vld [vmem:[#allocation2 + $0x7e8] sm:$0xff]
          %v3739 = vld [vmem:[#allocation2 + $0x7f0] sm:$0xff]
          %v3740 = vld [vmem:[#allocation2 + $0x7f8] sm:$0xff]
          %v3741 = vld [vmem:[#allocation8] sm:$0x1]
          %v3743 = vlaneseq
          %v3744 = vshrl.u32 %v3743, 7
          %v3745 = vsub.s32 0, %v3744
          %v3746 = vrot.slane %v3741, %v3745
          %v3748 = vmul.f32 %v3485, %v3746
          %v3749 = vmul.f32 %v3486, %v3746
          %v3750 = vmul.f32 %v3487, %v3746
          %v3751 = vmul.f32 %v3488, %v3746
          %v3752 = vmul.f32 %v3489, %v3746
          %v3753 = vmul.f32 %v3490, %v3746
          %v3754 = vmul.f32 %v3491, %v3746
          %v3755 = vmul.f32 %v3492, %v3746
          %v3756 = vmul.f32 %v3493, %v3746
          %v3757 = vmul.f32 %v3494, %v3746
          %v3758 = vmul.f32 %v3495, %v3746
          %v3759 = vmul.f32 %v3496, %v3746
          %v3760 = vmul.f32 %v3497, %v3746
          %v3761 = vmul.f32 %v3498, %v3746
          %v3762 = vmul.f32 %v3499, %v3746
          %v3763 = vmul.f32 %v3500, %v3746
          %v3764 = vmul.f32 %v3501, %v3746
          %v3765 = vmul.f32 %v3502, %v3746
          %v3766 = vmul.f32 %v3503, %v3746
          %v3767 = vmul.f32 %v3504, %v3746
          %v3768 = vmul.f32 %v3505, %v3746
          %v3769 = vmul.f32 %v3506, %v3746
          %v3770 = vmul.f32 %v3507, %v3746
          %v3771 = vmul.f32 %v3508, %v3746
          %v3772 = vmul.f32 %v3509, %v3746
          %v3773 = vmul.f32 %v3510, %v3746
          %v3774 = vmul.f32 %v3511, %v3746
          %v3775 = vmul.f32 %v3512, %v3746
          %v3776 = vmul.f32 %v3513, %v3746
          %v3777 = vmul.f32 %v3514, %v3746
          %v3778 = vmul.f32 %v3515, %v3746
          %v3779 = vmul.f32 %v3516, %v3746
          %v3780 = vmul.f32 %v3517, %v3746
          %v3781 = vmul.f32 %v3518, %v3746
          %v3782 = vmul.f32 %v3519, %v3746
          %v3783 = vmul.f32 %v3520, %v3746
          %v3784 = vmul.f32 %v3521, %v3746
          %v3785 = vmul.f32 %v3522, %v3746
          %v3786 = vmul.f32 %v3523, %v3746
          %v3787 = vmul.f32 %v3524, %v3746
          %v3788 = vmul.f32 %v3525, %v3746
          %v3789 = vmul.f32 %v3526, %v3746
          %v3790 = vmul.f32 %v3527, %v3746
          %v3791 = vmul.f32 %v3528, %v3746
          %v3792 = vmul.f32 %v3529, %v3746
          %v3793 = vmul.f32 %v3530, %v3746
          %v3794 = vmul.f32 %v3531, %v3746
          %v3795 = vmul.f32 %v3532, %v3746
          %v3796 = vmul.f32 %v3533, %v3746
          %v3797 = vmul.f32 %v3534, %v3746
          %v3798 = vmul.f32 %v3535, %v3746
          %v3799 = vmul.f32 %v3536, %v3746
          %v3800 = vmul.f32 %v3537, %v3746
          %v3801 = vmul.f32 %v3538, %v3746
          %v3802 = vmul.f32 %v3539, %v3746
          %v3803 = vmul.f32 %v3540, %v3746
          %v3804 = vmul.f32 %v3541, %v3746
          %v3805 = vmul.f32 %v3542, %v3746
          %v3806 = vmul.f32 %v3543, %v3746
          %v3807 = vmul.f32 %v3544, %v3746
          %v3808 = vmul.f32 %v3545, %v3746
          %v3809 = vmul.f32 %v3546, %v3746
          %v3810 = vmul.f32 %v3547, %v3746
          %v3811 = vmul.f32 %v3548, %v3746
          %v3812 = vmul.f32 %v3549, %v3746
          %v3813 = vmul.f32 %v3550, %v3746
          %v3814 = vmul.f32 %v3551, %v3746
          %v3815 = vmul.f32 %v3552, %v3746
          %v3816 = vmul.f32 %v3553, %v3746
          %v3817 = vmul.f32 %v3554, %v3746
          %v3818 = vmul.f32 %v3555, %v3746
          %v3819 = vmul.f32 %v3556, %v3746
          %v3820 = vmul.f32 %v3557, %v3746
          %v3821 = vmul.f32 %v3558, %v3746
          %v3822 = vmul.f32 %v3559, %v3746
          %v3823 = vmul.f32 %v3560, %v3746
          %v3824 = vmul.f32 %v3561, %v3746
          %v3825 = vmul.f32 %v3562, %v3746
          %v3826 = vmul.f32 %v3563, %v3746
          %v3827 = vmul.f32 %v3564, %v3746
          %v3828 = vmul.f32 %v3565, %v3746
          %v3829 = vmul.f32 %v3566, %v3746
          %v3830 = vmul.f32 %v3567, %v3746
          %v3831 = vmul.f32 %v3568, %v3746
          %v3832 = vmul.f32 %v3569, %v3746
          %v3833 = vmul.f32 %v3570, %v3746
          %v3834 = vmul.f32 %v3571, %v3746
          %v3835 = vmul.f32 %v3572, %v3746
          %v3836 = vmul.f32 %v3573, %v3746
          %v3837 = vmul.f32 %v3574, %v3746
          %v3838 = vmul.f32 %v3575, %v3746
          %v3839 = vmul.f32 %v3576, %v3746
          %v3840 = vmul.f32 %v3577, %v3746
          %v3841 = vmul.f32 %v3578, %v3746
          %v3842 = vmul.f32 %v3579, %v3746
          %v3843 = vmul.f32 %v3580, %v3746
          %v3844 = vmul.f32 %v3581, %v3746
          %v3845 = vmul.f32 %v3582, %v3746
          %v3846 = vmul.f32 %v3583, %v3746
          %v3847 = vmul.f32 %v3584, %v3746
          %v3848 = vmul.f32 %v3585, %v3746
          %v3849 = vmul.f32 %v3586, %v3746
          %v3850 = vmul.f32 %v3587, %v3746
          %v3851 = vmul.f32 %v3588, %v3746
          %v3852 = vmul.f32 %v3589, %v3746
          %v3853 = vmul.f32 %v3590, %v3746
          %v3854 = vmul.f32 %v3591, %v3746
          %v3855 = vmul.f32 %v3592, %v3746
          %v3856 = vmul.f32 %v3593, %v3746
          %v3857 = vmul.f32 %v3594, %v3746
          %v3858 = vmul.f32 %v3595, %v3746
          %v3859 = vmul.f32 %v3596, %v3746
          %v3860 = vmul.f32 %v3597, %v3746
          %v3861 = vmul.f32 %v3598, %v3746
          %v3862 = vmul.f32 %v3599, %v3746
          %v3863 = vmul.f32 %v3600, %v3746
          %v3864 = vmul.f32 %v3601, %v3746
          %v3865 = vmul.f32 %v3602, %v3746
          %v3866 = vmul.f32 %v3603, %v3746
          %v3867 = vmul.f32 %v3604, %v3746
          %v3868 = vmul.f32 %v3605, %v3746
          %v3869 = vmul.f32 %v3606, %v3746
          %v3870 = vmul.f32 %v3607, %v3746
          %v3871 = vmul.f32 %v3608, %v3746
          %v3872 = vmul.f32 %v3609, %v3746
          %v3873 = vmul.f32 %v3610, %v3746
          %v3874 = vmul.f32 %v3611, %v3746
          %v3875 = vmul.f32 %v3612, %v3746
          %v3876 = vmul.f32 %v3613, %v3746
          %v3877 = vmul.f32 %v3614, %v3746
          %v3878 = vmul.f32 %v3615, %v3746
          %v3879 = vmul.f32 %v3616, %v3746
          %v3880 = vmul.f32 %v3617, %v3746
          %v3881 = vmul.f32 %v3618, %v3746
          %v3882 = vmul.f32 %v3619, %v3746
          %v3883 = vmul.f32 %v3620, %v3746
          %v3884 = vmul.f32 %v3621, %v3746
          %v3885 = vmul.f32 %v3622, %v3746
          %v3886 = vmul.f32 %v3623, %v3746
          %v3887 = vmul.f32 %v3624, %v3746
          %v3888 = vmul.f32 %v3625, %v3746
          %v3889 = vmul.f32 %v3626, %v3746
          %v3890 = vmul.f32 %v3627, %v3746
          %v3891 = vmul.f32 %v3628, %v3746
          %v3892 = vmul.f32 %v3629, %v3746
          %v3893 = vmul.f32 %v3630, %v3746
          %v3894 = vmul.f32 %v3631, %v3746
          %v3895 = vmul.f32 %v3632, %v3746
          %v3896 = vmul.f32 %v3633, %v3746
          %v3897 = vmul.f32 %v3634, %v3746
          %v3898 = vmul.f32 %v3635, %v3746
          %v3899 = vmul.f32 %v3636, %v3746
          %v3900 = vmul.f32 %v3637, %v3746
          %v3901 = vmul.f32 %v3638, %v3746
          %v3902 = vmul.f32 %v3639, %v3746
          %v3903 = vmul.f32 %v3640, %v3746
          %v3904 = vmul.f32 %v3641, %v3746
          %v3905 = vmul.f32 %v3642, %v3746
          %v3906 = vmul.f32 %v3643, %v3746
          %v3907 = vmul.f32 %v3644, %v3746
          %v3908 = vmul.f32 %v3645, %v3746
          %v3909 = vmul.f32 %v3646, %v3746
          %v3910 = vmul.f32 %v3647, %v3746
          %v3911 = vmul.f32 %v3648, %v3746
          %v3912 = vmul.f32 %v3649, %v3746
          %v3913 = vmul.f32 %v3650, %v3746
          %v3914 = vmul.f32 %v3651, %v3746
          %v3915 = vmul.f32 %v3652, %v3746
          %v3916 = vmul.f32 %v3653, %v3746
          %v3917 = vmul.f32 %v3654, %v3746
          %v3918 = vmul.f32 %v3655, %v3746
          %v3919 = vmul.f32 %v3656, %v3746
          %v3920 = vmul.f32 %v3657, %v3746
          %v3921 = vmul.f32 %v3658, %v3746
          %v3922 = vmul.f32 %v3659, %v3746
          %v3923 = vmul.f32 %v3660, %v3746
          %v3924 = vmul.f32 %v3661, %v3746
          %v3925 = vmul.f32 %v3662, %v3746
          %v3926 = vmul.f32 %v3663, %v3746
          %v3927 = vmul.f32 %v3664, %v3746
          %v3928 = vmul.f32 %v3665, %v3746
          %v3929 = vmul.f32 %v3666, %v3746
          %v3930 = vmul.f32 %v3667, %v3746
          %v3931 = vmul.f32 %v3668, %v3746
          %v3932 = vmul.f32 %v3669, %v3746
          %v3933 = vmul.f32 %v3670, %v3746
          %v3934 = vmul.f32 %v3671, %v3746
          %v3935 = vmul.f32 %v3672, %v3746
          %v3936 = vmul.f32 %v3673, %v3746
          %v3937 = vmul.f32 %v3674, %v3746
          %v3938 = vmul.f32 %v3675, %v3746
          %v3939 = vmul.f32 %v3676, %v3746
          %v3940 = vmul.f32 %v3677, %v3746
          %v3941 = vmul.f32 %v3678, %v3746
          %v3942 = vmul.f32 %v3679, %v3746
          %v3943 = vmul.f32 %v3680, %v3746
          %v3944 = vmul.f32 %v3681, %v3746
          %v3945 = vmul.f32 %v3682, %v3746
          %v3946 = vmul.f32 %v3683, %v3746
          %v3947 = vmul.f32 %v3684, %v3746
          %v3948 = vmul.f32 %v3685, %v3746
          %v3949 = vmul.f32 %v3686, %v3746
          %v3950 = vmul.f32 %v3687, %v3746
          %v3951 = vmul.f32 %v3688, %v3746
          %v3952 = vmul.f32 %v3689, %v3746
          %v3953 = vmul.f32 %v3690, %v3746
          %v3954 = vmul.f32 %v3691, %v3746
          %v3955 = vmul.f32 %v3692, %v3746
          %v3956 = vmul.f32 %v3693, %v3746
          %v3957 = vmul.f32 %v3694, %v3746
          %v3958 = vmul.f32 %v3695, %v3746
          %v3959 = vmul.f32 %v3696, %v3746
          %v3960 = vmul.f32 %v3697, %v3746
          %v3961 = vmul.f32 %v3698, %v3746
          %v3962 = vmul.f32 %v3699, %v3746
          %v3963 = vmul.f32 %v3700, %v3746
          %v3964 = vmul.f32 %v3701, %v3746
          %v3965 = vmul.f32 %v3702, %v3746
          %v3966 = vmul.f32 %v3703, %v3746
          %v3967 = vmul.f32 %v3704, %v3746
          %v3968 = vmul.f32 %v3705, %v3746
          %v3969 = vmul.f32 %v3706, %v3746
          %v3970 = vmul.f32 %v3707, %v3746
          %v3971 = vmul.f32 %v3708, %v3746
          %v3972 = vmul.f32 %v3709, %v3746
          %v3973 = vmul.f32 %v3710, %v3746
          %v3974 = vmul.f32 %v3711, %v3746
          %v3975 = vmul.f32 %v3712, %v3746
          %v3976 = vmul.f32 %v3713, %v3746
          %v3977 = vmul.f32 %v3714, %v3746
          %v3978 = vmul.f32 %v3715, %v3746
          %v3979 = vmul.f32 %v3716, %v3746
          %v3980 = vmul.f32 %v3717, %v3746
          %v3981 = vmul.f32 %v3718, %v3746
          %v3982 = vmul.f32 %v3719, %v3746
          %v3983 = vmul.f32 %v3720, %v3746
          %v3984 = vmul.f32 %v3721, %v3746
          %v3985 = vmul.f32 %v3722, %v3746
          %v3986 = vmul.f32 %v3723, %v3746
          %v3987 = vmul.f32 %v3724, %v3746
          %v3988 = vmul.f32 %v3725, %v3746
          %v3989 = vmul.f32 %v3726, %v3746
          %v3990 = vmul.f32 %v3727, %v3746
          %v3991 = vmul.f32 %v3728, %v3746
          %v3992 = vmul.f32 %v3729, %v3746
          %v3993 = vmul.f32 %v3730, %v3746
          %v3994 = vmul.f32 %v3731, %v3746
          %v3995 = vmul.f32 %v3732, %v3746
          %v3996 = vmul.f32 %v3733, %v3746
          %v3997 = vmul.f32 %v3734, %v3746
          %v3998 = vmul.f32 %v3735, %v3746
          %v3999 = vmul.f32 %v3736, %v3746
          %v4000 = vmul.f32 %v3737, %v3746
          %v4001 = vmul.f32 %v3738, %v3746
          %v4002 = vmul.f32 %v3739, %v3746
          %v4003 = vmul.f32 %v3740, %v3746
          %v4004 = vld [vmem:[#allocation9] sm:$0x1]
          %v4006 = vlaneseq
          %v4007 = vshrl.u32 %v4006, 7
          %v4008 = vsub.s32 0, %v4007
          %v4009 = vrot.slane %v4004, %v4008
          %v4011 = vadd.f32 %v3748, %v4009
          %v4012 = vadd.f32 %v3749, %v4009
          %v4013 = vadd.f32 %v3750, %v4009
          %v4014 = vadd.f32 %v3751, %v4009
          %v4015 = vadd.f32 %v3752, %v4009
          %v4016 = vadd.f32 %v3753, %v4009
          %v4017 = vadd.f32 %v3754, %v4009
          %v4018 = vadd.f32 %v3755, %v4009
          %v4019 = vadd.f32 %v3756, %v4009
          %v4020 = vadd.f32 %v3757, %v4009
          %v4021 = vadd.f32 %v3758, %v4009
          %v4022 = vadd.f32 %v3759, %v4009
          %v4023 = vadd.f32 %v3760, %v4009
          %v4024 = vadd.f32 %v3761, %v4009
          %v4025 = vadd.f32 %v3762, %v4009
          %v4026 = vadd.f32 %v3763, %v4009
          %v4027 = vadd.f32 %v3764, %v4009
          %v4028 = vadd.f32 %v3765, %v4009
          %v4029 = vadd.f32 %v3766, %v4009
          %v4030 = vadd.f32 %v3767, %v4009
          %v4031 = vadd.f32 %v3768, %v4009
          %v4032 = vadd.f32 %v3769, %v4009
          %v4033 = vadd.f32 %v3770, %v4009
          %v4034 = vadd.f32 %v3771, %v4009
          %v4035 = vadd.f32 %v3772, %v4009
          %v4036 = vadd.f32 %v3773, %v4009
          %v4037 = vadd.f32 %v3774, %v4009
          %v4038 = vadd.f32 %v3775, %v4009
          %v4039 = vadd.f32 %v3776, %v4009
          %v4040 = vadd.f32 %v3777, %v4009
          %v4041 = vadd.f32 %v3778, %v4009
          %v4042 = vadd.f32 %v3779, %v4009
          %v4043 = vadd.f32 %v3780, %v4009
          %v4044 = vadd.f32 %v3781, %v4009
          %v4045 = vadd.f32 %v3782, %v4009
          %v4046 = vadd.f32 %v3783, %v4009
          %v4047 = vadd.f32 %v3784, %v4009
          %v4048 = vadd.f32 %v3785, %v4009
          %v4049 = vadd.f32 %v3786, %v4009
          %v4050 = vadd.f32 %v3787, %v4009
          %v4051 = vadd.f32 %v3788, %v4009
          %v4052 = vadd.f32 %v3789, %v4009
          %v4053 = vadd.f32 %v3790, %v4009
          %v4054 = vadd.f32 %v3791, %v4009
          %v4055 = vadd.f32 %v3792, %v4009
          %v4056 = vadd.f32 %v3793, %v4009
          %v4057 = vadd.f32 %v3794, %v4009
          %v4058 = vadd.f32 %v3795, %v4009
          %v4059 = vadd.f32 %v3796, %v4009
          %v4060 = vadd.f32 %v3797, %v4009
          %v4061 = vadd.f32 %v3798, %v4009
          %v4062 = vadd.f32 %v3799, %v4009
          %v4063 = vadd.f32 %v3800, %v4009
          %v4064 = vadd.f32 %v3801, %v4009
          %v4065 = vadd.f32 %v3802, %v4009
          %v4066 = vadd.f32 %v3803, %v4009
          %v4067 = vadd.f32 %v3804, %v4009
          %v4068 = vadd.f32 %v3805, %v4009
          %v4069 = vadd.f32 %v3806, %v4009
          %v4070 = vadd.f32 %v3807, %v4009
          %v4071 = vadd.f32 %v3808, %v4009
          %v4072 = vadd.f32 %v3809, %v4009
          %v4073 = vadd.f32 %v3810, %v4009
          %v4074 = vadd.f32 %v3811, %v4009
          %v4075 = vadd.f32 %v3812, %v4009
          %v4076 = vadd.f32 %v3813, %v4009
          %v4077 = vadd.f32 %v3814, %v4009
          %v4078 = vadd.f32 %v3815, %v4009
          %v4079 = vadd.f32 %v3816, %v4009
          %v4080 = vadd.f32 %v3817, %v4009
          %v4081 = vadd.f32 %v3818, %v4009
          %v4082 = vadd.f32 %v3819, %v4009
          %v4083 = vadd.f32 %v3820, %v4009
          %v4084 = vadd.f32 %v3821, %v4009
          %v4085 = vadd.f32 %v3822, %v4009
          %v4086 = vadd.f32 %v3823, %v4009
          %v4087 = vadd.f32 %v3824, %v4009
          %v4088 = vadd.f32 %v3825, %v4009
          %v4089 = vadd.f32 %v3826, %v4009
          %v4090 = vadd.f32 %v3827, %v4009
          %v4091 = vadd.f32 %v3828, %v4009
          %v4092 = vadd.f32 %v3829, %v4009
          %v4093 = vadd.f32 %v3830, %v4009
          %v4094 = vadd.f32 %v3831, %v4009
          %v4095 = vadd.f32 %v3832, %v4009
          %v4096 = vadd.f32 %v3833, %v4009
          %v4097 = vadd.f32 %v3834, %v4009
          %v4098 = vadd.f32 %v3835, %v4009
          %v4099 = vadd.f32 %v3836, %v4009
          %v4100 = vadd.f32 %v3837, %v4009
          %v4101 = vadd.f32 %v3838, %v4009
          %v4102 = vadd.f32 %v3839, %v4009
          %v4103 = vadd.f32 %v3840, %v4009
          %v4104 = vadd.f32 %v3841, %v4009
          %v4105 = vadd.f32 %v3842, %v4009
          %v4106 = vadd.f32 %v3843, %v4009
          %v4107 = vadd.f32 %v3844, %v4009
          %v4108 = vadd.f32 %v3845, %v4009
          %v4109 = vadd.f32 %v3846, %v4009
          %v4110 = vadd.f32 %v3847, %v4009
          %v4111 = vadd.f32 %v3848, %v4009
          %v4112 = vadd.f32 %v3849, %v4009
          %v4113 = vadd.f32 %v3850, %v4009
          %v4114 = vadd.f32 %v3851, %v4009
          %v4115 = vadd.f32 %v3852, %v4009
          %v4116 = vadd.f32 %v3853, %v4009
          %v4117 = vadd.f32 %v3854, %v4009
          %v4118 = vadd.f32 %v3855, %v4009
          %v4119 = vadd.f32 %v3856, %v4009
          %v4120 = vadd.f32 %v3857, %v4009
          %v4121 = vadd.f32 %v3858, %v4009
          %v4122 = vadd.f32 %v3859, %v4009
          %v4123 = vadd.f32 %v3860, %v4009
          %v4124 = vadd.f32 %v3861, %v4009
          %v4125 = vadd.f32 %v3862, %v4009
          %v4126 = vadd.f32 %v3863, %v4009
          %v4127 = vadd.f32 %v3864, %v4009
          %v4128 = vadd.f32 %v3865, %v4009
          %v4129 = vadd.f32 %v3866, %v4009
          %v4130 = vadd.f32 %v3867, %v4009
          %v4131 = vadd.f32 %v3868, %v4009
          %v4132 = vadd.f32 %v3869, %v4009
          %v4133 = vadd.f32 %v3870, %v4009
          %v4134 = vadd.f32 %v3871, %v4009
          %v4135 = vadd.f32 %v3872, %v4009
          %v4136 = vadd.f32 %v3873, %v4009
          %v4137 = vadd.f32 %v3874, %v4009
          %v4138 = vadd.f32 %v3875, %v4009
          %v4139 = vadd.f32 %v3876, %v4009
          %v4140 = vadd.f32 %v3877, %v4009
          %v4141 = vadd.f32 %v3878, %v4009
          %v4142 = vadd.f32 %v3879, %v4009
          %v4143 = vadd.f32 %v3880, %v4009
          %v4144 = vadd.f32 %v3881, %v4009
          %v4145 = vadd.f32 %v3882, %v4009
          %v4146 = vadd.f32 %v3883, %v4009
          %v4147 = vadd.f32 %v3884, %v4009
          %v4148 = vadd.f32 %v3885, %v4009
          %v4149 = vadd.f32 %v3886, %v4009
          %v4150 = vadd.f32 %v3887, %v4009
          %v4151 = vadd.f32 %v3888, %v4009
          %v4152 = vadd.f32 %v3889, %v4009
          %v4153 = vadd.f32 %v3890, %v4009
          %v4154 = vadd.f32 %v3891, %v4009
          %v4155 = vadd.f32 %v3892, %v4009
          %v4156 = vadd.f32 %v3893, %v4009
          %v4157 = vadd.f32 %v3894, %v4009
          %v4158 = vadd.f32 %v3895, %v4009
          %v4159 = vadd.f32 %v3896, %v4009
          %v4160 = vadd.f32 %v3897, %v4009
          %v4161 = vadd.f32 %v3898, %v4009
          %v4162 = vadd.f32 %v3899, %v4009
          %v4163 = vadd.f32 %v3900, %v4009
          %v4164 = vadd.f32 %v3901, %v4009
          %v4165 = vadd.f32 %v3902, %v4009
          %v4166 = vadd.f32 %v3903, %v4009
          %v4167 = vadd.f32 %v3904, %v4009
          %v4168 = vadd.f32 %v3905, %v4009
          %v4169 = vadd.f32 %v3906, %v4009
          %v4170 = vadd.f32 %v3907, %v4009
          %v4171 = vadd.f32 %v3908, %v4009
          %v4172 = vadd.f32 %v3909, %v4009
          %v4173 = vadd.f32 %v3910, %v4009
          %v4174 = vadd.f32 %v3911, %v4009
          %v4175 = vadd.f32 %v3912, %v4009
          %v4176 = vadd.f32 %v3913, %v4009
          %v4177 = vadd.f32 %v3914, %v4009
          %v4178 = vadd.f32 %v3915, %v4009
          %v4179 = vadd.f32 %v3916, %v4009
          %v4180 = vadd.f32 %v3917, %v4009
          %v4181 = vadd.f32 %v3918, %v4009
          %v4182 = vadd.f32 %v3919, %v4009
          %v4183 = vadd.f32 %v3920, %v4009
          %v4184 = vadd.f32 %v3921, %v4009
          %v4185 = vadd.f32 %v3922, %v4009
          %v4186 = vadd.f32 %v3923, %v4009
          %v4187 = vadd.f32 %v3924, %v4009
          %v4188 = vadd.f32 %v3925, %v4009
          %v4189 = vadd.f32 %v3926, %v4009
          %v4190 = vadd.f32 %v3927, %v4009
          %v4191 = vadd.f32 %v3928, %v4009
          %v4192 = vadd.f32 %v3929, %v4009
          %v4193 = vadd.f32 %v3930, %v4009
          %v4194 = vadd.f32 %v3931, %v4009
          %v4195 = vadd.f32 %v3932, %v4009
          %v4196 = vadd.f32 %v3933, %v4009
          %v4197 = vadd.f32 %v3934, %v4009
          %v4198 = vadd.f32 %v3935, %v4009
          %v4199 = vadd.f32 %v3936, %v4009
          %v4200 = vadd.f32 %v3937, %v4009
          %v4201 = vadd.f32 %v3938, %v4009
          %v4202 = vadd.f32 %v3939, %v4009
          %v4203 = vadd.f32 %v3940, %v4009
          %v4204 = vadd.f32 %v3941, %v4009
          %v4205 = vadd.f32 %v3942, %v4009
          %v4206 = vadd.f32 %v3943, %v4009
          %v4207 = vadd.f32 %v3944, %v4009
          %v4208 = vadd.f32 %v3945, %v4009
          %v4209 = vadd.f32 %v3946, %v4009
          %v4210 = vadd.f32 %v3947, %v4009
          %v4211 = vadd.f32 %v3948, %v4009
          %v4212 = vadd.f32 %v3949, %v4009
          %v4213 = vadd.f32 %v3950, %v4009
          %v4214 = vadd.f32 %v3951, %v4009
          %v4215 = vadd.f32 %v3952, %v4009
          %v4216 = vadd.f32 %v3953, %v4009
          %v4217 = vadd.f32 %v3954, %v4009
          %v4218 = vadd.f32 %v3955, %v4009
          %v4219 = vadd.f32 %v3956, %v4009
          %v4220 = vadd.f32 %v3957, %v4009
          %v4221 = vadd.f32 %v3958, %v4009
          %v4222 = vadd.f32 %v3959, %v4009
          %v4223 = vadd.f32 %v3960, %v4009
          %v4224 = vadd.f32 %v3961, %v4009
          %v4225 = vadd.f32 %v3962, %v4009
          %v4226 = vadd.f32 %v3963, %v4009
          %v4227 = vadd.f32 %v3964, %v4009
          %v4228 = vadd.f32 %v3965, %v4009
          %v4229 = vadd.f32 %v3966, %v4009
          %v4230 = vadd.f32 %v3967, %v4009
          %v4231 = vadd.f32 %v3968, %v4009
          %v4232 = vadd.f32 %v3969, %v4009
          %v4233 = vadd.f32 %v3970, %v4009
          %v4234 = vadd.f32 %v3971, %v4009
          %v4235 = vadd.f32 %v3972, %v4009
          %v4236 = vadd.f32 %v3973, %v4009
          %v4237 = vadd.f32 %v3974, %v4009
          %v4238 = vadd.f32 %v3975, %v4009
          %v4239 = vadd.f32 %v3976, %v4009
          %v4240 = vadd.f32 %v3977, %v4009
          %v4241 = vadd.f32 %v3978, %v4009
          %v4242 = vadd.f32 %v3979, %v4009
          %v4243 = vadd.f32 %v3980, %v4009
          %v4244 = vadd.f32 %v3981, %v4009
          %v4245 = vadd.f32 %v3982, %v4009
          %v4246 = vadd.f32 %v3983, %v4009
          %v4247 = vadd.f32 %v3984, %v4009
          %v4248 = vadd.f32 %v3985, %v4009
          %v4249 = vadd.f32 %v3986, %v4009
          %v4250 = vadd.f32 %v3987, %v4009
          %v4251 = vadd.f32 %v3988, %v4009
          %v4252 = vadd.f32 %v3989, %v4009
          %v4253 = vadd.f32 %v3990, %v4009
          %v4254 = vadd.f32 %v3991, %v4009
          %v4255 = vadd.f32 %v3992, %v4009
          %v4256 = vadd.f32 %v3993, %v4009
          %v4257 = vadd.f32 %v3994, %v4009
          %v4258 = vadd.f32 %v3995, %v4009
          %v4259 = vadd.f32 %v3996, %v4009
          %v4260 = vadd.f32 %v3997, %v4009
          %v4261 = vadd.f32 %v3998, %v4009
          %v4262 = vadd.f32 %v3999, %v4009
          %v4263 = vadd.f32 %v4000, %v4009
          %v4264 = vadd.f32 %v4001, %v4009
          %v4265 = vadd.f32 %v4002, %v4009
          %v4266 = vadd.f32 %v4003, %v4009
          %v4267 = vmax.f32 %v4011, 0.0
          %v4268 = vmax.f32 %v4012, 0.0
          %v4269 = vmax.f32 %v4013, 0.0
          %v4270 = vmax.f32 %v4014, 0.0
          %v4271 = vmax.f32 %v4015, 0.0
          %v4272 = vmax.f32 %v4016, 0.0
          %v4273 = vmax.f32 %v4017, 0.0
          %v4274 = vmax.f32 %v4018, 0.0
          %v4275 = vmax.f32 %v4019, 0.0
          %v4276 = vmax.f32 %v4020, 0.0
          %v4277 = vmax.f32 %v4021, 0.0
          %v4278 = vmax.f32 %v4022, 0.0
          %v4279 = vmax.f32 %v4023, 0.0
          %v4280 = vmax.f32 %v4024, 0.0
          %v4281 = vmax.f32 %v4025, 0.0
          %v4282 = vmax.f32 %v4026, 0.0
          %v4283 = vmax.f32 %v4027, 0.0
          %v4284 = vmax.f32 %v4028, 0.0
          %v4285 = vmax.f32 %v4029, 0.0
          %v4286 = vmax.f32 %v4030, 0.0
          %v4287 = vmax.f32 %v4031, 0.0
          %v4288 = vmax.f32 %v4032, 0.0
          %v4289 = vmax.f32 %v4033, 0.0
          %v4290 = vmax.f32 %v4034, 0.0
          %v4291 = vmax.f32 %v4035, 0.0
          %v4292 = vmax.f32 %v4036, 0.0
          %v4293 = vmax.f32 %v4037, 0.0
          %v4294 = vmax.f32 %v4038, 0.0
          %v4295 = vmax.f32 %v4039, 0.0
          %v4296 = vmax.f32 %v4040, 0.0
          %v4297 = vmax.f32 %v4041, 0.0
          %v4298 = vmax.f32 %v4042, 0.0
          %v4299 = vmax.f32 %v4043, 0.0
          %v4300 = vmax.f32 %v4044, 0.0
          %v4301 = vmax.f32 %v4045, 0.0
          %v4302 = vmax.f32 %v4046, 0.0
          %v4303 = vmax.f32 %v4047, 0.0
          %v4304 = vmax.f32 %v4048, 0.0
          %v4305 = vmax.f32 %v4049, 0.0
          %v4306 = vmax.f32 %v4050, 0.0
          %v4307 = vmax.f32 %v4051, 0.0
          %v4308 = vmax.f32 %v4052, 0.0
          %v4309 = vmax.f32 %v4053, 0.0
          %v4310 = vmax.f32 %v4054, 0.0
          %v4311 = vmax.f32 %v4055, 0.0
          %v4312 = vmax.f32 %v4056, 0.0
          %v4313 = vmax.f32 %v4057, 0.0
          %v4314 = vmax.f32 %v4058, 0.0
          %v4315 = vmax.f32 %v4059, 0.0
          %v4316 = vmax.f32 %v4060, 0.0
          %v4317 = vmax.f32 %v4061, 0.0
          %v4318 = vmax.f32 %v4062, 0.0
          %v4319 = vmax.f32 %v4063, 0.0
          %v4320 = vmax.f32 %v4064, 0.0
          %v4321 = vmax.f32 %v4065, 0.0
          %v4322 = vmax.f32 %v4066, 0.0
          %v4323 = vmax.f32 %v4067, 0.0
          %v4324 = vmax.f32 %v4068, 0.0
          %v4325 = vmax.f32 %v4069, 0.0
          %v4326 = vmax.f32 %v4070, 0.0
          %v4327 = vmax.f32 %v4071, 0.0
          %v4328 = vmax.f32 %v4072, 0.0
          %v4329 = vmax.f32 %v4073, 0.0
          %v4330 = vmax.f32 %v4074, 0.0
          %v4331 = vmax.f32 %v4075, 0.0
          %v4332 = vmax.f32 %v4076, 0.0
          %v4333 = vmax.f32 %v4077, 0.0
          %v4334 = vmax.f32 %v4078, 0.0
          %v4335 = vmax.f32 %v4079, 0.0
          %v4336 = vmax.f32 %v4080, 0.0
          %v4337 = vmax.f32 %v4081, 0.0
          %v4338 = vmax.f32 %v4082, 0.0
          %v4339 = vmax.f32 %v4083, 0.0
          %v4340 = vmax.f32 %v4084, 0.0
          %v4341 = vmax.f32 %v4085, 0.0
          %v4342 = vmax.f32 %v4086, 0.0
          %v4343 = vmax.f32 %v4087, 0.0
          %v4344 = vmax.f32 %v4088, 0.0
          %v4345 = vmax.f32 %v4089, 0.0
          %v4346 = vmax.f32 %v4090, 0.0
          %v4347 = vmax.f32 %v4091, 0.0
          %v4348 = vmax.f32 %v4092, 0.0
          %v4349 = vmax.f32 %v4093, 0.0
          %v4350 = vmax.f32 %v4094, 0.0
          %v4351 = vmax.f32 %v4095, 0.0
          %v4352 = vmax.f32 %v4096, 0.0
          %v4353 = vmax.f32 %v4097, 0.0
          %v4354 = vmax.f32 %v4098, 0.0
          %v4355 = vmax.f32 %v4099, 0.0
          %v4356 = vmax.f32 %v4100, 0.0
          %v4357 = vmax.f32 %v4101, 0.0
          %v4358 = vmax.f32 %v4102, 0.0
          %v4359 = vmax.f32 %v4103, 0.0
          %v4360 = vmax.f32 %v4104, 0.0
          %v4361 = vmax.f32 %v4105, 0.0
          %v4362 = vmax.f32 %v4106, 0.0
          %v4363 = vmax.f32 %v4107, 0.0
          %v4364 = vmax.f32 %v4108, 0.0
          %v4365 = vmax.f32 %v4109, 0.0
          %v4366 = vmax.f32 %v4110, 0.0
          %v4367 = vmax.f32 %v4111, 0.0
          %v4368 = vmax.f32 %v4112, 0.0
          %v4369 = vmax.f32 %v4113, 0.0
          %v4370 = vmax.f32 %v4114, 0.0
          %v4371 = vmax.f32 %v4115, 0.0
          %v4372 = vmax.f32 %v4116, 0.0
          %v4373 = vmax.f32 %v4117, 0.0
          %v4374 = vmax.f32 %v4118, 0.0
          %v4375 = vmax.f32 %v4119, 0.0
          %v4376 = vmax.f32 %v4120, 0.0
          %v4377 = vmax.f32 %v4121, 0.0
          %v4378 = vmax.f32 %v4122, 0.0
          %v4379 = vmax.f32 %v4123, 0.0
          %v4380 = vmax.f32 %v4124, 0.0
          %v4381 = vmax.f32 %v4125, 0.0
          %v4382 = vmax.f32 %v4126, 0.0
          %v4383 = vmax.f32 %v4127, 0.0
          %v4384 = vmax.f32 %v4128, 0.0
          %v4385 = vmax.f32 %v4129, 0.0
          %v4386 = vmax.f32 %v4130, 0.0
          %v4387 = vmax.f32 %v4131, 0.0
          %v4388 = vmax.f32 %v4132, 0.0
          %v4389 = vmax.f32 %v4133, 0.0
          %v4390 = vmax.f32 %v4134, 0.0
          %v4391 = vmax.f32 %v4135, 0.0
          %v4392 = vmax.f32 %v4136, 0.0
          %v4393 = vmax.f32 %v4137, 0.0
          %v4394 = vmax.f32 %v4138, 0.0
          %v4395 = vmax.f32 %v4139, 0.0
          %v4396 = vmax.f32 %v4140, 0.0
          %v4397 = vmax.f32 %v4141, 0.0
          %v4398 = vmax.f32 %v4142, 0.0
          %v4399 = vmax.f32 %v4143, 0.0
          %v4400 = vmax.f32 %v4144, 0.0
          %v4401 = vmax.f32 %v4145, 0.0
          %v4402 = vmax.f32 %v4146, 0.0
          %v4403 = vmax.f32 %v4147, 0.0
          %v4404 = vmax.f32 %v4148, 0.0
          %v4405 = vmax.f32 %v4149, 0.0
          %v4406 = vmax.f32 %v4150, 0.0
          %v4407 = vmax.f32 %v4151, 0.0
          %v4408 = vmax.f32 %v4152, 0.0
          %v4409 = vmax.f32 %v4153, 0.0
          %v4410 = vmax.f32 %v4154, 0.0
          %v4411 = vmax.f32 %v4155, 0.0
          %v4412 = vmax.f32 %v4156, 0.0
          %v4413 = vmax.f32 %v4157, 0.0
          %v4414 = vmax.f32 %v4158, 0.0
          %v4415 = vmax.f32 %v4159, 0.0
          %v4416 = vmax.f32 %v4160, 0.0
          %v4417 = vmax.f32 %v4161, 0.0
          %v4418 = vmax.f32 %v4162, 0.0
          %v4419 = vmax.f32 %v4163, 0.0
          %v4420 = vmax.f32 %v4164, 0.0
          %v4421 = vmax.f32 %v4165, 0.0
          %v4422 = vmax.f32 %v4166, 0.0
          %v4423 = vmax.f32 %v4167, 0.0
          %v4424 = vmax.f32 %v4168, 0.0
          %v4425 = vmax.f32 %v4169, 0.0
          %v4426 = vmax.f32 %v4170, 0.0
          %v4427 = vmax.f32 %v4171, 0.0
          %v4428 = vmax.f32 %v4172, 0.0
          %v4429 = vmax.f32 %v4173, 0.0
          %v4430 = vmax.f32 %v4174, 0.0
          %v4431 = vmax.f32 %v4175, 0.0
          %v4432 = vmax.f32 %v4176, 0.0
          %v4433 = vmax.f32 %v4177, 0.0
          %v4434 = vmax.f32 %v4178, 0.0
          %v4435 = vmax.f32 %v4179, 0.0
          %v4436 = vmax.f32 %v4180, 0.0
          %v4437 = vmax.f32 %v4181, 0.0
          %v4438 = vmax.f32 %v4182, 0.0
          %v4439 = vmax.f32 %v4183, 0.0
          %v4440 = vmax.f32 %v4184, 0.0
          %v4441 = vmax.f32 %v4185, 0.0
          %v4442 = vmax.f32 %v4186, 0.0
          %v4443 = vmax.f32 %v4187, 0.0
          %v4444 = vmax.f32 %v4188, 0.0
          %v4445 = vmax.f32 %v4189, 0.0
          %v4446 = vmax.f32 %v4190, 0.0
          %v4447 = vmax.f32 %v4191, 0.0
          %v4448 = vmax.f32 %v4192, 0.0
          %v4449 = vmax.f32 %v4193, 0.0
          %v4450 = vmax.f32 %v4194, 0.0
          %v4451 = vmax.f32 %v4195, 0.0
          %v4452 = vmax.f32 %v4196, 0.0
          %v4453 = vmax.f32 %v4197, 0.0
          %v4454 = vmax.f32 %v4198, 0.0
          %v4455 = vmax.f32 %v4199, 0.0
          %v4456 = vmax.f32 %v4200, 0.0
          %v4457 = vmax.f32 %v4201, 0.0
          %v4458 = vmax.f32 %v4202, 0.0
          %v4459 = vmax.f32 %v4203, 0.0
          %v4460 = vmax.f32 %v4204, 0.0
          %v4461 = vmax.f32 %v4205, 0.0
          %v4462 = vmax.f32 %v4206, 0.0
          %v4463 = vmax.f32 %v4207, 0.0
          %v4464 = vmax.f32 %v4208, 0.0
          %v4465 = vmax.f32 %v4209, 0.0
          %v4466 = vmax.f32 %v4210, 0.0
          %v4467 = vmax.f32 %v4211, 0.0
          %v4468 = vmax.f32 %v4212, 0.0
          %v4469 = vmax.f32 %v4213, 0.0
          %v4470 = vmax.f32 %v4214, 0.0
          %v4471 = vmax.f32 %v4215, 0.0
          %v4472 = vmax.f32 %v4216, 0.0
          %v4473 = vmax.f32 %v4217, 0.0
          %v4474 = vmax.f32 %v4218, 0.0
          %v4475 = vmax.f32 %v4219, 0.0
          %v4476 = vmax.f32 %v4220, 0.0
          %v4477 = vmax.f32 %v4221, 0.0
          %v4478 = vmax.f32 %v4222, 0.0
          %v4479 = vmax.f32 %v4223, 0.0
          %v4480 = vmax.f32 %v4224, 0.0
          %v4481 = vmax.f32 %v4225, 0.0
          %v4482 = vmax.f32 %v4226, 0.0
          %v4483 = vmax.f32 %v4227, 0.0
          %v4484 = vmax.f32 %v4228, 0.0
          %v4485 = vmax.f32 %v4229, 0.0
          %v4486 = vmax.f32 %v4230, 0.0
          %v4487 = vmax.f32 %v4231, 0.0
          %v4488 = vmax.f32 %v4232, 0.0
          %v4489 = vmax.f32 %v4233, 0.0
          %v4490 = vmax.f32 %v4234, 0.0
          %v4491 = vmax.f32 %v4235, 0.0
          %v4492 = vmax.f32 %v4236, 0.0
          %v4493 = vmax.f32 %v4237, 0.0
          %v4494 = vmax.f32 %v4238, 0.0
          %v4495 = vmax.f32 %v4239, 0.0
          %v4496 = vmax.f32 %v4240, 0.0
          %v4497 = vmax.f32 %v4241, 0.0
          %v4498 = vmax.f32 %v4242, 0.0
          %v4499 = vmax.f32 %v4243, 0.0
          %v4500 = vmax.f32 %v4244, 0.0
          %v4501 = vmax.f32 %v4245, 0.0
          %v4502 = vmax.f32 %v4246, 0.0
          %v4503 = vmax.f32 %v4247, 0.0
          %v4504 = vmax.f32 %v4248, 0.0
          %v4505 = vmax.f32 %v4249, 0.0
          %v4506 = vmax.f32 %v4250, 0.0
          %v4507 = vmax.f32 %v4251, 0.0
          %v4508 = vmax.f32 %v4252, 0.0
          %v4509 = vmax.f32 %v4253, 0.0
          %v4510 = vmax.f32 %v4254, 0.0
          %v4511 = vmax.f32 %v4255, 0.0
          %v4512 = vmax.f32 %v4256, 0.0
          %v4513 = vmax.f32 %v4257, 0.0
          %v4514 = vmax.f32 %v4258, 0.0
          %v4515 = vmax.f32 %v4259, 0.0
          %v4516 = vmax.f32 %v4260, 0.0
          %v4517 = vmax.f32 %v4261, 0.0
          %v4518 = vmax.f32 %v4262, 0.0
          %v4519 = vmax.f32 %v4263, 0.0
          %v4520 = vmax.f32 %v4264, 0.0
          %v4521 = vmax.f32 %v4265, 0.0
          %v4522 = vmax.f32 %v4266, 0.0
          %v4523 = vpack.c.bf16 %v4268, %v4267
          %v4524 = vpack.c.bf16 %v4270, %v4269
          %v4525 = vpack.c.bf16 %v4272, %v4271
          %v4526 = vpack.c.bf16 %v4274, %v4273
          %v4527 = vpack.c.bf16 %v4276, %v4275
          %v4528 = vpack.c.bf16 %v4278, %v4277
          %v4529 = vpack.c.bf16 %v4280, %v4279
          %v4530 = vpack.c.bf16 %v4282, %v4281
          %v4531 = vpack.c.bf16 %v4284, %v4283
          %v4532 = vpack.c.bf16 %v4286, %v4285
          %v4533 = vpack.c.bf16 %v4288, %v4287
          %v4534 = vpack.c.bf16 %v4290, %v4289
          %v4535 = vpack.c.bf16 %v4292, %v4291
          %v4536 = vpack.c.bf16 %v4294, %v4293
          %v4537 = vpack.c.bf16 %v4296, %v4295
          %v4538 = vpack.c.bf16 %v4298, %v4297
          %v4539 = vpack.c.bf16 %v4300, %v4299
          %v4540 = vpack.c.bf16 %v4302, %v4301
          %v4541 = vpack.c.bf16 %v4304, %v4303
          %v4542 = vpack.c.bf16 %v4306, %v4305
          %v4543 = vpack.c.bf16 %v4308, %v4307
          %v4544 = vpack.c.bf16 %v4310, %v4309
          %v4545 = vpack.c.bf16 %v4312, %v4311
          %v4546 = vpack.c.bf16 %v4314, %v4313
          %v4547 = vpack.c.bf16 %v4316, %v4315
          %v4548 = vpack.c.bf16 %v4318, %v4317
          %v4549 = vpack.c.bf16 %v4320, %v4319
          %v4550 = vpack.c.bf16 %v4322, %v4321
          %v4551 = vpack.c.bf16 %v4324, %v4323
          %v4552 = vpack.c.bf16 %v4326, %v4325
          %v4553 = vpack.c.bf16 %v4328, %v4327
          %v4554 = vpack.c.bf16 %v4330, %v4329
          %v4555 = vpack.c.bf16 %v4332, %v4331
          %v4556 = vpack.c.bf16 %v4334, %v4333
          %v4557 = vpack.c.bf16 %v4336, %v4335
          %v4558 = vpack.c.bf16 %v4338, %v4337
          %v4559 = vpack.c.bf16 %v4340, %v4339
          %v4560 = vpack.c.bf16 %v4342, %v4341
          %v4561 = vpack.c.bf16 %v4344, %v4343
          %v4562 = vpack.c.bf16 %v4346, %v4345
          %v4563 = vpack.c.bf16 %v4348, %v4347
          %v4564 = vpack.c.bf16 %v4350, %v4349
          %v4565 = vpack.c.bf16 %v4352, %v4351
          %v4566 = vpack.c.bf16 %v4354, %v4353
          %v4567 = vpack.c.bf16 %v4356, %v4355
          %v4568 = vpack.c.bf16 %v4358, %v4357
          %v4569 = vpack.c.bf16 %v4360, %v4359
          %v4570 = vpack.c.bf16 %v4362, %v4361
          %v4571 = vpack.c.bf16 %v4364, %v4363
          %v4572 = vpack.c.bf16 %v4366, %v4365
          %v4573 = vpack.c.bf16 %v4368, %v4367
          %v4574 = vpack.c.bf16 %v4370, %v4369
          %v4575 = vpack.c.bf16 %v4372, %v4371
          %v4576 = vpack.c.bf16 %v4374, %v4373
          %v4577 = vpack.c.bf16 %v4376, %v4375
          %v4578 = vpack.c.bf16 %v4378, %v4377
          %v4579 = vpack.c.bf16 %v4380, %v4379
          %v4580 = vpack.c.bf16 %v4382, %v4381
          %v4581 = vpack.c.bf16 %v4384, %v4383
          %v4582 = vpack.c.bf16 %v4386, %v4385
          %v4583 = vpack.c.bf16 %v4388, %v4387
          %v4584 = vpack.c.bf16 %v4390, %v4389
          %v4585 = vpack.c.bf16 %v4392, %v4391
          %v4586 = vpack.c.bf16 %v4394, %v4393
          %v4587 = vpack.c.bf16 %v4396, %v4395
          %v4588 = vpack.c.bf16 %v4398, %v4397
          %v4589 = vpack.c.bf16 %v4400, %v4399
          %v4590 = vpack.c.bf16 %v4402, %v4401
          %v4591 = vpack.c.bf16 %v4404, %v4403
          %v4592 = vpack.c.bf16 %v4406, %v4405
          %v4593 = vpack.c.bf16 %v4408, %v4407
          %v4594 = vpack.c.bf16 %v4410, %v4409
          %v4595 = vpack.c.bf16 %v4412, %v4411
          %v4596 = vpack.c.bf16 %v4414, %v4413
          %v4597 = vpack.c.bf16 %v4416, %v4415
          %v4598 = vpack.c.bf16 %v4418, %v4417
          %v4599 = vpack.c.bf16 %v4420, %v4419
          %v4600 = vpack.c.bf16 %v4422, %v4421
          %v4601 = vpack.c.bf16 %v4424, %v4423
          %v4602 = vpack.c.bf16 %v4426, %v4425
          %v4603 = vpack.c.bf16 %v4428, %v4427
          %v4604 = vpack.c.bf16 %v4430, %v4429
          %v4605 = vpack.c.bf16 %v4432, %v4431
          %v4606 = vpack.c.bf16 %v4434, %v4433
          %v4607 = vpack.c.bf16 %v4436, %v4435
          %v4608 = vpack.c.bf16 %v4438, %v4437
          %v4609 = vpack.c.bf16 %v4440, %v4439
          %v4610 = vpack.c.bf16 %v4442, %v4441
          %v4611 = vpack.c.bf16 %v4444, %v4443
          %v4612 = vpack.c.bf16 %v4446, %v4445
          %v4613 = vpack.c.bf16 %v4448, %v4447
          %v4614 = vpack.c.bf16 %v4450, %v4449
          %v4615 = vpack.c.bf16 %v4452, %v4451
          %v4616 = vpack.c.bf16 %v4454, %v4453
          %v4617 = vpack.c.bf16 %v4456, %v4455
          %v4618 = vpack.c.bf16 %v4458, %v4457
          %v4619 = vpack.c.bf16 %v4460, %v4459
          %v4620 = vpack.c.bf16 %v4462, %v4461
          %v4621 = vpack.c.bf16 %v4464, %v4463
          %v4622 = vpack.c.bf16 %v4466, %v4465
          %v4623 = vpack.c.bf16 %v4468, %v4467
          %v4624 = vpack.c.bf16 %v4470, %v4469
          %v4625 = vpack.c.bf16 %v4472, %v4471
          %v4626 = vpack.c.bf16 %v4474, %v4473
          %v4627 = vpack.c.bf16 %v4476, %v4475
          %v4628 = vpack.c.bf16 %v4478, %v4477
          %v4629 = vpack.c.bf16 %v4480, %v4479
          %v4630 = vpack.c.bf16 %v4482, %v4481
          %v4631 = vpack.c.bf16 %v4484, %v4483
          %v4632 = vpack.c.bf16 %v4486, %v4485
          %v4633 = vpack.c.bf16 %v4488, %v4487
          %v4634 = vpack.c.bf16 %v4490, %v4489
          %v4635 = vpack.c.bf16 %v4492, %v4491
          %v4636 = vpack.c.bf16 %v4494, %v4493
          %v4637 = vpack.c.bf16 %v4496, %v4495
          %v4638 = vpack.c.bf16 %v4498, %v4497
          %v4639 = vpack.c.bf16 %v4500, %v4499
          %v4640 = vpack.c.bf16 %v4502, %v4501
          %v4641 = vpack.c.bf16 %v4504, %v4503
          %v4642 = vpack.c.bf16 %v4506, %v4505
          %v4643 = vpack.c.bf16 %v4508, %v4507
          %v4644 = vpack.c.bf16 %v4510, %v4509
          %v4645 = vpack.c.bf16 %v4512, %v4511
          %v4646 = vpack.c.bf16 %v4514, %v4513
          %v4647 = vpack.c.bf16 %v4516, %v4515
          %v4648 = vpack.c.bf16 %v4518, %v4517
          %v4649 = vpack.c.bf16 %v4520, %v4519
          %v4650 = vpack.c.bf16 %v4522, %v4521
          %v4779 = vunpack.c.l.b16 %v4523
          %v4780 = vunpack.c.h.b16 %v4523
          %v4781 = vunpack.c.l.b16 %v4524
          %v4782 = vunpack.c.h.b16 %v4524
          %v4783 = vunpack.c.l.b16 %v4525
          %v4784 = vunpack.c.h.b16 %v4525
          %v4785 = vunpack.c.l.b16 %v4526
          %v4786 = vunpack.c.h.b16 %v4526
          %v4787 = vunpack.c.l.b16 %v4527
          %v4788 = vunpack.c.h.b16 %v4527
          %v4789 = vunpack.c.l.b16 %v4528
          %v4790 = vunpack.c.h.b16 %v4528
          %v4791 = vunpack.c.l.b16 %v4529
          %v4792 = vunpack.c.h.b16 %v4529
          %v4793 = vunpack.c.l.b16 %v4530
          %v4794 = vunpack.c.h.b16 %v4530
          %v4795 = vunpack.c.l.b16 %v4531
          %v4796 = vunpack.c.h.b16 %v4531
          %v4797 = vunpack.c.l.b16 %v4532
          %v4798 = vunpack.c.h.b16 %v4532
          %v4799 = vunpack.c.l.b16 %v4533
          %v4800 = vunpack.c.h.b16 %v4533
          %v4801 = vunpack.c.l.b16 %v4534
          %v4802 = vunpack.c.h.b16 %v4534
          %v4803 = vunpack.c.l.b16 %v4535
          %v4804 = vunpack.c.h.b16 %v4535
          %v4805 = vunpack.c.l.b16 %v4536
          %v4806 = vunpack.c.h.b16 %v4536
          %v4807 = vunpack.c.l.b16 %v4537
          %v4808 = vunpack.c.h.b16 %v4537
          %v4809 = vunpack.c.l.b16 %v4538
          %v4810 = vunpack.c.h.b16 %v4538
          %v4811 = vunpack.c.l.b16 %v4539
          %v4812 = vunpack.c.h.b16 %v4539
          %v4813 = vunpack.c.l.b16 %v4540
          %v4814 = vunpack.c.h.b16 %v4540
          %v4815 = vunpack.c.l.b16 %v4541
          %v4816 = vunpack.c.h.b16 %v4541
          %v4817 = vunpack.c.l.b16 %v4542
          %v4818 = vunpack.c.h.b16 %v4542
          %v4819 = vunpack.c.l.b16 %v4543
          %v4820 = vunpack.c.h.b16 %v4543
          %v4821 = vunpack.c.l.b16 %v4544
          %v4822 = vunpack.c.h.b16 %v4544
          %v4823 = vunpack.c.l.b16 %v4545
          %v4824 = vunpack.c.h.b16 %v4545
          %v4825 = vunpack.c.l.b16 %v4546
          %v4826 = vunpack.c.h.b16 %v4546
          %v4827 = vunpack.c.l.b16 %v4547
          %v4828 = vunpack.c.h.b16 %v4547
          %v4829 = vunpack.c.l.b16 %v4548
          %v4830 = vunpack.c.h.b16 %v4548
          %v4831 = vunpack.c.l.b16 %v4549
          %v4832 = vunpack.c.h.b16 %v4549
          %v4833 = vunpack.c.l.b16 %v4550
          %v4834 = vunpack.c.h.b16 %v4550
          %v4835 = vunpack.c.l.b16 %v4551
          %v4836 = vunpack.c.h.b16 %v4551
          %v4837 = vunpack.c.l.b16 %v4552
          %v4838 = vunpack.c.h.b16 %v4552
          %v4839 = vunpack.c.l.b16 %v4553
          %v4840 = vunpack.c.h.b16 %v4553
          %v4841 = vunpack.c.l.b16 %v4554
          %v4842 = vunpack.c.h.b16 %v4554
          %v4843 = vunpack.c.l.b16 %v4555
          %v4844 = vunpack.c.h.b16 %v4555
          %v4845 = vunpack.c.l.b16 %v4556
          %v4846 = vunpack.c.h.b16 %v4556
          %v4847 = vunpack.c.l.b16 %v4557
          %v4848 = vunpack.c.h.b16 %v4557
          %v4849 = vunpack.c.l.b16 %v4558
          %v4850 = vunpack.c.h.b16 %v4558
          %v4851 = vunpack.c.l.b16 %v4559
          %v4852 = vunpack.c.h.b16 %v4559
          %v4853 = vunpack.c.l.b16 %v4560
          %v4854 = vunpack.c.h.b16 %v4560
          %v4855 = vunpack.c.l.b16 %v4561
          %v4856 = vunpack.c.h.b16 %v4561
          %v4857 = vunpack.c.l.b16 %v4562
          %v4858 = vunpack.c.h.b16 %v4562
          %v4859 = vunpack.c.l.b16 %v4563
          %v4860 = vunpack.c.h.b16 %v4563
          %v4861 = vunpack.c.l.b16 %v4564
          %v4862 = vunpack.c.h.b16 %v4564
          %v4863 = vunpack.c.l.b16 %v4565
          %v4864 = vunpack.c.h.b16 %v4565
          %v4865 = vunpack.c.l.b16 %v4566
          %v4866 = vunpack.c.h.b16 %v4566
          %v4867 = vunpack.c.l.b16 %v4567
          %v4868 = vunpack.c.h.b16 %v4567
          %v4869 = vunpack.c.l.b16 %v4568
          %v4870 = vunpack.c.h.b16 %v4568
          %v4871 = vunpack.c.l.b16 %v4569
          %v4872 = vunpack.c.h.b16 %v4569
          %v4873 = vunpack.c.l.b16 %v4570
          %v4874 = vunpack.c.h.b16 %v4570
          %v4875 = vunpack.c.l.b16 %v4571
          %v4876 = vunpack.c.h.b16 %v4571
          %v4877 = vunpack.c.l.b16 %v4572
          %v4878 = vunpack.c.h.b16 %v4572
          %v4879 = vunpack.c.l.b16 %v4573
          %v4880 = vunpack.c.h.b16 %v4573
          %v4881 = vunpack.c.l.b16 %v4574
          %v4882 = vunpack.c.h.b16 %v4574
          %v4883 = vunpack.c.l.b16 %v4575
          %v4884 = vunpack.c.h.b16 %v4575
          %v4885 = vunpack.c.l.b16 %v4576
          %v4886 = vunpack.c.h.b16 %v4576
          %v4887 = vunpack.c.l.b16 %v4577
          %v4888 = vunpack.c.h.b16 %v4577
          %v4889 = vunpack.c.l.b16 %v4578
          %v4890 = vunpack.c.h.b16 %v4578
          %v4891 = vunpack.c.l.b16 %v4579
          %v4892 = vunpack.c.h.b16 %v4579
          %v4893 = vunpack.c.l.b16 %v4580
          %v4894 = vunpack.c.h.b16 %v4580
          %v4895 = vunpack.c.l.b16 %v4581
          %v4896 = vunpack.c.h.b16 %v4581
          %v4897 = vunpack.c.l.b16 %v4582
          %v4898 = vunpack.c.h.b16 %v4582
          %v4899 = vunpack.c.l.b16 %v4583
          %v4900 = vunpack.c.h.b16 %v4583
          %v4901 = vunpack.c.l.b16 %v4584
          %v4902 = vunpack.c.h.b16 %v4584
          %v4903 = vunpack.c.l.b16 %v4585
          %v4904 = vunpack.c.h.b16 %v4585
          %v4905 = vunpack.c.l.b16 %v4586
          %v4906 = vunpack.c.h.b16 %v4586
          %v4907 = vunpack.c.l.b16 %v4587
          %v4908 = vunpack.c.h.b16 %v4587
          %v4909 = vunpack.c.l.b16 %v4588
          %v4910 = vunpack.c.h.b16 %v4588
          %v4911 = vunpack.c.l.b16 %v4589
          %v4912 = vunpack.c.h.b16 %v4589
          %v4913 = vunpack.c.l.b16 %v4590
          %v4914 = vunpack.c.h.b16 %v4590
          %v4915 = vunpack.c.l.b16 %v4591
          %v4916 = vunpack.c.h.b16 %v4591
          %v4917 = vunpack.c.l.b16 %v4592
          %v4918 = vunpack.c.h.b16 %v4592
          %v4919 = vunpack.c.l.b16 %v4593
          %v4920 = vunpack.c.h.b16 %v4593
          %v4921 = vunpack.c.l.b16 %v4594
          %v4922 = vunpack.c.h.b16 %v4594
          %v4923 = vunpack.c.l.b16 %v4595
          %v4924 = vunpack.c.h.b16 %v4595
          %v4925 = vunpack.c.l.b16 %v4596
          %v4926 = vunpack.c.h.b16 %v4596
          %v4927 = vunpack.c.l.b16 %v4597
          %v4928 = vunpack.c.h.b16 %v4597
          %v4929 = vunpack.c.l.b16 %v4598
          %v4930 = vunpack.c.h.b16 %v4598
          %v4931 = vunpack.c.l.b16 %v4599
          %v4932 = vunpack.c.h.b16 %v4599
          %v4933 = vunpack.c.l.b16 %v4600
          %v4934 = vunpack.c.h.b16 %v4600
          %v4935 = vunpack.c.l.b16 %v4601
          %v4936 = vunpack.c.h.b16 %v4601
          %v4937 = vunpack.c.l.b16 %v4602
          %v4938 = vunpack.c.h.b16 %v4602
          %v4939 = vunpack.c.l.b16 %v4603
          %v4940 = vunpack.c.h.b16 %v4603
          %v4941 = vunpack.c.l.b16 %v4604
          %v4942 = vunpack.c.h.b16 %v4604
          %v4943 = vunpack.c.l.b16 %v4605
          %v4944 = vunpack.c.h.b16 %v4605
          %v4945 = vunpack.c.l.b16 %v4606
          %v4946 = vunpack.c.h.b16 %v4606
          %v4947 = vunpack.c.l.b16 %v4607
          %v4948 = vunpack.c.h.b16 %v4607
          %v4949 = vunpack.c.l.b16 %v4608
          %v4950 = vunpack.c.h.b16 %v4608
          %v4951 = vunpack.c.l.b16 %v4609
          %v4952 = vunpack.c.h.b16 %v4609
          %v4953 = vunpack.c.l.b16 %v4610
          %v4954 = vunpack.c.h.b16 %v4610
          %v4955 = vunpack.c.l.b16 %v4611
          %v4956 = vunpack.c.h.b16 %v4611
          %v4957 = vunpack.c.l.b16 %v4612
          %v4958 = vunpack.c.h.b16 %v4612
          %v4959 = vunpack.c.l.b16 %v4613
          %v4960 = vunpack.c.h.b16 %v4613
          %v4961 = vunpack.c.l.b16 %v4614
          %v4962 = vunpack.c.h.b16 %v4614
          %v4963 = vunpack.c.l.b16 %v4615
          %v4964 = vunpack.c.h.b16 %v4615
          %v4965 = vunpack.c.l.b16 %v4616
          %v4966 = vunpack.c.h.b16 %v4616
          %v4967 = vunpack.c.l.b16 %v4617
          %v4968 = vunpack.c.h.b16 %v4617
          %v4969 = vunpack.c.l.b16 %v4618
          %v4970 = vunpack.c.h.b16 %v4618
          %v4971 = vunpack.c.l.b16 %v4619
          %v4972 = vunpack.c.h.b16 %v4619
          %v4973 = vunpack.c.l.b16 %v4620
          %v4974 = vunpack.c.h.b16 %v4620
          %v4975 = vunpack.c.l.b16 %v4621
          %v4976 = vunpack.c.h.b16 %v4621
          %v4977 = vunpack.c.l.b16 %v4622
          %v4978 = vunpack.c.h.b16 %v4622
          %v4979 = vunpack.c.l.b16 %v4623
          %v4980 = vunpack.c.h.b16 %v4623
          %v4981 = vunpack.c.l.b16 %v4624
          %v4982 = vunpack.c.h.b16 %v4624
          %v4983 = vunpack.c.l.b16 %v4625
          %v4984 = vunpack.c.h.b16 %v4625
          %v4985 = vunpack.c.l.b16 %v4626
          %v4986 = vunpack.c.h.b16 %v4626
          %v4987 = vunpack.c.l.b16 %v4627
          %v4988 = vunpack.c.h.b16 %v4627
          %v4989 = vunpack.c.l.b16 %v4628
          %v4990 = vunpack.c.h.b16 %v4628
          %v4991 = vunpack.c.l.b16 %v4629
          %v4992 = vunpack.c.h.b16 %v4629
          %v4993 = vunpack.c.l.b16 %v4630
          %v4994 = vunpack.c.h.b16 %v4630
          %v4995 = vunpack.c.l.b16 %v4631
          %v4996 = vunpack.c.h.b16 %v4631
          %v4997 = vunpack.c.l.b16 %v4632
          %v4998 = vunpack.c.h.b16 %v4632
          %v4999 = vunpack.c.l.b16 %v4633
          %v5000 = vunpack.c.h.b16 %v4633
          %v5001 = vunpack.c.l.b16 %v4634
          %v5002 = vunpack.c.h.b16 %v4634
          %v5003 = vunpack.c.l.b16 %v4635
          %v5004 = vunpack.c.h.b16 %v4635
          %v5005 = vunpack.c.l.b16 %v4636
          %v5006 = vunpack.c.h.b16 %v4636
          %v5007 = vunpack.c.l.b16 %v4637
          %v5008 = vunpack.c.h.b16 %v4637
          %v5009 = vunpack.c.l.b16 %v4638
          %v5010 = vunpack.c.h.b16 %v4638
          %v5011 = vunpack.c.l.b16 %v4639
          %v5012 = vunpack.c.h.b16 %v4639
          %v5013 = vunpack.c.l.b16 %v4640
          %v5014 = vunpack.c.h.b16 %v4640
          %v5015 = vunpack.c.l.b16 %v4641
          %v5016 = vunpack.c.h.b16 %v4641
          %v5017 = vunpack.c.l.b16 %v4642
          %v5018 = vunpack.c.h.b16 %v4642
          %v5019 = vunpack.c.l.b16 %v4643
          %v5020 = vunpack.c.h.b16 %v4643
          %v5021 = vunpack.c.l.b16 %v4644
          %v5022 = vunpack.c.h.b16 %v4644
          %v5023 = vunpack.c.l.b16 %v4645
          %v5024 = vunpack.c.h.b16 %v4645
          %v5025 = vunpack.c.l.b16 %v4646
          %v5026 = vunpack.c.h.b16 %v4646
          %v5027 = vunpack.c.l.b16 %v4647
          %v5028 = vunpack.c.h.b16 %v4647
          %v5029 = vunpack.c.l.b16 %v4648
          %v5030 = vunpack.c.h.b16 %v4648
          %v5031 = vunpack.c.l.b16 %v4649
          %v5032 = vunpack.c.h.b16 %v4649
          %v5033 = vunpack.c.l.b16 %v4650
          %v5034 = vunpack.c.h.b16 %v4650
          %v5035 = vpack.c.b16 %v4779, %v4779
          %v5036 = vpack.c.b16 %v4780, %v4780
          %v5037 = vpack.c.b16 %v4781, %v4781
          %v5038 = vpack.c.b16 %v4782, %v4782
          %v5039 = vpack.c.b16 %v4783, %v4783
          %v5040 = vpack.c.b16 %v4784, %v4784
          %v5041 = vpack.c.b16 %v4785, %v4785
          %v5042 = vpack.c.b16 %v4786, %v4786
          %v5043 = vpack.c.b16 %v4787, %v4787
          %v5044 = vpack.c.b16 %v4788, %v4788
          %v5045 = vpack.c.b16 %v4789, %v4789
          %v5046 = vpack.c.b16 %v4790, %v4790
          %v5047 = vpack.c.b16 %v4791, %v4791
          %v5048 = vpack.c.b16 %v4792, %v4792
          %v5049 = vpack.c.b16 %v4793, %v4793
          %v5050 = vpack.c.b16 %v4794, %v4794
          %v5051 = vpack.c.b16 %v4795, %v4795
          %v5052 = vpack.c.b16 %v4796, %v4796
          %v5053 = vpack.c.b16 %v4797, %v4797
          %v5054 = vpack.c.b16 %v4798, %v4798
          %v5055 = vpack.c.b16 %v4799, %v4799
          %v5056 = vpack.c.b16 %v4800, %v4800
          %v5057 = vpack.c.b16 %v4801, %v4801
          %v5058 = vpack.c.b16 %v4802, %v4802
          %v5059 = vpack.c.b16 %v4803, %v4803
          %v5060 = vpack.c.b16 %v4804, %v4804
          %v5061 = vpack.c.b16 %v4805, %v4805
          %v5062 = vpack.c.b16 %v4806, %v4806
          %v5063 = vpack.c.b16 %v4807, %v4807
          %v5064 = vpack.c.b16 %v4808, %v4808
          %v5065 = vpack.c.b16 %v4809, %v4809
          %v5066 = vpack.c.b16 %v4810, %v4810
          %v5067 = vpack.c.b16 %v4811, %v4811
          %v5068 = vpack.c.b16 %v4812, %v4812
          %v5069 = vpack.c.b16 %v4813, %v4813
          %v5070 = vpack.c.b16 %v4814, %v4814
          %v5071 = vpack.c.b16 %v4815, %v4815
          %v5072 = vpack.c.b16 %v4816, %v4816
          %v5073 = vpack.c.b16 %v4817, %v4817
          %v5074 = vpack.c.b16 %v4818, %v4818
          %v5075 = vpack.c.b16 %v4819, %v4819
          %v5076 = vpack.c.b16 %v4820, %v4820
          %v5077 = vpack.c.b16 %v4821, %v4821
          %v5078 = vpack.c.b16 %v4822, %v4822
          %v5079 = vpack.c.b16 %v4823, %v4823
          %v5080 = vpack.c.b16 %v4824, %v4824
          %v5081 = vpack.c.b16 %v4825, %v4825
          %v5082 = vpack.c.b16 %v4826, %v4826
          %v5083 = vpack.c.b16 %v4827, %v4827
          %v5084 = vpack.c.b16 %v4828, %v4828
          %v5085 = vpack.c.b16 %v4829, %v4829
          %v5086 = vpack.c.b16 %v4830, %v4830
          %v5087 = vpack.c.b16 %v4831, %v4831
          %v5088 = vpack.c.b16 %v4832, %v4832
          %v5089 = vpack.c.b16 %v4833, %v4833
          %v5090 = vpack.c.b16 %v4834, %v4834
          %v5091 = vpack.c.b16 %v4835, %v4835
          %v5092 = vpack.c.b16 %v4836, %v4836
          %v5093 = vpack.c.b16 %v4837, %v4837
          %v5094 = vpack.c.b16 %v4838, %v4838
          %v5095 = vpack.c.b16 %v4839, %v4839
          %v5096 = vpack.c.b16 %v4840, %v4840
          %v5097 = vpack.c.b16 %v4841, %v4841
          %v5098 = vpack.c.b16 %v4842, %v4842
          %v5099 = vpack.c.b16 %v4843, %v4843
          %v5100 = vpack.c.b16 %v4844, %v4844
          %v5101 = vpack.c.b16 %v4845, %v4845
          %v5102 = vpack.c.b16 %v4846, %v4846
          %v5103 = vpack.c.b16 %v4847, %v4847
          %v5104 = vpack.c.b16 %v4848, %v4848
          %v5105 = vpack.c.b16 %v4849, %v4849
          %v5106 = vpack.c.b16 %v4850, %v4850
          %v5107 = vpack.c.b16 %v4851, %v4851
          %v5108 = vpack.c.b16 %v4852, %v4852
          %v5109 = vpack.c.b16 %v4853, %v4853
          %v5110 = vpack.c.b16 %v4854, %v4854
          %v5111 = vpack.c.b16 %v4855, %v4855
          %v5112 = vpack.c.b16 %v4856, %v4856
          %v5113 = vpack.c.b16 %v4857, %v4857
          %v5114 = vpack.c.b16 %v4858, %v4858
          %v5115 = vpack.c.b16 %v4859, %v4859
          %v5116 = vpack.c.b16 %v4860, %v4860
          %v5117 = vpack.c.b16 %v4861, %v4861
          %v5118 = vpack.c.b16 %v4862, %v4862
          %v5119 = vpack.c.b16 %v4863, %v4863
          %v5120 = vpack.c.b16 %v4864, %v4864
          %v5121 = vpack.c.b16 %v4865, %v4865
          %v5122 = vpack.c.b16 %v4866, %v4866
          %v5123 = vpack.c.b16 %v4867, %v4867
          %v5124 = vpack.c.b16 %v4868, %v4868
          %v5125 = vpack.c.b16 %v4869, %v4869
          %v5126 = vpack.c.b16 %v4870, %v4870
          %v5127 = vpack.c.b16 %v4871, %v4871
          %v5128 = vpack.c.b16 %v4872, %v4872
          %v5129 = vpack.c.b16 %v4873, %v4873
          %v5130 = vpack.c.b16 %v4874, %v4874
          %v5131 = vpack.c.b16 %v4875, %v4875
          %v5132 = vpack.c.b16 %v4876, %v4876
          %v5133 = vpack.c.b16 %v4877, %v4877
          %v5134 = vpack.c.b16 %v4878, %v4878
          %v5135 = vpack.c.b16 %v4879, %v4879
          %v5136 = vpack.c.b16 %v4880, %v4880
          %v5137 = vpack.c.b16 %v4881, %v4881
          %v5138 = vpack.c.b16 %v4882, %v4882
          %v5139 = vpack.c.b16 %v4883, %v4883
          %v5140 = vpack.c.b16 %v4884, %v4884
          %v5141 = vpack.c.b16 %v4885, %v4885
          %v5142 = vpack.c.b16 %v4886, %v4886
          %v5143 = vpack.c.b16 %v4887, %v4887
          %v5144 = vpack.c.b16 %v4888, %v4888
          %v5145 = vpack.c.b16 %v4889, %v4889
          %v5146 = vpack.c.b16 %v4890, %v4890
          %v5147 = vpack.c.b16 %v4891, %v4891
          %v5148 = vpack.c.b16 %v4892, %v4892
          %v5149 = vpack.c.b16 %v4893, %v4893
          %v5150 = vpack.c.b16 %v4894, %v4894
          %v5151 = vpack.c.b16 %v4895, %v4895
          %v5152 = vpack.c.b16 %v4896, %v4896
          %v5153 = vpack.c.b16 %v4897, %v4897
          %v5154 = vpack.c.b16 %v4898, %v4898
          %v5155 = vpack.c.b16 %v4899, %v4899
          %v5156 = vpack.c.b16 %v4900, %v4900
          %v5157 = vpack.c.b16 %v4901, %v4901
          %v5158 = vpack.c.b16 %v4902, %v4902
          %v5159 = vpack.c.b16 %v4903, %v4903
          %v5160 = vpack.c.b16 %v4904, %v4904
          %v5161 = vpack.c.b16 %v4905, %v4905
          %v5162 = vpack.c.b16 %v4906, %v4906
          %v5163 = vpack.c.b16 %v4907, %v4907
          %v5164 = vpack.c.b16 %v4908, %v4908
          %v5165 = vpack.c.b16 %v4909, %v4909
          %v5166 = vpack.c.b16 %v4910, %v4910
          %v5167 = vpack.c.b16 %v4911, %v4911
          %v5168 = vpack.c.b16 %v4912, %v4912
          %v5169 = vpack.c.b16 %v4913, %v4913
          %v5170 = vpack.c.b16 %v4914, %v4914
          %v5171 = vpack.c.b16 %v4915, %v4915
          %v5172 = vpack.c.b16 %v4916, %v4916
          %v5173 = vpack.c.b16 %v4917, %v4917
          %v5174 = vpack.c.b16 %v4918, %v4918
          %v5175 = vpack.c.b16 %v4919, %v4919
          %v5176 = vpack.c.b16 %v4920, %v4920
          %v5177 = vpack.c.b16 %v4921, %v4921
          %v5178 = vpack.c.b16 %v4922, %v4922
          %v5179 = vpack.c.b16 %v4923, %v4923
          %v5180 = vpack.c.b16 %v4924, %v4924
          %v5181 = vpack.c.b16 %v4925, %v4925
          %v5182 = vpack.c.b16 %v4926, %v4926
          %v5183 = vpack.c.b16 %v4927, %v4927
          %v5184 = vpack.c.b16 %v4928, %v4928
          %v5185 = vpack.c.b16 %v4929, %v4929
          %v5186 = vpack.c.b16 %v4930, %v4930
          %v5187 = vpack.c.b16 %v4931, %v4931
          %v5188 = vpack.c.b16 %v4932, %v4932
          %v5189 = vpack.c.b16 %v4933, %v4933
          %v5190 = vpack.c.b16 %v4934, %v4934
          %v5191 = vpack.c.b16 %v4935, %v4935
          %v5192 = vpack.c.b16 %v4936, %v4936
          %v5193 = vpack.c.b16 %v4937, %v4937
          %v5194 = vpack.c.b16 %v4938, %v4938
          %v5195 = vpack.c.b16 %v4939, %v4939
          %v5196 = vpack.c.b16 %v4940, %v4940
          %v5197 = vpack.c.b16 %v4941, %v4941
          %v5198 = vpack.c.b16 %v4942, %v4942
          %v5199 = vpack.c.b16 %v4943, %v4943
          %v5200 = vpack.c.b16 %v4944, %v4944
          %v5201 = vpack.c.b16 %v4945, %v4945
          %v5202 = vpack.c.b16 %v4946, %v4946
          %v5203 = vpack.c.b16 %v4947, %v4947
          %v5204 = vpack.c.b16 %v4948, %v4948
          %v5205 = vpack.c.b16 %v4949, %v4949
          %v5206 = vpack.c.b16 %v4950, %v4950
          %v5207 = vpack.c.b16 %v4951, %v4951
          %v5208 = vpack.c.b16 %v4952, %v4952
          %v5209 = vpack.c.b16 %v4953, %v4953
          %v5210 = vpack.c.b16 %v4954, %v4954
          %v5211 = vpack.c.b16 %v4955, %v4955
          %v5212 = vpack.c.b16 %v4956, %v4956
          %v5213 = vpack.c.b16 %v4957, %v4957
          %v5214 = vpack.c.b16 %v4958, %v4958
          %v5215 = vpack.c.b16 %v4959, %v4959
          %v5216 = vpack.c.b16 %v4960, %v4960
          %v5217 = vpack.c.b16 %v4961, %v4961
          %v5218 = vpack.c.b16 %v4962, %v4962
          %v5219 = vpack.c.b16 %v4963, %v4963
          %v5220 = vpack.c.b16 %v4964, %v4964
          %v5221 = vpack.c.b16 %v4965, %v4965
          %v5222 = vpack.c.b16 %v4966, %v4966
          %v5223 = vpack.c.b16 %v4967, %v4967
          %v5224 = vpack.c.b16 %v4968, %v4968
          %v5225 = vpack.c.b16 %v4969, %v4969
          %v5226 = vpack.c.b16 %v4970, %v4970
          %v5227 = vpack.c.b16 %v4971, %v4971
          %v5228 = vpack.c.b16 %v4972, %v4972
          %v5229 = vpack.c.b16 %v4973, %v4973
          %v5230 = vpack.c.b16 %v4974, %v4974
          %v5231 = vpack.c.b16 %v4975, %v4975
          %v5232 = vpack.c.b16 %v4976, %v4976
          %v5233 = vpack.c.b16 %v4977, %v4977
          %v5234 = vpack.c.b16 %v4978, %v4978
          %v5235 = vpack.c.b16 %v4979, %v4979
          %v5236 = vpack.c.b16 %v4980, %v4980
          %v5237 = vpack.c.b16 %v4981, %v4981
          %v5238 = vpack.c.b16 %v4982, %v4982
          %v5239 = vpack.c.b16 %v4983, %v4983
          %v5240 = vpack.c.b16 %v4984, %v4984
          %v5241 = vpack.c.b16 %v4985, %v4985
          %v5242 = vpack.c.b16 %v4986, %v4986
          %v5243 = vpack.c.b16 %v4987, %v4987
          %v5244 = vpack.c.b16 %v4988, %v4988
          %v5245 = vpack.c.b16 %v4989, %v4989
          %v5246 = vpack.c.b16 %v4990, %v4990
          %v5247 = vpack.c.b16 %v4991, %v4991
          %v5248 = vpack.c.b16 %v4992, %v4992
          %v5249 = vpack.c.b16 %v4993, %v4993
          %v5250 = vpack.c.b16 %v4994, %v4994
          %v5251 = vpack.c.b16 %v4995, %v4995
          %v5252 = vpack.c.b16 %v4996, %v4996
          %v5253 = vpack.c.b16 %v4997, %v4997
          %v5254 = vpack.c.b16 %v4998, %v4998
          %v5255 = vpack.c.b16 %v4999, %v4999
          %v5256 = vpack.c.b16 %v5000, %v5000
          %v5257 = vpack.c.b16 %v5001, %v5001
          %v5258 = vpack.c.b16 %v5002, %v5002
          %v5259 = vpack.c.b16 %v5003, %v5003
          %v5260 = vpack.c.b16 %v5004, %v5004
          %v5261 = vpack.c.b16 %v5005, %v5005
          %v5262 = vpack.c.b16 %v5006, %v5006
          %v5263 = vpack.c.b16 %v5007, %v5007
          %v5264 = vpack.c.b16 %v5008, %v5008
          %v5265 = vpack.c.b16 %v5009, %v5009
          %v5266 = vpack.c.b16 %v5010, %v5010
          %v5267 = vpack.c.b16 %v5011, %v5011
          %v5268 = vpack.c.b16 %v5012, %v5012
          %v5269 = vpack.c.b16 %v5013, %v5013
          %v5270 = vpack.c.b16 %v5014, %v5014
          %v5271 = vpack.c.b16 %v5015, %v5015
          %v5272 = vpack.c.b16 %v5016, %v5016
          %v5273 = vpack.c.b16 %v5017, %v5017
          %v5274 = vpack.c.b16 %v5018, %v5018
          %v5275 = vpack.c.b16 %v5019, %v5019
          %v5276 = vpack.c.b16 %v5020, %v5020
          %v5277 = vpack.c.b16 %v5021, %v5021
          %v5278 = vpack.c.b16 %v5022, %v5022
          %v5279 = vpack.c.b16 %v5023, %v5023
          %v5280 = vpack.c.b16 %v5024, %v5024
          %v5281 = vpack.c.b16 %v5025, %v5025
          %v5282 = vpack.c.b16 %v5026, %v5026
          %v5283 = vpack.c.b16 %v5027, %v5027
          %v5284 = vpack.c.b16 %v5028, %v5028
          %v5285 = vpack.c.b16 %v5029, %v5029
          %v5286 = vpack.c.b16 %v5030, %v5030
          %v5287 = vpack.c.b16 %v5031, %v5031
          %v5288 = vpack.c.b16 %v5032, %v5032
          %v5289 = vpack.c.b16 %v5033, %v5033
          %v5290 = vpack.c.b16 %v5034, %v5034
          %5547 = vst [vmem:[%s304] sm:$0xf] %v5035
          %5548 = vst [vmem:[%s304 + $0x4] sm:$0xf] %v5036
          %5549 = vst [vmem:[%s304 + $0x8] sm:$0xf] %v5037
          %5550 = vst [vmem:[%s304 + $0xc] sm:$0xf] %v5038
          %5551 = vst [vmem:[%s304 + $0x10] sm:$0xf] %v5039
          %5552 = vst [vmem:[%s304 + $0x14] sm:$0xf] %v5040
          %5553 = vst [vmem:[%s304 + $0x18] sm:$0xf] %v5041
          %5554 = vst [vmem:[%s304 + $0x1c] sm:$0xf] %v5042
          %5555 = vst [vmem:[%s304 + $0x20] sm:$0xf] %v5043
          %5556 = vst [vmem:[%s304 + $0x24] sm:$0xf] %v5044
          %5557 = vst [vmem:[%s304 + $0x28] sm:$0xf] %v5045
          %5558 = vst [vmem:[%s304 + $0x2c] sm:$0xf] %v5046
          %5559 = vst [vmem:[%s304 + $0x30] sm:$0xf] %v5047
          %5560 = vst [vmem:[%s304 + $0x34] sm:$0xf] %v5048
          %5561 = vst [vmem:[%s304 + $0x38] sm:$0xf] %v5049
          %5562 = vst [vmem:[%s304 + $0x3c] sm:$0xf] %v5050
          %5563 = vst [vmem:[%s304 + $0x40] sm:$0xf] %v5051
          %5564 = vst [vmem:[%s304 + $0x44] sm:$0xf] %v5052
          %5565 = vst [vmem:[%s304 + $0x48] sm:$0xf] %v5053
          %5566 = vst [vmem:[%s304 + $0x4c] sm:$0xf] %v5054
          %5567 = vst [vmem:[%s304 + $0x50] sm:$0xf] %v5055
          %5568 = vst [vmem:[%s304 + $0x54] sm:$0xf] %v5056
          %5569 = vst [vmem:[%s304 + $0x58] sm:$0xf] %v5057
          %5570 = vst [vmem:[%s304 + $0x5c] sm:$0xf] %v5058
          %5571 = vst [vmem:[%s304 + $0x60] sm:$0xf] %v5059
          %5572 = vst [vmem:[%s304 + $0x64] sm:$0xf] %v5060
          %5573 = vst [vmem:[%s304 + $0x68] sm:$0xf] %v5061
          %5574 = vst [vmem:[%s304 + $0x6c] sm:$0xf] %v5062
          %5575 = vst [vmem:[%s304 + $0x70] sm:$0xf] %v5063
          %5576 = vst [vmem:[%s304 + $0x74] sm:$0xf] %v5064
          %5577 = vst [vmem:[%s304 + $0x78] sm:$0xf] %v5065
          %5578 = vst [vmem:[%s304 + $0x7c] sm:$0xf] %v5066
          %5579 = vst [vmem:[%s304 + $0x80] sm:$0xf] %v5067
          %5580 = vst [vmem:[%s304 + $0x84] sm:$0xf] %v5068
          %5581 = vst [vmem:[%s304 + $0x88] sm:$0xf] %v5069
          %5582 = vst [vmem:[%s304 + $0x8c] sm:$0xf] %v5070
          %5583 = vst [vmem:[%s304 + $0x90] sm:$0xf] %v5071
          %5584 = vst [vmem:[%s304 + $0x94] sm:$0xf] %v5072
          %5585 = vst [vmem:[%s304 + $0x98] sm:$0xf] %v5073
          %5586 = vst [vmem:[%s304 + $0x9c] sm:$0xf] %v5074
          %5587 = vst [vmem:[%s304 + $0xa0] sm:$0xf] %v5075
          %5588 = vst [vmem:[%s304 + $0xa4] sm:$0xf] %v5076
          %5589 = vst [vmem:[%s304 + $0xa8] sm:$0xf] %v5077
          %5590 = vst [vmem:[%s304 + $0xac] sm:$0xf] %v5078
          %5591 = vst [vmem:[%s304 + $0xb0] sm:$0xf] %v5079
          %5592 = vst [vmem:[%s304 + $0xb4] sm:$0xf] %v5080
          %5593 = vst [vmem:[%s304 + $0xb8] sm:$0xf] %v5081
          %5594 = vst [vmem:[%s304 + $0xbc] sm:$0xf] %v5082
          %5595 = vst [vmem:[%s304 + $0xc0] sm:$0xf] %v5083
          %5596 = vst [vmem:[%s304 + $0xc4] sm:$0xf] %v5084
          %5597 = vst [vmem:[%s304 + $0xc8] sm:$0xf] %v5085
          %5598 = vst [vmem:[%s304 + $0xcc] sm:$0xf] %v5086
          %5599 = vst [vmem:[%s304 + $0xd0] sm:$0xf] %v5087
          %5600 = vst [vmem:[%s304 + $0xd4] sm:$0xf] %v5088
          %5601 = vst [vmem:[%s304 + $0xd8] sm:$0xf] %v5089
          %5602 = vst [vmem:[%s304 + $0xdc] sm:$0xf] %v5090
          %5603 = vst [vmem:[%s304 + $0xe0] sm:$0xf] %v5091
          %5604 = vst [vmem:[%s304 + $0xe4] sm:$0xf] %v5092
          %5605 = vst [vmem:[%s304 + $0xe8] sm:$0xf] %v5093
          %5606 = vst [vmem:[%s304 + $0xec] sm:$0xf] %v5094
          %5607 = vst [vmem:[%s304 + $0xf0] sm:$0xf] %v5095
          %5608 = vst [vmem:[%s304 + $0xf4] sm:$0xf] %v5096
          %5609 = vst [vmem:[%s304 + $0xf8] sm:$0xf] %v5097
          %5610 = vst [vmem:[%s304 + $0xfc] sm:$0xf] %v5098
          %5611 = vst [vmem:[%s304 + $0x100] sm:$0xf] %v5099
          %5612 = vst [vmem:[%s304 + $0x104] sm:$0xf] %v5100
          %5613 = vst [vmem:[%s304 + $0x108] sm:$0xf] %v5101
          %5614 = vst [vmem:[%s304 + $0x10c] sm:$0xf] %v5102
          %5615 = vst [vmem:[%s304 + $0x110] sm:$0xf] %v5103
          %5616 = vst [vmem:[%s304 + $0x114] sm:$0xf] %v5104
          %5617 = vst [vmem:[%s304 + $0x118] sm:$0xf] %v5105
          %5618 = vst [vmem:[%s304 + $0x11c] sm:$0xf] %v5106
          %5619 = vst [vmem:[%s304 + $0x120] sm:$0xf] %v5107
          %5620 = vst [vmem:[%s304 + $0x124] sm:$0xf] %v5108
          %5621 = vst [vmem:[%s304 + $0x128] sm:$0xf] %v5109
          %5622 = vst [vmem:[%s304 + $0x12c] sm:$0xf] %v5110
          %5623 = vst [vmem:[%s304 + $0x130] sm:$0xf] %v5111
          %5624 = vst [vmem:[%s304 + $0x134] sm:$0xf] %v5112
          %5625 = vst [vmem:[%s304 + $0x138] sm:$0xf] %v5113
          %5626 = vst [vmem:[%s304 + $0x13c] sm:$0xf] %v5114
          %5627 = vst [vmem:[%s304 + $0x140] sm:$0xf] %v5115
          %5628 = vst [vmem:[%s304 + $0x144] sm:$0xf] %v5116
          %5629 = vst [vmem:[%s304 + $0x148] sm:$0xf] %v5117
          %5630 = vst [vmem:[%s304 + $0x14c] sm:$0xf] %v5118
          %5631 = vst [vmem:[%s304 + $0x150] sm:$0xf] %v5119
          %5632 = vst [vmem:[%s304 + $0x154] sm:$0xf] %v5120
          %5633 = vst [vmem:[%s304 + $0x158] sm:$0xf] %v5121
          %5634 = vst [vmem:[%s304 + $0x15c] sm:$0xf] %v5122
          %5635 = vst [vmem:[%s304 + $0x160] sm:$0xf] %v5123
          %5636 = vst [vmem:[%s304 + $0x164] sm:$0xf] %v5124
          %5637 = vst [vmem:[%s304 + $0x168] sm:$0xf] %v5125
          %5638 = vst [vmem:[%s304 + $0x16c] sm:$0xf] %v5126
          %5639 = vst [vmem:[%s304 + $0x170] sm:$0xf] %v5127
          %5640 = vst [vmem:[%s304 + $0x174] sm:$0xf] %v5128
          %5641 = vst [vmem:[%s304 + $0x178] sm:$0xf] %v5129
          %5642 = vst [vmem:[%s304 + $0x17c] sm:$0xf] %v5130
          %5643 = vst [vmem:[%s304 + $0x180] sm:$0xf] %v5131
          %5644 = vst [vmem:[%s304 + $0x184] sm:$0xf] %v5132
          %5645 = vst [vmem:[%s304 + $0x188] sm:$0xf] %v5133
          %5646 = vst [vmem:[%s304 + $0x18c] sm:$0xf] %v5134
          %5647 = vst [vmem:[%s304 + $0x190] sm:$0xf] %v5135
          %5648 = vst [vmem:[%s304 + $0x194] sm:$0xf] %v5136
          %5649 = vst [vmem:[%s304 + $0x198] sm:$0xf] %v5137
          %5650 = vst [vmem:[%s304 + $0x19c] sm:$0xf] %v5138
          %5651 = vst [vmem:[%s304 + $0x1a0] sm:$0xf] %v5139
          %5652 = vst [vmem:[%s304 + $0x1a4] sm:$0xf] %v5140
          %5653 = vst [vmem:[%s304 + $0x1a8] sm:$0xf] %v5141
          %5654 = vst [vmem:[%s304 + $0x1ac] sm:$0xf] %v5142
          %5655 = vst [vmem:[%s304 + $0x1b0] sm:$0xf] %v5143
          %5656 = vst [vmem:[%s304 + $0x1b4] sm:$0xf] %v5144
          %5657 = vst [vmem:[%s304 + $0x1b8] sm:$0xf] %v5145
          %5658 = vst [vmem:[%s304 + $0x1bc] sm:$0xf] %v5146
          %5659 = vst [vmem:[%s304 + $0x1c0] sm:$0xf] %v5147
          %5660 = vst [vmem:[%s304 + $0x1c4] sm:$0xf] %v5148
          %5661 = vst [vmem:[%s304 + $0x1c8] sm:$0xf] %v5149
          %5662 = vst [vmem:[%s304 + $0x1cc] sm:$0xf] %v5150
          %5663 = vst [vmem:[%s304 + $0x1d0] sm:$0xf] %v5151
          %5664 = vst [vmem:[%s304 + $0x1d4] sm:$0xf] %v5152
          %5665 = vst [vmem:[%s304 + $0x1d8] sm:$0xf] %v5153
          %5666 = vst [vmem:[%s304 + $0x1dc] sm:$0xf] %v5154
          %5667 = vst [vmem:[%s304 + $0x1e0] sm:$0xf] %v5155
          %5668 = vst [vmem:[%s304 + $0x1e4] sm:$0xf] %v5156
          %5669 = vst [vmem:[%s304 + $0x1e8] sm:$0xf] %v5157
          %5670 = vst [vmem:[%s304 + $0x1ec] sm:$0xf] %v5158
          %5671 = vst [vmem:[%s304 + $0x1f0] sm:$0xf] %v5159
          %5672 = vst [vmem:[%s304 + $0x1f4] sm:$0xf] %v5160
          %5673 = vst [vmem:[%s304 + $0x1f8] sm:$0xf] %v5161
          %5674 = vst [vmem:[%s304 + $0x1fc] sm:$0xf] %v5162
          %5675 = vst [vmem:[%s304 + $0x200] sm:$0xf] %v5163
          %5676 = vst [vmem:[%s304 + $0x204] sm:$0xf] %v5164
          %5677 = vst [vmem:[%s304 + $0x208] sm:$0xf] %v5165
          %5678 = vst [vmem:[%s304 + $0x20c] sm:$0xf] %v5166
          %5679 = vst [vmem:[%s304 + $0x210] sm:$0xf] %v5167
          %5680 = vst [vmem:[%s304 + $0x214] sm:$0xf] %v5168
          %5681 = vst [vmem:[%s304 + $0x218] sm:$0xf] %v5169
          %5682 = vst [vmem:[%s304 + $0x21c] sm:$0xf] %v5170
          %5683 = vst [vmem:[%s304 + $0x220] sm:$0xf] %v5171
          %5684 = vst [vmem:[%s304 + $0x224] sm:$0xf] %v5172
          %5685 = vst [vmem:[%s304 + $0x228] sm:$0xf] %v5173
          %5686 = vst [vmem:[%s304 + $0x22c] sm:$0xf] %v5174
          %5687 = vst [vmem:[%s304 + $0x230] sm:$0xf] %v5175
          %5688 = vst [vmem:[%s304 + $0x234] sm:$0xf] %v5176
          %5689 = vst [vmem:[%s304 + $0x238] sm:$0xf] %v5177
          %5690 = vst [vmem:[%s304 + $0x23c] sm:$0xf] %v5178
          %5691 = vst [vmem:[%s304 + $0x240] sm:$0xf] %v5179
          %5692 = vst [vmem:[%s304 + $0x244] sm:$0xf] %v5180
          %5693 = vst [vmem:[%s304 + $0x248] sm:$0xf] %v5181
          %5694 = vst [vmem:[%s304 + $0x24c] sm:$0xf] %v5182
          %5695 = vst [vmem:[%s304 + $0x250] sm:$0xf] %v5183
          %5696 = vst [vmem:[%s304 + $0x254] sm:$0xf] %v5184
          %5697 = vst [vmem:[%s304 + $0x258] sm:$0xf] %v5185
          %5698 = vst [vmem:[%s304 + $0x25c] sm:$0xf] %v5186
          %5699 = vst [vmem:[%s304 + $0x260] sm:$0xf] %v5187
          %5700 = vst [vmem:[%s304 + $0x264] sm:$0xf] %v5188
          %5701 = vst [vmem:[%s304 + $0x268] sm:$0xf] %v5189
          %5702 = vst [vmem:[%s304 + $0x26c] sm:$0xf] %v5190
          %5703 = vst [vmem:[%s304 + $0x270] sm:$0xf] %v5191
          %5704 = vst [vmem:[%s304 + $0x274] sm:$0xf] %v5192
          %5705 = vst [vmem:[%s304 + $0x278] sm:$0xf] %v5193
          %5706 = vst [vmem:[%s304 + $0x27c] sm:$0xf] %v5194
          %5707 = vst [vmem:[%s304 + $0x280] sm:$0xf] %v5195
          %5708 = vst [vmem:[%s304 + $0x284] sm:$0xf] %v5196
          %5709 = vst [vmem:[%s304 + $0x288] sm:$0xf] %v5197
          %5710 = vst [vmem:[%s304 + $0x28c] sm:$0xf] %v5198
          %5711 = vst [vmem:[%s304 + $0x290] sm:$0xf] %v5199
          %5712 = vst [vmem:[%s304 + $0x294] sm:$0xf] %v5200
          %5713 = vst [vmem:[%s304 + $0x298] sm:$0xf] %v5201
          %5714 = vst [vmem:[%s304 + $0x29c] sm:$0xf] %v5202
          %5715 = vst [vmem:[%s304 + $0x2a0] sm:$0xf] %v5203
          %5716 = vst [vmem:[%s304 + $0x2a4] sm:$0xf] %v5204
          %5717 = vst [vmem:[%s304 + $0x2a8] sm:$0xf] %v5205
          %5718 = vst [vmem:[%s304 + $0x2ac] sm:$0xf] %v5206
          %5719 = vst [vmem:[%s304 + $0x2b0] sm:$0xf] %v5207
          %5720 = vst [vmem:[%s304 + $0x2b4] sm:$0xf] %v5208
          %5721 = vst [vmem:[%s304 + $0x2b8] sm:$0xf] %v5209
          %5722 = vst [vmem:[%s304 + $0x2bc] sm:$0xf] %v5210
          %5723 = vst [vmem:[%s304 + $0x2c0] sm:$0xf] %v5211
          %5724 = vst [vmem:[%s304 + $0x2c4] sm:$0xf] %v5212
          %5725 = vst [vmem:[%s304 + $0x2c8] sm:$0xf] %v5213
          %5726 = vst [vmem:[%s304 + $0x2cc] sm:$0xf] %v5214
          %5727 = vst [vmem:[%s304 + $0x2d0] sm:$0xf] %v5215
          %5728 = vst [vmem:[%s304 + $0x2d4] sm:$0xf] %v5216
          %5729 = vst [vmem:[%s304 + $0x2d8] sm:$0xf] %v5217
          %5730 = vst [vmem:[%s304 + $0x2dc] sm:$0xf] %v5218
          %5731 = vst [vmem:[%s304 + $0x2e0] sm:$0xf] %v5219
          %5732 = vst [vmem:[%s304 + $0x2e4] sm:$0xf] %v5220
          %5733 = vst [vmem:[%s304 + $0x2e8] sm:$0xf] %v5221
          %5734 = vst [vmem:[%s304 + $0x2ec] sm:$0xf] %v5222
          %5735 = vst [vmem:[%s304 + $0x2f0] sm:$0xf] %v5223
          %5736 = vst [vmem:[%s304 + $0x2f4] sm:$0xf] %v5224
          %5737 = vst [vmem:[%s304 + $0x2f8] sm:$0xf] %v5225
          %5738 = vst [vmem:[%s304 + $0x2fc] sm:$0xf] %v5226
          %5739 = vst [vmem:[%s304 + $0x300] sm:$0xf] %v5227
          %5740 = vst [vmem:[%s304 + $0x304] sm:$0xf] %v5228
          %5741 = vst [vmem:[%s304 + $0x308] sm:$0xf] %v5229
          %5742 = vst [vmem:[%s304 + $0x30c] sm:$0xf] %v5230
          %5743 = vst [vmem:[%s304 + $0x310] sm:$0xf] %v5231
          %5744 = vst [vmem:[%s304 + $0x314] sm:$0xf] %v5232
          %5745 = vst [vmem:[%s304 + $0x318] sm:$0xf] %v5233
          %5746 = vst [vmem:[%s304 + $0x31c] sm:$0xf] %v5234
          %5747 = vst [vmem:[%s304 + $0x320] sm:$0xf] %v5235
          %5748 = vst [vmem:[%s304 + $0x324] sm:$0xf] %v5236
          %5749 = vst [vmem:[%s304 + $0x328] sm:$0xf] %v5237
          %5750 = vst [vmem:[%s304 + $0x32c] sm:$0xf] %v5238
          %5751 = vst [vmem:[%s304 + $0x330] sm:$0xf] %v5239
          %5752 = vst [vmem:[%s304 + $0x334] sm:$0xf] %v5240
          %5753 = vst [vmem:[%s304 + $0x338] sm:$0xf] %v5241
          %5754 = vst [vmem:[%s304 + $0x33c] sm:$0xf] %v5242
          %5755 = vst [vmem:[%s304 + $0x340] sm:$0xf] %v5243
          %5756 = vst [vmem:[%s304 + $0x344] sm:$0xf] %v5244
          %5757 = vst [vmem:[%s304 + $0x348] sm:$0xf] %v5245
          %5758 = vst [vmem:[%s304 + $0x34c] sm:$0xf] %v5246
          %5759 = vst [vmem:[%s304 + $0x350] sm:$0xf] %v5247
          %5760 = vst [vmem:[%s304 + $0x354] sm:$0xf] %v5248
          %5761 = vst [vmem:[%s304 + $0x358] sm:$0xf] %v5249
          %5762 = vst [vmem:[%s304 + $0x35c] sm:$0xf] %v5250
          %5763 = vst [vmem:[%s304 + $0x360] sm:$0xf] %v5251
          %5764 = vst [vmem:[%s304 + $0x364] sm:$0xf] %v5252
          %5765 = vst [vmem:[%s304 + $0x368] sm:$0xf] %v5253
          %5766 = vst [vmem:[%s304 + $0x36c] sm:$0xf] %v5254
          %5767 = vst [vmem:[%s304 + $0x370] sm:$0xf] %v5255
          %5768 = vst [vmem:[%s304 + $0x374] sm:$0xf] %v5256
          %5769 = vst [vmem:[%s304 + $0x378] sm:$0xf] %v5257
          %5770 = vst [vmem:[%s304 + $0x37c] sm:$0xf] %v5258
          %5771 = vst [vmem:[%s304 + $0x380] sm:$0xf] %v5259
          %5772 = vst [vmem:[%s304 + $0x384] sm:$0xf] %v5260
          %5773 = vst [vmem:[%s304 + $0x388] sm:$0xf] %v5261
          %5774 = vst [vmem:[%s304 + $0x38c] sm:$0xf] %v5262
          %5775 = vst [vmem:[%s304 + $0x390] sm:$0xf] %v5263
          %5776 = vst [vmem:[%s304 + $0x394] sm:$0xf] %v5264
          %5777 = vst [vmem:[%s304 + $0x398] sm:$0xf] %v5265
          %5778 = vst [vmem:[%s304 + $0x39c] sm:$0xf] %v5266
          %5779 = vst [vmem:[%s304 + $0x3a0] sm:$0xf] %v5267
          %5780 = vst [vmem:[%s304 + $0x3a4] sm:$0xf] %v5268
          %5781 = vst [vmem:[%s304 + $0x3a8] sm:$0xf] %v5269
          %5782 = vst [vmem:[%s304 + $0x3ac] sm:$0xf] %v5270
          %5783 = vst [vmem:[%s304 + $0x3b0] sm:$0xf] %v5271
          %5784 = vst [vmem:[%s304 + $0x3b4] sm:$0xf] %v5272
          %5785 = vst [vmem:[%s304 + $0x3b8] sm:$0xf] %v5273
          %5786 = vst [vmem:[%s304 + $0x3bc] sm:$0xf] %v5274
          %5787 = vst [vmem:[%s304 + $0x3c0] sm:$0xf] %v5275
          %5788 = vst [vmem:[%s304 + $0x3c4] sm:$0xf] %v5276
          %5789 = vst [vmem:[%s304 + $0x3c8] sm:$0xf] %v5277
          %5790 = vst [vmem:[%s304 + $0x3cc] sm:$0xf] %v5278
          %5791 = vst [vmem:[%s304 + $0x3d0] sm:$0xf] %v5279
          %5792 = vst [vmem:[%s304 + $0x3d4] sm:$0xf] %v5280
          %5793 = vst [vmem:[%s304 + $0x3d8] sm:$0xf] %v5281
          %5794 = vst [vmem:[%s304 + $0x3dc] sm:$0xf] %v5282
          %5795 = vst [vmem:[%s304 + $0x3e0] sm:$0xf] %v5283
          %5796 = vst [vmem:[%s304 + $0x3e4] sm:$0xf] %v5284
          %5797 = vst [vmem:[%s304 + $0x3e8] sm:$0xf] %v5285
          %5798 = vst [vmem:[%s304 + $0x3ec] sm:$0xf] %v5286
          %5799 = vst [vmem:[%s304 + $0x3f0] sm:$0xf] %v5287
          %5800 = vst [vmem:[%s304 + $0x3f4] sm:$0xf] %v5288
          %5801 = vst [vmem:[%s304 + $0x3f8] sm:$0xf] %v5289
          %5802 = vst [vmem:[%s304 + $0x3fc] sm:$0xf] %v5290
        $region60: #{tpu_custom_call.1} parent=35 // pred_fallthru
          _
        %s5803 = sand.u32 %s160, 1
        %s5804 = scalar_lea.sflag [#allocation5], %s5803
        %s5805 = sand.u32 %s160, 1
        %s5806 = smul.addr %s5805, 1024
        %s5807 = scalar_lea.vmem [#allocation11], %s5806
        // Predicated region
        $region61: #{tpu_custom_call.1} parent=35 // pred_check
          %p5808 = pneg %p170
        $region62: #{tpu_custom_call.1} parent=35 // pred_check_branch
          %5810 = sbr.rel (%p5808) target = $region64
        $region63: #{tpu_custom_call.1} parent=35 // pred_region
          %s5811 = smul.u32 256, %s28
          %s5813 = ssub.s32 16384, 16384
          %5814 = vsyncadd %s5804, %s5813
          %s5815 = sadd.s32 %s29, %s5811
          %s5816 = smul.addr %s5815, 64
          %s5817 = scalar_lea.hbm %s4, %s5816
          %s5818 = sshll.u32 %s5807, 4
          %s5819 = int_to_ptr.vmem [resolvable:$true] %s5818
          %5824 = dma.vmem_to_hbm [thread:$0]  %s5819, 16384, %s5817, %s5804, 64, 64, 4
        $region64: #{tpu_custom_call.1} parent=35 // pred_fallthru
          _
      $region36: #{tpu_custom_call.1} parent=5 // pred_fallthru
        _
      %p5825 = scmp.le.s32.totalorder 2, %s18
      // Predicated region
      $region65: #{tpu_custom_call.1} parent=5 // pred_check
        %p5826 = pneg %p5825
      $region66: #{tpu_custom_call.1} parent=5 // pred_check_branch
        %5828 = sbr.rel (%p5826) target = $region68
      $region67: #{tpu_custom_call.1} parent=5 // pred_region
        %s5829 = ssub.s32 %s18, 2
        // Predicated region
        $region69: #{tpu_custom_call.1} parent=67 // pred_check
          %p5830 = pneg %p176
        $region70: #{tpu_custom_call.1} parent=67 // pred_check_branch
          %5832 = sbr.rel (%p5830) target = $region72
        $region71: #{tpu_custom_call.1} parent=67 // pred_region
          %s5833 = sand.u32 %s161, 1
          %s5834 = scalar_lea.sflag [#allocation5], %s5833
          %s5835 = sand.u32 %s161, 1
          %s5836 = smul.addr %s5835, 1024
          %s5837 = scalar_lea.vmem [#allocation11], %s5836
          %5838 = dma.done %s5834, 16384
        $region72: #{tpu_custom_call.1} parent=67 // pred_fallthru
          _
      $region68: #{tpu_custom_call.1} parent=5 // pred_fallthru
        _
    $region6: #{tpu_custom_call.1} parent=1 // loop_footer
      %s22 = sadd.s32 1, %s18
    $region7: #{tpu_custom_call.1} parent=1 // loop_footer_branch
      %17 = sbr.rel target = $region3
    $region8: #{tpu_custom_call.1} parent=1 // loop_exit
      _
    %5839 = vsyncpa [#allocation4], 1
    %s5840 = scalar_lea.sflag [#allocation4], 1
    %5841 = vsyncpa %s5840, 1
    %5842 = vsyncpa [#allocation7], 1
    %5843 = vsyncpa [#allocation10], 1
    %5844 = vsyncpa [#allocation5], 1
    %s5845 = scalar_lea.sflag [#allocation5], 1
    %5846 = vsyncpa %s5845, 1

</llo_original>
